<compile_context>
chip_gen: v7x
topology: tpu7x:2x2x1
jax: 0.10.0
libtpu: 0.0.40
codegen_flags: <defaults>
</compile_context>

<pallas_src>
import jax
import jax.numpy as jnp
from jax.experimental import pallas as pl
from jax.experimental.pallas import tpu as pltpu


IN_FEATURES = 96 * 4 * 4   # 1536
HID = 1008
HID_P = 1024               # hidden padded to a lane multiple (128)


def _round_up(x, m):
    return (x + m - 1) // m * m


# ------------------------------------------------------------------ kernel ---
def _head_kernel(x_ref, w_fc_ref, scale_ref, shift_ref, w_out_ref, b_out_ref,
                 out_ref):
    # fc: (TB, 1536) bf16 @ (1536, 1024) bf16 -> f32 accumulate on the MXU.
    h = jnp.dot(x_ref[...], w_fc_ref[...], preferred_element_type=jnp.float32)
    # Folded (fc bias + eval-mode BatchNorm) affine, then ReLU — f32 on the VPU.
    h = jnp.maximum(h * scale_ref[...] + shift_ref[...], 0.0)
    # Fused classifier+regressor: (TB, 1024) @ (1024, OUT_P) -> lane-dense store.
    out = jnp.dot(h.astype(w_out_ref.dtype), w_out_ref[...],
                  preferred_element_type=jnp.float32)
    out_ref[...] = out + b_out_ref[...]


# ----------------------------------------------------------------- wrapper ---
def classification_location_head(x, params, *, eps=1e-5):
    """x: (B, 1536) float32.  Returns (logits (B, C), boxes (B, 4))."""
    B, IN = x.shape
    assert IN == IN_FEATURES

    w_fc, b_fc = params["w_fc"], params["b_fc"]            # (1536,1008), (1008,)
    gamma, beta = params["bn_gamma"], params["bn_beta"]    # (1008,)
    r_mean, r_var = params["bn_mean"], params["bn_var"]    # (1008,)
    w_cls, b_cls = params["w_cls"], params["b_cls"]        # (1008,C), (C,)
    w_reg, b_reg = params["w_reg"], params["b_reg"]        # (1008,4), (4,)
    C = w_cls.shape[1]

    # Fold eval-mode BatchNorm AND the fc bias into one per-feature affine.
    #   relu((x@W + b - mean) * gamma/std + beta) = relu((x@W)*scale + shift)
    inv_std = 1.0 / jnp.sqrt(r_var + eps)
    scale = gamma * inv_std                                # (1008,)
    shift = beta + (b_fc - r_mean) * scale                 # (1008,)

    # Pad hidden dim 1008 -> 1024 with zeros (scale=0, shift=0 keeps padded
    # lanes exactly 0 after ReLU, so they contribute nothing downstream).
    hpad = HID_P - HID
    w_fc_p = jnp.pad(w_fc, ((0, 0), (0, hpad)))                     # (1536,1024)
    scale_p = jnp.pad(scale, (0, hpad)).reshape(1, HID_P)           # (1,1024) f32
    shift_p = jnp.pad(shift, (0, hpad)).reshape(1, HID_P)           # (1,1024) f32

    # Fuse classifier + regressor into one lane-dense (1024, OUT_P) matmul.
    OUT = C + 4
    OUT_P = _round_up(OUT, 128)
    w_out = jnp.concatenate([w_cls, w_reg], axis=1)                 # (1008, C+4)
    w_out = jnp.pad(w_out, ((0, hpad), (0, OUT_P - OUT)))           # (1024, OUT_P)
    b_out = jnp.pad(jnp.concatenate([b_cls, b_reg]),
                    (0, OUT_P - OUT)).reshape(1, OUT_P)             # (1, OUT_P)

    # Batch tiling: pad B to a multiple of the tile, grid over batch tiles.
    TB = min(128, _round_up(B, 8))
    B_pad = _round_up(B, TB)
    x_p = jnp.pad(x, ((0, B_pad - B), (0, 0)))

    # bf16 MXU operands (halves HBM traffic for the dominant w_fc load).
    x_p = x_p.astype(jnp.bfloat16)
    w_fc_p = w_fc_p.astype(jnp.bfloat16)
    w_out = w_out.astype(jnp.bfloat16)

    nb = B_pad // TB
    out = pl.pallas_call(
        _head_kernel,
        out_shape=jax.ShapeDtypeStruct((B_pad, OUT_P), jnp.float32),
        grid_spec=pl.GridSpec(
            grid=(nb,),
            in_specs=[
                pl.BlockSpec((TB, IN_FEATURES), lambda i: (i, 0)),   # x tile
                pl.BlockSpec((IN_FEATURES, HID_P), lambda i: (0, 0)),  # w_fc (resident)
                pl.BlockSpec((1, HID_P), lambda i: (0, 0)),          # bn scale
                pl.BlockSpec((1, HID_P), lambda i: (0, 0)),          # bn shift (+b_fc)
                pl.BlockSpec((HID_P, OUT_P), lambda i: (0, 0)),      # fused cls+reg W
                pl.BlockSpec((1, OUT_P), lambda i: (0, 0)),          # fused bias
            ],
            out_specs=pl.BlockSpec((TB, OUT_P), lambda i: (i, 0)),
        ),
        compiler_params=pltpu.CompilerParams(
            dimension_semantics=("parallel",),
        ),
    )(x_p, w_fc_p, scale_p, shift_p, w_out, b_out)

    logits = out[:B, :C]
    boxes = out[:B, C:C + 4]
    return logits, boxes


# ------------------------------------------------------------ param builder --
def init_params(key, num_classes):
    IN = IN_FEATURES
    ks = jax.random.split(key, 8)
    s = 0.02
    return {
        # weights stored as (in_features, out_features)
        "w_fc": s * jax.random.normal(ks[0], (IN, HID), jnp.float32),
        "b_fc": s * jax.random.normal(ks[1], (HID,), jnp.float32),
        "bn_gamma": 1.0 + 0.1 * jax.random.normal(ks[2], (HID,), jnp.float32),
        "bn_beta": 0.1 * jax.random.normal(ks[3], (HID,), jnp.float32),
        "bn_mean": 0.1 * jax.random.normal(ks[4], (HID,), jnp.float32),
        "bn_var": jnp.abs(1.0 + 0.1 * jax.random.normal(ks[5], (HID,), jnp.float32)),
        "w_cls": s * jax.random.normal(ks[6], (HID, num_classes), jnp.float32),
        "b_cls": jnp.zeros((num_classes,), jnp.float32),
        "w_reg": s * jax.random.normal(ks[7], (HID, 4), jnp.float32),
        "b_reg": jnp.zeros((4,), jnp.float32),
    }


def reference(x, params, eps=1e-5):
    h = x @ params["w_fc"] + params["b_fc"]
    h = (h - params["bn_mean"]) / jnp.sqrt(params["bn_var"] + eps)
    h = h * params["bn_gamma"] + params["bn_beta"]
    h = jnp.maximum(h, 0.0)
    return (h @ params["w_cls"] + params["b_cls"],
            h @ params["w_reg"] + params["b_reg"])


# -------------------------------------------------------------------- main ---
if __name__ == "__main__":
    key = jax.random.PRNGKey(0)
    kx, kp = jax.random.split(key)

    B = 8
    NUM_CLASSES = 10

    x = jax.random.normal(kx, (B, IN_FEATURES), jnp.float32)
    params = init_params(kp, NUM_CLASSES)

    logits, boxes = classification_location_head(x, params)
    jax.block_until_ready((logits, boxes))

    # Sanity check against a pure-JAX f32 reference (bf16 MXU inputs ->
    # loosened tolerance).
    ref_logits, ref_boxes = reference(x, params)
    assert logits.shape == (B, NUM_CLASSES) and boxes.shape == (B, 4)
    assert jnp.allclose(logits, ref_logits, atol=3e-2, rtol=3e-2)
    assert jnp.allclose(boxes, ref_boxes, atol=3e-2, rtol=3e-2)

    print("KERNEL_OK")
</pallas_src>

<mosaic_0001>
module attributes {stable_mosaic.version = 11 : i64} {
  func.func @_head_kernel(%arg0: i32, %arg1: memref<8x1536xbf16, #tpu.memory_space<vmem>>, %arg2: memref<1536x1024xbf16, #tpu.memory_space<vmem>>, %arg3: memref<1x1024xf32, #tpu.memory_space<vmem>>, %arg4: memref<1x1024xf32, #tpu.memory_space<vmem>>, %arg5: memref<1024x128xbf16, #tpu.memory_space<vmem>>, %arg6: memref<1x128xf32, #tpu.memory_space<vmem>>, %arg7: memref<8x128xf32, #tpu.memory_space<vmem>>) attributes {dimension_semantics = [#tpu.dimension_semantics<parallel>], iteration_bounds = array<i64: 1>, scalar_prefetch = 0 : i64, scratch_operands = 0 : i64, tpu.core_type = #tpu.core_type<tc>, window_params = [{transform_indices = @transform_0, window_bounds = array<i64: 8, 1536>}, {pipeline_mode = #tpu.pipeline_mode<synchronous>, transform_indices = @transform_1, window_bounds = array<i64: 1536, 1024>}, {pipeline_mode = #tpu.pipeline_mode<synchronous>, transform_indices = @transform_2, window_bounds = array<i64: 1, 1024>}, {pipeline_mode = #tpu.pipeline_mode<synchronous>, transform_indices = @transform_3, window_bounds = array<i64: 1, 1024>}, {pipeline_mode = #tpu.pipeline_mode<synchronous>, transform_indices = @transform_4, window_bounds = array<i64: 1024, 128>}, {pipeline_mode = #tpu.pipeline_mode<synchronous>, transform_indices = @transform_5, window_bounds = array<i64: 1, 128>}, {transform_indices = @transform_6, window_bounds = array<i64: 8, 128>}]} {
    %c0 = arith.constant 0 : index
    %c0_0 = arith.constant 0 : index
    %0 = vector.load %arg1[%c0, %c0_0] : memref<8x1536xbf16, #tpu.memory_space<vmem>>, vector<8x1536xbf16>
    %c0_1 = arith.constant 0 : index
    %c0_2 = arith.constant 0 : index
    %1 = vector.load %arg2[%c0_1, %c0_2] : memref<1536x1024xbf16, #tpu.memory_space<vmem>>, vector<1536x1024xbf16>
    %cst = arith.constant dense<0.000000e+00> : vector<8x1024xf32>
    %2 = tpu.matmul %0, %1, %cst {dimension_numbers = #tpu.dot_dimension_numbers<[1], [0], [0], [1], [0, 0, 1, 1], [], []>} : vector<8x1536xbf16>, vector<1536x1024xbf16>, vector<8x1024xf32> -> vector<8x1024xf32>
    %c0_3 = arith.constant 0 : index
    %c0_4 = arith.constant 0 : index
    %3 = vector.load %arg3[%c0_3, %c0_4] : memref<1x1024xf32, #tpu.memory_space<vmem>>, vector<1x1024xf32>
    %4 = vector.broadcast %3 : vector<1x1024xf32> to vector<8x1024xf32>
    %5 = arith.mulf %2, %4 : vector<8x1024xf32>
    %c0_5 = arith.constant 0 : index
    %c0_6 = arith.constant 0 : index
    %6 = vector.load %arg4[%c0_5, %c0_6] : memref<1x1024xf32, #tpu.memory_space<vmem>>, vector<1x1024xf32>
    %7 = vector.broadcast %6 : vector<1x1024xf32> to vector<8x1024xf32>
    %8 = arith.addf %5, %7 : vector<8x1024xf32>
    %cst_7 = arith.constant 0.000000e+00 : f32
    %9 = vector.broadcast %cst_7 : f32 to vector<8x1024xf32>
    %10 = arith.maximumf %8, %9 : vector<8x1024xf32>
    %11 = arith.truncf %10 : vector<8x1024xf32> to vector<8x1024xbf16>
    %c0_8 = arith.constant 0 : index
    %c0_9 = arith.constant 0 : index
    %12 = vector.load %arg5[%c0_8, %c0_9] : memref<1024x128xbf16, #tpu.memory_space<vmem>>, vector<1024x128xbf16>
    %cst_10 = arith.constant dense<0.000000e+00> : vector<8x128xf32>
    %13 = tpu.matmul %11, %12, %cst_10 {dimension_numbers = #tpu.dot_dimension_numbers<[1], [0], [0], [1], [0, 0, 1, 1], [], []>} : vector<8x1024xbf16>, vector<1024x128xbf16>, vector<8x128xf32> -> vector<8x128xf32>
    %c0_11 = arith.constant 0 : index
    %c0_12 = arith.constant 0 : index
    %14 = vector.load %arg6[%c0_11, %c0_12] : memref<1x128xf32, #tpu.memory_space<vmem>>, vector<1x128xf32>
    %15 = vector.broadcast %14 : vector<1x128xf32> to vector<8x128xf32>
    %16 = arith.addf %13, %15 : vector<8x128xf32>
    %c0_13 = arith.constant 0 : index
    %c0_14 = arith.constant 0 : index
    %17 = vector.load %arg7[%c0_13, %c0_14] : memref<8x128xf32, #tpu.memory_space<vmem>>, vector<8x128xf32>
    tpu.vector_store %arg7[%c0_13, %c0_14], %16 {strides = array<i32>} : memref<8x128xf32, #tpu.memory_space<vmem>>, vector<8x128xf32>,
    return
  }
  func.func @transform_0(%arg0: i32) -> (i32, i32) {
    %c0_i32 = arith.constant 0 : i32
    %c0_i32_0 = arith.constant 0 : i32
    return %arg0, %c0_i32 : i32, i32
  }
  func.func @transform_1(%arg0: i32) -> (i32, i32) {
    %c0_i32 = arith.constant 0 : i32
    %c0_i32_0 = arith.constant 0 : i32
    %c0_i32_1 = arith.constant 0 : i32
    return %c0_i32, %c0_i32_0 : i32, i32
  }
  func.func @transform_2(%arg0: i32) -> (i32, i32) {
    %c0_i32 = arith.constant 0 : i32
    %c0_i32_0 = arith.constant 0 : i32
    %c0_i32_1 = arith.constant 0 : i32
    return %c0_i32, %c0_i32_0 : i32, i32
  }
  func.func @transform_3(%arg0: i32) -> (i32, i32) {
    %c0_i32 = arith.constant 0 : i32
    %c0_i32_0 = arith.constant 0 : i32
    %c0_i32_1 = arith.constant 0 : i32
    return %c0_i32, %c0_i32_0 : i32, i32
  }
  func.func @transform_4(%arg0: i32) -> (i32, i32) {
    %c0_i32 = arith.constant 0 : i32
    %c0_i32_0 = arith.constant 0 : i32
    %c0_i32_1 = arith.constant 0 : i32
    return %c0_i32, %c0_i32_0 : i32, i32
  }
  func.func @transform_5(%arg0: i32) -> (i32, i32) {
    %c0_i32 = arith.constant 0 : i32
    %c0_i32_0 = arith.constant 0 : i32
    %c0_i32_1 = arith.constant 0 : i32
    return %c0_i32, %c0_i32_0 : i32, i32
  }
  func.func @transform_6(%arg0: i32) -> (i32, i32) {
    %c0_i32 = arith.constant 0 : i32
    %c0_i32_0 = arith.constant 0 : i32
    return %arg0, %c0_i32 : i32, i32
  }
}

</mosaic_0001>

<llo_original>
// kernel: tpu_custom_call.1
$region0: #{tpu_custom_call.1}
  #allocation0 [shape = 'u32[]', space=smem, size = 0x4, offset = 0x4, fixed_abs, tag = 'smem constant byte address 0x4 - core index']
  #allocation1 [shape = 'u32[144,128]{1,0:T(1,128)}', space=vmem, size = 0x12000, scoped, tag = 'internal scratch']
  %s0 = inlined_call_operand.hbm [shape: bf16[8,1536], index: 0, kind: input, shape index: {}]
  %s1 = inlined_call_operand.hbm [shape: bf16[1536,1024], index: 1, kind: input, shape index: {}]
  %s2 = inlined_call_operand.hbm [shape: f32[1,1024], index: 2, kind: input, shape index: {}]
  %s3 = inlined_call_operand.hbm [shape: f32[1,1024], index: 3, kind: input, shape index: {}]
  %s4 = inlined_call_operand.hbm [shape: bf16[1024,128], index: 4, kind: input, shape index: {}]
  %s5 = inlined_call_operand.hbm [shape: f32[1,128], index: 5, kind: input, shape index: {}]
  %s6 = inlined_call_operand.hbm [shape: f32[8,128], index: 6, kind: output, shape index: {}]
  %s7 = sld [smem:[#allocation0]]
  $region58: #{tpu_custom_call.1} parent=0
    _
  %s9 = ssub.s32 1, %s7
  %s10 = scalar_select 0, %s9, %s7
  $region1: #{tpu_custom_call.1} parent=0
    #allocation2 [shape = 'u8[24576]{0}', space=vmem, size = 0x6000, scoped, tag = 'input window, operand 0, single buffered']
    #allocation3 [shape = 's32[1]{0}', space=sflag, size = 0x4, scoped, tag = 'scoped memory for tpu_custom_call.1']
    #allocation4 [shape = 's32[1]{0}', space=sflag, size = 0x4, scoped, tag = 'scoped memory for tpu_custom_call.1']
    #allocation5 [shape = 'u8[3145728]{0}', space=vmem, size = 0x300000, scoped, tag = 'input window, operand 1, single buffered']
    #allocation6 [shape = 's32[1]{0}', space=sflag, size = 0x4, scoped, tag = 'scoped memory for tpu_custom_call.1']
    #allocation7 [shape = 'u8[4096]{0}', space=vmem, size = 0x1000, scoped, tag = 'input window, operand 2, single buffered']
    #allocation8 [shape = 'u8[4096]{0}', space=vmem, size = 0x1000, scoped, tag = 'input window, operand 3, single buffered']
    #allocation9 [shape = 's32[1]{0}', space=sflag, size = 0x4, scoped, tag = 'scoped memory for tpu_custom_call.1']
    #allocation10 [shape = 'u8[262144]{0}', space=vmem, size = 0x40000, scoped, tag = 'input window, operand 4, single buffered']
    #allocation11 [shape = 'u8[512]{0}', space=vmem, size = 0x400, scoped, tag = 'input window, operand 5, single buffered']
    #allocation12 [shape = 's32[1]{0}', space=sflag, size = 0x4, scoped, tag = 'scoped memory for tpu_custom_call.1']
    #allocation13 [shape = 'u8[4096]{0}', space=vmem, size = 0x1000, scoped, tag = 'output window, operand 0, single buffered']
    %11 = vsyncpa [#allocation3], 0
    %12 = vsyncpa [#allocation6], 0
    %13 = vsyncpa [#allocation9], 0
    %14 = vsyncpa [#allocation12], 0
    %15 = vsyncpa [#allocation4], 0
    // Predicated region
    $region2: #{tpu_custom_call.1} parent=1 // pred_check
      _
    $region3: #{tpu_custom_call.1} parent=1 // pred_check_branch
      %17 = sbr.rel (0) target = $region5
    $region4: #{tpu_custom_call.1} parent=1 // pred_region
      %s19 = ssub.s32 768, 768
      %20 = vsyncadd [#allocation3], %s19
      %s22 = sshll.u32 [#allocation2], 4
      %s23 = int_to_ptr.vmem [resolvable:$true] %s22
      %25 = dma.hbm_to_vmem [thread:$0]  %s0, 768, %s23, [#allocation3]
    $region5: #{tpu_custom_call.1} parent=1 // pred_fallthru
      _
    // Predicated region
    $region6: #{tpu_custom_call.1} parent=1 // pred_check
      _
    $region7: #{tpu_custom_call.1} parent=1 // pred_check_branch
      %27 = sbr.rel (0) target = $region9
    $region8: #{tpu_custom_call.1} parent=1 // pred_region
      %s29 = ssub.s32 98304, 98304
      %30 = vsyncadd [#allocation6], %s29
      %s31 = sshll.u32 [#allocation5], 4
      %s32 = int_to_ptr.vmem [resolvable:$true] %s31
      %37 = dma.hbm_to_vmem [thread:$0]  %s1, 98304, %s32, [#allocation6], 512, 512, 32
    $region9: #{tpu_custom_call.1} parent=1 // pred_fallthru
      _
    // Predicated region
    $region10: #{tpu_custom_call.1} parent=1 // pred_check
      _
    $region11: #{tpu_custom_call.1} parent=1 // pred_check_branch
      %39 = sbr.rel (0) target = $region13
    $region12: #{tpu_custom_call.1} parent=1 // pred_region
      %s41 = ssub.s32 128, 128
      %42 = vsyncadd [#allocation6], %s41
      %s44 = sshll.u32 [#allocation7], 4
      %s45 = int_to_ptr.vmem [resolvable:$true] %s44
      %47 = dma.hbm_to_vmem [thread:$0]  %s2, 128, %s45, [#allocation6]
    $region13: #{tpu_custom_call.1} parent=1 // pred_fallthru
      _
    // Predicated region
    $region14: #{tpu_custom_call.1} parent=1 // pred_check
      _
    $region15: #{tpu_custom_call.1} parent=1 // pred_check_branch
      %49 = sbr.rel (0) target = $region17
    $region16: #{tpu_custom_call.1} parent=1 // pred_region
      %s51 = ssub.s32 128, 128
      %52 = vsyncadd [#allocation9], %s51
      %s54 = sshll.u32 [#allocation8], 4
      %s55 = int_to_ptr.vmem [resolvable:$true] %s54
      %57 = dma.hbm_to_vmem [thread:$0]  %s3, 128, %s55, [#allocation9]
    $region17: #{tpu_custom_call.1} parent=1 // pred_fallthru
      _
    // Predicated region
    $region18: #{tpu_custom_call.1} parent=1 // pred_check
      _
    $region19: #{tpu_custom_call.1} parent=1 // pred_check_branch
      %59 = sbr.rel (0) target = $region21
    $region20: #{tpu_custom_call.1} parent=1 // pred_region
      %s61 = ssub.s32 8192, 8192
      %62 = vsyncadd [#allocation9], %s61
      %s63 = sshll.u32 [#allocation10], 4
      %s64 = int_to_ptr.vmem [resolvable:$true] %s63
      %69 = dma.hbm_to_vmem [thread:$0]  %s4, 8192, %s64, [#allocation9], 64, 64, 4
    $region21: #{tpu_custom_call.1} parent=1 // pred_fallthru
      _
    // Predicated region
    $region22: #{tpu_custom_call.1} parent=1 // pred_check
      _
    $region23: #{tpu_custom_call.1} parent=1 // pred_check_branch
      %71 = sbr.rel (0) target = $region25
    $region24: #{tpu_custom_call.1} parent=1 // pred_region
      %s73 = ssub.s32 16, 16
      %74 = vsyncadd [#allocation12], %s73
      %s76 = sshll.u32 [#allocation11], 4
      %s77 = int_to_ptr.vmem [resolvable:$true] %s76
      %79 = dma.hbm_to_vmem [thread:$0]  %s5, 16, %s77, [#allocation12]
    $region25: #{tpu_custom_call.1} parent=1 // pred_fallthru
      _
    // Predicated region
    $region26: #{tpu_custom_call.1} parent=1 // pred_check
      _
    $region27: #{tpu_custom_call.1} parent=1 // pred_check_branch
      %81 = sbr.rel (0) target = $region29
    $region28: #{tpu_custom_call.1} parent=1 // pred_region
      %82 = dma.done [#allocation3], 768
    $region29: #{tpu_custom_call.1} parent=1 // pred_fallthru
      _
    // Predicated region
    $region30: #{tpu_custom_call.1} parent=1 // pred_check
      _
    $region31: #{tpu_custom_call.1} parent=1 // pred_check_branch
      %84 = sbr.rel (0) target = $region33
    $region32: #{tpu_custom_call.1} parent=1 // pred_region
      %85 = dma.done [#allocation6], 98304
    $region33: #{tpu_custom_call.1} parent=1 // pred_fallthru
      _
    // Predicated region
    $region34: #{tpu_custom_call.1} parent=1 // pred_check
      _
    $region35: #{tpu_custom_call.1} parent=1 // pred_check_branch
      %87 = sbr.rel (0) target = $region37
    $region36: #{tpu_custom_call.1} parent=1 // pred_region
      %88 = dma.done [#allocation6], 128
    $region37: #{tpu_custom_call.1} parent=1 // pred_fallthru
      _
    // Predicated region
    $region38: #{tpu_custom_call.1} parent=1 // pred_check
      _
    $region39: #{tpu_custom_call.1} parent=1 // pred_check_branch
      %90 = sbr.rel (0) target = $region41
    $region40: #{tpu_custom_call.1} parent=1 // pred_region
      %91 = dma.done [#allocation9], 128
    $region41: #{tpu_custom_call.1} parent=1 // pred_fallthru
      _
    // Predicated region
    $region42: #{tpu_custom_call.1} parent=1 // pred_check
      _
    $region43: #{tpu_custom_call.1} parent=1 // pred_check_branch
      %93 = sbr.rel (0) target = $region45
    $region44: #{tpu_custom_call.1} parent=1 // pred_region
      %94 = dma.done [#allocation9], 8192
    $region45: #{tpu_custom_call.1} parent=1 // pred_fallthru
      _
    // Predicated region
    $region46: #{tpu_custom_call.1} parent=1 // pred_check
      _
    $region47: #{tpu_custom_call.1} parent=1 // pred_check_branch
      %96 = sbr.rel (0) target = $region49
    $region48: #{tpu_custom_call.1} parent=1 // pred_region
      %97 = dma.done [#allocation12], 16
    $region49: #{tpu_custom_call.1} parent=1 // pred_fallthru
      _
    %v99 = vld [vmem:[#allocation2] sm:$0xff]
    %v100 = vld [vmem:[#allocation2 + $0x8] sm:$0xff]
    %v101 = vld [vmem:[#allocation2 + $0x10] sm:$0xff]
    %v102 = vld [vmem:[#allocation2 + $0x18] sm:$0xff]
    %v103 = vld [vmem:[#allocation2 + $0x20] sm:$0xff]
    %v104 = vld [vmem:[#allocation2 + $0x28] sm:$0xff]
    %v105 = vld [vmem:[#allocation5] sm:$0xff]
    %v106 = vld [vmem:[#allocation5 + $0x8] sm:$0xff]
    %v107 = vld [vmem:[#allocation5 + $0x10] sm:$0xff]
    %v108 = vld [vmem:[#allocation5 + $0x18] sm:$0xff]
    %v109 = vld [vmem:[#allocation5 + $0x20] sm:$0xff]
    %v110 = vld [vmem:[#allocation5 + $0x28] sm:$0xff]
    %v111 = vld [vmem:[#allocation5 + $0x30] sm:$0xff]
    %v112 = vld [vmem:[#allocation5 + $0x38] sm:$0xff]
    %v113 = vld [vmem:[#allocation5 + $0x40] sm:$0xff]
    %v114 = vld [vmem:[#allocation5 + $0x48] sm:$0xff]
    %v115 = vld [vmem:[#allocation5 + $0x50] sm:$0xff]
    %v116 = vld [vmem:[#allocation5 + $0x58] sm:$0xff]
    %v117 = vld [vmem:[#allocation5 + $0x60] sm:$0xff]
    %v118 = vld [vmem:[#allocation5 + $0x68] sm:$0xff]
    %v119 = vld [vmem:[#allocation5 + $0x70] sm:$0xff]
    %v120 = vld [vmem:[#allocation5 + $0x78] sm:$0xff]
    %v121 = vld [vmem:[#allocation5 + $0x80] sm:$0xff]
    %v122 = vld [vmem:[#allocation5 + $0x88] sm:$0xff]
    %v123 = vld [vmem:[#allocation5 + $0x90] sm:$0xff]
    %v124 = vld [vmem:[#allocation5 + $0x98] sm:$0xff]
    %v125 = vld [vmem:[#allocation5 + $0xa0] sm:$0xff]
    %v126 = vld [vmem:[#allocation5 + $0xa8] sm:$0xff]
    %v127 = vld [vmem:[#allocation5 + $0xb0] sm:$0xff]
    %v128 = vld [vmem:[#allocation5 + $0xb8] sm:$0xff]
    %v129 = vld [vmem:[#allocation5 + $0xc0] sm:$0xff]
    %v130 = vld [vmem:[#allocation5 + $0xc8] sm:$0xff]
    %v131 = vld [vmem:[#allocation5 + $0xd0] sm:$0xff]
    %v132 = vld [vmem:[#allocation5 + $0xd8] sm:$0xff]
    %v133 = vld [vmem:[#allocation5 + $0xe0] sm:$0xff]
    %v134 = vld [vmem:[#allocation5 + $0xe8] sm:$0xff]
    %v135 = vld [vmem:[#allocation5 + $0xf0] sm:$0xff]
    %v136 = vld [vmem:[#allocation5 + $0xf8] sm:$0xff]
    %v137 = vld [vmem:[#allocation5 + $0x100] sm:$0xff]
    %v138 = vld [vmem:[#allocation5 + $0x108] sm:$0xff]
    %v139 = vld [vmem:[#allocation5 + $0x110] sm:$0xff]
    %v140 = vld [vmem:[#allocation5 + $0x118] sm:$0xff]
    %v141 = vld [vmem:[#allocation5 + $0x120] sm:$0xff]
    %v142 = vld [vmem:[#allocation5 + $0x128] sm:$0xff]
    %v143 = vld [vmem:[#allocation5 + $0x130] sm:$0xff]
    %v144 = vld [vmem:[#allocation5 + $0x138] sm:$0xff]
    %v145 = vld [vmem:[#allocation5 + $0x140] sm:$0xff]
    %v146 = vld [vmem:[#allocation5 + $0x148] sm:$0xff]
    %v147 = vld [vmem:[#allocation5 + $0x150] sm:$0xff]
    %v148 = vld [vmem:[#allocation5 + $0x158] sm:$0xff]
    %v149 = vld [vmem:[#allocation5 + $0x160] sm:$0xff]
    %v150 = vld [vmem:[#allocation5 + $0x168] sm:$0xff]
    %v151 = vld [vmem:[#allocation5 + $0x170] sm:$0xff]
    %v152 = vld [vmem:[#allocation5 + $0x178] sm:$0xff]
    %v153 = vld [vmem:[#allocation5 + $0x180] sm:$0xff]
    %v154 = vld [vmem:[#allocation5 + $0x188] sm:$0xff]
    %v155 = vld [vmem:[#allocation5 + $0x190] sm:$0xff]
    %v156 = vld [vmem:[#allocation5 + $0x198] sm:$0xff]
    %v157 = vld [vmem:[#allocation5 + $0x1a0] sm:$0xff]
    %v158 = vld [vmem:[#allocation5 + $0x1a8] sm:$0xff]
    %v159 = vld [vmem:[#allocation5 + $0x1b0] sm:$0xff]
    %v160 = vld [vmem:[#allocation5 + $0x1b8] sm:$0xff]
    %v161 = vld [vmem:[#allocation5 + $0x1c0] sm:$0xff]
    %v162 = vld [vmem:[#allocation5 + $0x1c8] sm:$0xff]
    %v163 = vld [vmem:[#allocation5 + $0x1d0] sm:$0xff]
    %v164 = vld [vmem:[#allocation5 + $0x1d8] sm:$0xff]
    %v165 = vld [vmem:[#allocation5 + $0x1e0] sm:$0xff]
    %v166 = vld [vmem:[#allocation5 + $0x1e8] sm:$0xff]
    %v167 = vld [vmem:[#allocation5 + $0x1f0] sm:$0xff]
    %v168 = vld [vmem:[#allocation5 + $0x1f8] sm:$0xff]
    %v169 = vld [vmem:[#allocation5 + $0x200] sm:$0xff]
    %v170 = vld [vmem:[#allocation5 + $0x208] sm:$0xff]
    %v171 = vld [vmem:[#allocation5 + $0x210] sm:$0xff]
    %v172 = vld [vmem:[#allocation5 + $0x218] sm:$0xff]
    %v173 = vld [vmem:[#allocation5 + $0x220] sm:$0xff]
    %v174 = vld [vmem:[#allocation5 + $0x228] sm:$0xff]
    %v175 = vld [vmem:[#allocation5 + $0x230] sm:$0xff]
    %v176 = vld [vmem:[#allocation5 + $0x238] sm:$0xff]
    %v177 = vld [vmem:[#allocation5 + $0x240] sm:$0xff]
    %v178 = vld [vmem:[#allocation5 + $0x248] sm:$0xff]
    %v179 = vld [vmem:[#allocation5 + $0x250] sm:$0xff]
    %v180 = vld [vmem:[#allocation5 + $0x258] sm:$0xff]
    %v181 = vld [vmem:[#allocation5 + $0x260] sm:$0xff]
    %v182 = vld [vmem:[#allocation5 + $0x268] sm:$0xff]
    %v183 = vld [vmem:[#allocation5 + $0x270] sm:$0xff]
    %v184 = vld [vmem:[#allocation5 + $0x278] sm:$0xff]
    %v185 = vld [vmem:[#allocation5 + $0x280] sm:$0xff]
    %v186 = vld [vmem:[#allocation5 + $0x288] sm:$0xff]
    %v187 = vld [vmem:[#allocation5 + $0x290] sm:$0xff]
    %v188 = vld [vmem:[#allocation5 + $0x298] sm:$0xff]
    %v189 = vld [vmem:[#allocation5 + $0x2a0] sm:$0xff]
    %v190 = vld [vmem:[#allocation5 + $0x2a8] sm:$0xff]
    %v191 = vld [vmem:[#allocation5 + $0x2b0] sm:$0xff]
    %v192 = vld [vmem:[#allocation5 + $0x2b8] sm:$0xff]
    %v193 = vld [vmem:[#allocation5 + $0x2c0] sm:$0xff]
    %v194 = vld [vmem:[#allocation5 + $0x2c8] sm:$0xff]
    %v195 = vld [vmem:[#allocation5 + $0x2d0] sm:$0xff]
    %v196 = vld [vmem:[#allocation5 + $0x2d8] sm:$0xff]
    %v197 = vld [vmem:[#allocation5 + $0x2e0] sm:$0xff]
    %v198 = vld [vmem:[#allocation5 + $0x2e8] sm:$0xff]
    %v199 = vld [vmem:[#allocation5 + $0x2f0] sm:$0xff]
    %v200 = vld [vmem:[#allocation5 + $0x2f8] sm:$0xff]
    %v201 = vld [vmem:[#allocation5 + $0x300] sm:$0xff]
    %v202 = vld [vmem:[#allocation5 + $0x308] sm:$0xff]
    %v203 = vld [vmem:[#allocation5 + $0x310] sm:$0xff]
    %v204 = vld [vmem:[#allocation5 + $0x318] sm:$0xff]
    %v205 = vld [vmem:[#allocation5 + $0x320] sm:$0xff]
    %v206 = vld [vmem:[#allocation5 + $0x328] sm:$0xff]
    %v207 = vld [vmem:[#allocation5 + $0x330] sm:$0xff]
    %v208 = vld [vmem:[#allocation5 + $0x338] sm:$0xff]
    %v209 = vld [vmem:[#allocation5 + $0x340] sm:$0xff]
    %v210 = vld [vmem:[#allocation5 + $0x348] sm:$0xff]
    %v211 = vld [vmem:[#allocation5 + $0x350] sm:$0xff]
    %v212 = vld [vmem:[#allocation5 + $0x358] sm:$0xff]
    %v213 = vld [vmem:[#allocation5 + $0x360] sm:$0xff]
    %v214 = vld [vmem:[#allocation5 + $0x368] sm:$0xff]
    %v215 = vld [vmem:[#allocation5 + $0x370] sm:$0xff]
    %v216 = vld [vmem:[#allocation5 + $0x378] sm:$0xff]
    %v217 = vld [vmem:[#allocation5 + $0x380] sm:$0xff]
    %v218 = vld [vmem:[#allocation5 + $0x388] sm:$0xff]
    %v219 = vld [vmem:[#allocation5 + $0x390] sm:$0xff]
    %v220 = vld [vmem:[#allocation5 + $0x398] sm:$0xff]
    %v221 = vld [vmem:[#allocation5 + $0x3a0] sm:$0xff]
    %v222 = vld [vmem:[#allocation5 + $0x3a8] sm:$0xff]
    %v223 = vld [vmem:[#allocation5 + $0x3b0] sm:$0xff]
    %v224 = vld [vmem:[#allocation5 + $0x3b8] sm:$0xff]
    %v225 = vld [vmem:[#allocation5 + $0x3c0] sm:$0xff]
    %v226 = vld [vmem:[#allocation5 + $0x3c8] sm:$0xff]
    %v227 = vld [vmem:[#allocation5 + $0x3d0] sm:$0xff]
    %v228 = vld [vmem:[#allocation5 + $0x3d8] sm:$0xff]
    %v229 = vld [vmem:[#allocation5 + $0x3e0] sm:$0xff]
    %v230 = vld [vmem:[#allocation5 + $0x3e8] sm:$0xff]
    %v231 = vld [vmem:[#allocation5 + $0x3f0] sm:$0xff]
    %v232 = vld [vmem:[#allocation5 + $0x3f8] sm:$0xff]
    %v233 = vld [vmem:[#allocation5 + $0x400] sm:$0xff]
    %v234 = vld [vmem:[#allocation5 + $0x408] sm:$0xff]
    %v235 = vld [vmem:[#allocation5 + $0x410] sm:$0xff]
    %v236 = vld [vmem:[#allocation5 + $0x418] sm:$0xff]
    %v237 = vld [vmem:[#allocation5 + $0x420] sm:$0xff]
    %v238 = vld [vmem:[#allocation5 + $0x428] sm:$0xff]
    %v239 = vld [vmem:[#allocation5 + $0x430] sm:$0xff]
    %v240 = vld [vmem:[#allocation5 + $0x438] sm:$0xff]
    %v241 = vld [vmem:[#allocation5 + $0x440] sm:$0xff]
    %v242 = vld [vmem:[#allocation5 + $0x448] sm:$0xff]
    %v243 = vld [vmem:[#allocation5 + $0x450] sm:$0xff]
    %v244 = vld [vmem:[#allocation5 + $0x458] sm:$0xff]
    %v245 = vld [vmem:[#allocation5 + $0x460] sm:$0xff]
    %v246 = vld [vmem:[#allocation5 + $0x468] sm:$0xff]
    %v247 = vld [vmem:[#allocation5 + $0x470] sm:$0xff]
    %v248 = vld [vmem:[#allocation5 + $0x478] sm:$0xff]
    %v249 = vld [vmem:[#allocation5 + $0x480] sm:$0xff]
    %v250 = vld [vmem:[#allocation5 + $0x488] sm:$0xff]
    %v251 = vld [vmem:[#allocation5 + $0x490] sm:$0xff]
    %v252 = vld [vmem:[#allocation5 + $0x498] sm:$0xff]
    %v253 = vld [vmem:[#allocation5 + $0x4a0] sm:$0xff]
    %v254 = vld [vmem:[#allocation5 + $0x4a8] sm:$0xff]
    %v255 = vld [vmem:[#allocation5 + $0x4b0] sm:$0xff]
    %v256 = vld [vmem:[#allocation5 + $0x4b8] sm:$0xff]
    %v257 = vld [vmem:[#allocation5 + $0x4c0] sm:$0xff]
    %v258 = vld [vmem:[#allocation5 + $0x4c8] sm:$0xff]
    %v259 = vld [vmem:[#allocation5 + $0x4d0] sm:$0xff]
    %v260 = vld [vmem:[#allocation5 + $0x4d8] sm:$0xff]
    %v261 = vld [vmem:[#allocation5 + $0x4e0] sm:$0xff]
    %v262 = vld [vmem:[#allocation5 + $0x4e8] sm:$0xff]
    %v263 = vld [vmem:[#allocation5 + $0x4f0] sm:$0xff]
    %v264 = vld [vmem:[#allocation5 + $0x4f8] sm:$0xff]
    %v265 = vld [vmem:[#allocation5 + $0x500] sm:$0xff]
    %v266 = vld [vmem:[#allocation5 + $0x508] sm:$0xff]
    %v267 = vld [vmem:[#allocation5 + $0x510] sm:$0xff]
    %v268 = vld [vmem:[#allocation5 + $0x518] sm:$0xff]
    %v269 = vld [vmem:[#allocation5 + $0x520] sm:$0xff]
    %v270 = vld [vmem:[#allocation5 + $0x528] sm:$0xff]
    %v271 = vld [vmem:[#allocation5 + $0x530] sm:$0xff]
    %v272 = vld [vmem:[#allocation5 + $0x538] sm:$0xff]
    %v273 = vld [vmem:[#allocation5 + $0x540] sm:$0xff]
    %v274 = vld [vmem:[#allocation5 + $0x548] sm:$0xff]
    %v275 = vld [vmem:[#allocation5 + $0x550] sm:$0xff]
    %v276 = vld [vmem:[#allocation5 + $0x558] sm:$0xff]
    %v277 = vld [vmem:[#allocation5 + $0x560] sm:$0xff]
    %v278 = vld [vmem:[#allocation5 + $0x568] sm:$0xff]
    %v279 = vld [vmem:[#allocation5 + $0x570] sm:$0xff]
    %v280 = vld [vmem:[#allocation5 + $0x578] sm:$0xff]
    %v281 = vld [vmem:[#allocation5 + $0x580] sm:$0xff]
    %v282 = vld [vmem:[#allocation5 + $0x588] sm:$0xff]
    %v283 = vld [vmem:[#allocation5 + $0x590] sm:$0xff]
    %v284 = vld [vmem:[#allocation5 + $0x598] sm:$0xff]
    %v285 = vld [vmem:[#allocation5 + $0x5a0] sm:$0xff]
    %v286 = vld [vmem:[#allocation5 + $0x5a8] sm:$0xff]
    %v287 = vld [vmem:[#allocation5 + $0x5b0] sm:$0xff]
    %v288 = vld [vmem:[#allocation5 + $0x5b8] sm:$0xff]
    %v289 = vld [vmem:[#allocation5 + $0x5c0] sm:$0xff]
    %v290 = vld [vmem:[#allocation5 + $0x5c8] sm:$0xff]
    %v291 = vld [vmem:[#allocation5 + $0x5d0] sm:$0xff]
    %v292 = vld [vmem:[#allocation5 + $0x5d8] sm:$0xff]
    %v293 = vld [vmem:[#allocation5 + $0x5e0] sm:$0xff]
    %v294 = vld [vmem:[#allocation5 + $0x5e8] sm:$0xff]
    %v295 = vld [vmem:[#allocation5 + $0x5f0] sm:$0xff]
    %v296 = vld [vmem:[#allocation5 + $0x5f8] sm:$0xff]
    %v297 = vld [vmem:[#allocation5 + $0x600] sm:$0xff]
    %v298 = vld [vmem:[#allocation5 + $0x608] sm:$0xff]
    %v299 = vld [vmem:[#allocation5 + $0x610] sm:$0xff]
    %v300 = vld [vmem:[#allocation5 + $0x618] sm:$0xff]
    %v301 = vld [vmem:[#allocation5 + $0x620] sm:$0xff]
    %v302 = vld [vmem:[#allocation5 + $0x628] sm:$0xff]
    %v303 = vld [vmem:[#allocation5 + $0x630] sm:$0xff]
    %v304 = vld [vmem:[#allocation5 + $0x638] sm:$0xff]
    %v305 = vld [vmem:[#allocation5 + $0x640] sm:$0xff]
    %v306 = vld [vmem:[#allocation5 + $0x648] sm:$0xff]
    %v307 = vld [vmem:[#allocation5 + $0x650] sm:$0xff]
    %v308 = vld [vmem:[#allocation5 + $0x658] sm:$0xff]
    %v309 = vld [vmem:[#allocation5 + $0x660] sm:$0xff]
    %v310 = vld [vmem:[#allocation5 + $0x668] sm:$0xff]
    %v311 = vld [vmem:[#allocation5 + $0x670] sm:$0xff]
    %v312 = vld [vmem:[#allocation5 + $0x678] sm:$0xff]
    %v313 = vld [vmem:[#allocation5 + $0x680] sm:$0xff]
    %v314 = vld [vmem:[#allocation5 + $0x688] sm:$0xff]
    %v315 = vld [vmem:[#allocation5 + $0x690] sm:$0xff]
    %v316 = vld [vmem:[#allocation5 + $0x698] sm:$0xff]
    %v317 = vld [vmem:[#allocation5 + $0x6a0] sm:$0xff]
    %v318 = vld [vmem:[#allocation5 + $0x6a8] sm:$0xff]
    %v319 = vld [vmem:[#allocation5 + $0x6b0] sm:$0xff]
    %v320 = vld [vmem:[#allocation5 + $0x6b8] sm:$0xff]
    %v321 = vld [vmem:[#allocation5 + $0x6c0] sm:$0xff]
    %v322 = vld [vmem:[#allocation5 + $0x6c8] sm:$0xff]
    %v323 = vld [vmem:[#allocation5 + $0x6d0] sm:$0xff]
    %v324 = vld [vmem:[#allocation5 + $0x6d8] sm:$0xff]
    %v325 = vld [vmem:[#allocation5 + $0x6e0] sm:$0xff]
    %v326 = vld [vmem:[#allocation5 + $0x6e8] sm:$0xff]
    %v327 = vld [vmem:[#allocation5 + $0x6f0] sm:$0xff]
    %v328 = vld [vmem:[#allocation5 + $0x6f8] sm:$0xff]
    %v329 = vld [vmem:[#allocation5 + $0x700] sm:$0xff]
    %v330 = vld [vmem:[#allocation5 + $0x708] sm:$0xff]
    %v331 = vld [vmem:[#allocation5 + $0x710] sm:$0xff]
    %v332 = vld [vmem:[#allocation5 + $0x718] sm:$0xff]
    %v333 = vld [vmem:[#allocation5 + $0x720] sm:$0xff]
    %v334 = vld [vmem:[#allocation5 + $0x728] sm:$0xff]
    %v335 = vld [vmem:[#allocation5 + $0x730] sm:$0xff]
    %v336 = vld [vmem:[#allocation5 + $0x738] sm:$0xff]
    %v337 = vld [vmem:[#allocation5 + $0x740] sm:$0xff]
    %v338 = vld [vmem:[#allocation5 + $0x748] sm:$0xff]
    %v339 = vld [vmem:[#allocation5 + $0x750] sm:$0xff]
    %v340 = vld [vmem:[#allocation5 + $0x758] sm:$0xff]
    %v341 = vld [vmem:[#allocation5 + $0x760] sm:$0xff]
    %v342 = vld [vmem:[#allocation5 + $0x768] sm:$0xff]
    %v343 = vld [vmem:[#allocation5 + $0x770] sm:$0xff]
    %v344 = vld [vmem:[#allocation5 + $0x778] sm:$0xff]
    %v345 = vld [vmem:[#allocation5 + $0x780] sm:$0xff]
    %v346 = vld [vmem:[#allocation5 + $0x788] sm:$0xff]
    %v347 = vld [vmem:[#allocation5 + $0x790] sm:$0xff]
    %v348 = vld [vmem:[#allocation5 + $0x798] sm:$0xff]
    %v349 = vld [vmem:[#allocation5 + $0x7a0] sm:$0xff]
    %v350 = vld [vmem:[#allocation5 + $0x7a8] sm:$0xff]
    %v351 = vld [vmem:[#allocation5 + $0x7b0] sm:$0xff]
    %v352 = vld [vmem:[#allocation5 + $0x7b8] sm:$0xff]
    %v353 = vld [vmem:[#allocation5 + $0x7c0] sm:$0xff]
    %v354 = vld [vmem:[#allocation5 + $0x7c8] sm:$0xff]
    %v355 = vld [vmem:[#allocation5 + $0x7d0] sm:$0xff]
    %v356 = vld [vmem:[#allocation5 + $0x7d8] sm:$0xff]
    %v357 = vld [vmem:[#allocation5 + $0x7e0] sm:$0xff]
    %v358 = vld [vmem:[#allocation5 + $0x7e8] sm:$0xff]
    %v359 = vld [vmem:[#allocation5 + $0x7f0] sm:$0xff]
    %v360 = vld [vmem:[#allocation5 + $0x7f8] sm:$0xff]
    %v361 = vld [vmem:[#allocation5 + $0x800] sm:$0xff]
    %v362 = vld [vmem:[#allocation5 + $0x808] sm:$0xff]
    %v363 = vld [vmem:[#allocation5 + $0x810] sm:$0xff]
    %v364 = vld [vmem:[#allocation5 + $0x818] sm:$0xff]
    %v365 = vld [vmem:[#allocation5 + $0x820] sm:$0xff]
    %v366 = vld [vmem:[#allocation5 + $0x828] sm:$0xff]
    %v367 = vld [vmem:[#allocation5 + $0x830] sm:$0xff]
    %v368 = vld [vmem:[#allocation5 + $0x838] sm:$0xff]
    %v369 = vld [vmem:[#allocation5 + $0x840] sm:$0xff]
    %v370 = vld [vmem:[#allocation5 + $0x848] sm:$0xff]
    %v371 = vld [vmem:[#allocation5 + $0x850] sm:$0xff]
    %v372 = vld [vmem:[#allocation5 + $0x858] sm:$0xff]
    %v373 = vld [vmem:[#allocation5 + $0x860] sm:$0xff]
    %v374 = vld [vmem:[#allocation5 + $0x868] sm:$0xff]
    %v375 = vld [vmem:[#allocation5 + $0x870] sm:$0xff]
    %v376 = vld [vmem:[#allocation5 + $0x878] sm:$0xff]
    %v377 = vld [vmem:[#allocation5 + $0x880] sm:$0xff]
    %v378 = vld [vmem:[#allocation5 + $0x888] sm:$0xff]
    %v379 = vld [vmem:[#allocation5 + $0x890] sm:$0xff]
    %v380 = vld [vmem:[#allocation5 + $0x898] sm:$0xff]
    %v381 = vld [vmem:[#allocation5 + $0x8a0] sm:$0xff]
    %v382 = vld [vmem:[#allocation5 + $0x8a8] sm:$0xff]
    %v383 = vld [vmem:[#allocation5 + $0x8b0] sm:$0xff]
    %v384 = vld [vmem:[#allocation5 + $0x8b8] sm:$0xff]
    %v385 = vld [vmem:[#allocation5 + $0x8c0] sm:$0xff]
    %v386 = vld [vmem:[#allocation5 + $0x8c8] sm:$0xff]
    %v387 = vld [vmem:[#allocation5 + $0x8d0] sm:$0xff]
    %v388 = vld [vmem:[#allocation5 + $0x8d8] sm:$0xff]
    %v389 = vld [vmem:[#allocation5 + $0x8e0] sm:$0xff]
    %v390 = vld [vmem:[#allocation5 + $0x8e8] sm:$0xff]
    %v391 = vld [vmem:[#allocation5 + $0x8f0] sm:$0xff]
    %v392 = vld [vmem:[#allocation5 + $0x8f8] sm:$0xff]
    %v393 = vld [vmem:[#allocation5 + $0x900] sm:$0xff]
    %v394 = vld [vmem:[#allocation5 + $0x908] sm:$0xff]
    %v395 = vld [vmem:[#allocation5 + $0x910] sm:$0xff]
    %v396 = vld [vmem:[#allocation5 + $0x918] sm:$0xff]
    %v397 = vld [vmem:[#allocation5 + $0x920] sm:$0xff]
    %v398 = vld [vmem:[#allocation5 + $0x928] sm:$0xff]
    %v399 = vld [vmem:[#allocation5 + $0x930] sm:$0xff]
    %v400 = vld [vmem:[#allocation5 + $0x938] sm:$0xff]
    %v401 = vld [vmem:[#allocation5 + $0x940] sm:$0xff]
    %v402 = vld [vmem:[#allocation5 + $0x948] sm:$0xff]
    %v403 = vld [vmem:[#allocation5 + $0x950] sm:$0xff]
    %v404 = vld [vmem:[#allocation5 + $0x958] sm:$0xff]
    %v405 = vld [vmem:[#allocation5 + $0x960] sm:$0xff]
    %v406 = vld [vmem:[#allocation5 + $0x968] sm:$0xff]
    %v407 = vld [vmem:[#allocation5 + $0x970] sm:$0xff]
    %v408 = vld [vmem:[#allocation5 + $0x978] sm:$0xff]
    %v409 = vld [vmem:[#allocation5 + $0x980] sm:$0xff]
    %v410 = vld [vmem:[#allocation5 + $0x988] sm:$0xff]
    %v411 = vld [vmem:[#allocation5 + $0x990] sm:$0xff]
    %v412 = vld [vmem:[#allocation5 + $0x998] sm:$0xff]
    %v413 = vld [vmem:[#allocation5 + $0x9a0] sm:$0xff]
    %v414 = vld [vmem:[#allocation5 + $0x9a8] sm:$0xff]
    %v415 = vld [vmem:[#allocation5 + $0x9b0] sm:$0xff]
    %v416 = vld [vmem:[#allocation5 + $0x9b8] sm:$0xff]
    %v417 = vld [vmem:[#allocation5 + $0x9c0] sm:$0xff]
    %v418 = vld [vmem:[#allocation5 + $0x9c8] sm:$0xff]
    %v419 = vld [vmem:[#allocation5 + $0x9d0] sm:$0xff]
    %v420 = vld [vmem:[#allocation5 + $0x9d8] sm:$0xff]
    %v421 = vld [vmem:[#allocation5 + $0x9e0] sm:$0xff]
    %v422 = vld [vmem:[#allocation5 + $0x9e8] sm:$0xff]
    %v423 = vld [vmem:[#allocation5 + $0x9f0] sm:$0xff]
    %v424 = vld [vmem:[#allocation5 + $0x9f8] sm:$0xff]
    %v425 = vld [vmem:[#allocation5 + $0xa00] sm:$0xff]
    %v426 = vld [vmem:[#allocation5 + $0xa08] sm:$0xff]
    %v427 = vld [vmem:[#allocation5 + $0xa10] sm:$0xff]
    %v428 = vld [vmem:[#allocation5 + $0xa18] sm:$0xff]
    %v429 = vld [vmem:[#allocation5 + $0xa20] sm:$0xff]
    %v430 = vld [vmem:[#allocation5 + $0xa28] sm:$0xff]
    %v431 = vld [vmem:[#allocation5 + $0xa30] sm:$0xff]
    %v432 = vld [vmem:[#allocation5 + $0xa38] sm:$0xff]
    %v433 = vld [vmem:[#allocation5 + $0xa40] sm:$0xff]
    %v434 = vld [vmem:[#allocation5 + $0xa48] sm:$0xff]
    %v435 = vld [vmem:[#allocation5 + $0xa50] sm:$0xff]
    %v436 = vld [vmem:[#allocation5 + $0xa58] sm:$0xff]
    %v437 = vld [vmem:[#allocation5 + $0xa60] sm:$0xff]
    %v438 = vld [vmem:[#allocation5 + $0xa68] sm:$0xff]
    %v439 = vld [vmem:[#allocation5 + $0xa70] sm:$0xff]
    %v440 = vld [vmem:[#allocation5 + $0xa78] sm:$0xff]
    %v441 = vld [vmem:[#allocation5 + $0xa80] sm:$0xff]
    %v442 = vld [vmem:[#allocation5 + $0xa88] sm:$0xff]
    %v443 = vld [vmem:[#allocation5 + $0xa90] sm:$0xff]
    %v444 = vld [vmem:[#allocation5 + $0xa98] sm:$0xff]
    %v445 = vld [vmem:[#allocation5 + $0xaa0] sm:$0xff]
    %v446 = vld [vmem:[#allocation5 + $0xaa8] sm:$0xff]
    %v447 = vld [vmem:[#allocation5 + $0xab0] sm:$0xff]
    %v448 = vld [vmem:[#allocation5 + $0xab8] sm:$0xff]
    %v449 = vld [vmem:[#allocation5 + $0xac0] sm:$0xff]
    %v450 = vld [vmem:[#allocation5 + $0xac8] sm:$0xff]
    %v451 = vld [vmem:[#allocation5 + $0xad0] sm:$0xff]
    %v452 = vld [vmem:[#allocation5 + $0xad8] sm:$0xff]
    %v453 = vld [vmem:[#allocation5 + $0xae0] sm:$0xff]
    %v454 = vld [vmem:[#allocation5 + $0xae8] sm:$0xff]
    %v455 = vld [vmem:[#allocation5 + $0xaf0] sm:$0xff]
    %v456 = vld [vmem:[#allocation5 + $0xaf8] sm:$0xff]
    %v457 = vld [vmem:[#allocation5 + $0xb00] sm:$0xff]
    %v458 = vld [vmem:[#allocation5 + $0xb08] sm:$0xff]
    %v459 = vld [vmem:[#allocation5 + $0xb10] sm:$0xff]
    %v460 = vld [vmem:[#allocation5 + $0xb18] sm:$0xff]
    %v461 = vld [vmem:[#allocation5 + $0xb20] sm:$0xff]
    %v462 = vld [vmem:[#allocation5 + $0xb28] sm:$0xff]
    %v463 = vld [vmem:[#allocation5 + $0xb30] sm:$0xff]
    %v464 = vld [vmem:[#allocation5 + $0xb38] sm:$0xff]
    %v465 = vld [vmem:[#allocation5 + $0xb40] sm:$0xff]
    %v466 = vld [vmem:[#allocation5 + $0xb48] sm:$0xff]
    %v467 = vld [vmem:[#allocation5 + $0xb50] sm:$0xff]
    %v468 = vld [vmem:[#allocation5 + $0xb58] sm:$0xff]
    %v469 = vld [vmem:[#allocation5 + $0xb60] sm:$0xff]
    %v470 = vld [vmem:[#allocation5 + $0xb68] sm:$0xff]
    %v471 = vld [vmem:[#allocation5 + $0xb70] sm:$0xff]
    %v472 = vld [vmem:[#allocation5 + $0xb78] sm:$0xff]
    %v473 = vld [vmem:[#allocation5 + $0xb80] sm:$0xff]
    %v474 = vld [vmem:[#allocation5 + $0xb88] sm:$0xff]
    %v475 = vld [vmem:[#allocation5 + $0xb90] sm:$0xff]
    %v476 = vld [vmem:[#allocation5 + $0xb98] sm:$0xff]
    %v477 = vld [vmem:[#allocation5 + $0xba0] sm:$0xff]
    %v478 = vld [vmem:[#allocation5 + $0xba8] sm:$0xff]
    %v479 = vld [vmem:[#allocation5 + $0xbb0] sm:$0xff]
    %v480 = vld [vmem:[#allocation5 + $0xbb8] sm:$0xff]
    %v481 = vld [vmem:[#allocation5 + $0xbc0] sm:$0xff]
    %v482 = vld [vmem:[#allocation5 + $0xbc8] sm:$0xff]
    %v483 = vld [vmem:[#allocation5 + $0xbd0] sm:$0xff]
    %v484 = vld [vmem:[#allocation5 + $0xbd8] sm:$0xff]
    %v485 = vld [vmem:[#allocation5 + $0xbe0] sm:$0xff]
    %v486 = vld [vmem:[#allocation5 + $0xbe8] sm:$0xff]
    %v487 = vld [vmem:[#allocation5 + $0xbf0] sm:$0xff]
    %v488 = vld [vmem:[#allocation5 + $0xbf8] sm:$0xff]
    %v489 = vld [vmem:[#allocation5 + $0xc00] sm:$0xff]
    %v490 = vld [vmem:[#allocation5 + $0xc08] sm:$0xff]
    %v491 = vld [vmem:[#allocation5 + $0xc10] sm:$0xff]
    %v492 = vld [vmem:[#allocation5 + $0xc18] sm:$0xff]
    %v493 = vld [vmem:[#allocation5 + $0xc20] sm:$0xff]
    %v494 = vld [vmem:[#allocation5 + $0xc28] sm:$0xff]
    %v495 = vld [vmem:[#allocation5 + $0xc30] sm:$0xff]
    %v496 = vld [vmem:[#allocation5 + $0xc38] sm:$0xff]
    %v497 = vld [vmem:[#allocation5 + $0xc40] sm:$0xff]
    %v498 = vld [vmem:[#allocation5 + $0xc48] sm:$0xff]
    %v499 = vld [vmem:[#allocation5 + $0xc50] sm:$0xff]
    %v500 = vld [vmem:[#allocation5 + $0xc58] sm:$0xff]
    %v501 = vld [vmem:[#allocation5 + $0xc60] sm:$0xff]
    %v502 = vld [vmem:[#allocation5 + $0xc68] sm:$0xff]
    %v503 = vld [vmem:[#allocation5 + $0xc70] sm:$0xff]
    %v504 = vld [vmem:[#allocation5 + $0xc78] sm:$0xff]
    %v505 = vld [vmem:[#allocation5 + $0xc80] sm:$0xff]
    %v506 = vld [vmem:[#allocation5 + $0xc88] sm:$0xff]
    %v507 = vld [vmem:[#allocation5 + $0xc90] sm:$0xff]
    %v508 = vld [vmem:[#allocation5 + $0xc98] sm:$0xff]
    %v509 = vld [vmem:[#allocation5 + $0xca0] sm:$0xff]
    %v510 = vld [vmem:[#allocation5 + $0xca8] sm:$0xff]
    %v511 = vld [vmem:[#allocation5 + $0xcb0] sm:$0xff]
    %v512 = vld [vmem:[#allocation5 + $0xcb8] sm:$0xff]
    %v513 = vld [vmem:[#allocation5 + $0xcc0] sm:$0xff]
    %v514 = vld [vmem:[#allocation5 + $0xcc8] sm:$0xff]
    %v515 = vld [vmem:[#allocation5 + $0xcd0] sm:$0xff]
    %v516 = vld [vmem:[#allocation5 + $0xcd8] sm:$0xff]
    %v517 = vld [vmem:[#allocation5 + $0xce0] sm:$0xff]
    %v518 = vld [vmem:[#allocation5 + $0xce8] sm:$0xff]
    %v519 = vld [vmem:[#allocation5 + $0xcf0] sm:$0xff]
    %v520 = vld [vmem:[#allocation5 + $0xcf8] sm:$0xff]
    %v521 = vld [vmem:[#allocation5 + $0xd00] sm:$0xff]
    %v522 = vld [vmem:[#allocation5 + $0xd08] sm:$0xff]
    %v523 = vld [vmem:[#allocation5 + $0xd10] sm:$0xff]
    %v524 = vld [vmem:[#allocation5 + $0xd18] sm:$0xff]
    %v525 = vld [vmem:[#allocation5 + $0xd20] sm:$0xff]
    %v526 = vld [vmem:[#allocation5 + $0xd28] sm:$0xff]
    %v527 = vld [vmem:[#allocation5 + $0xd30] sm:$0xff]
    %v528 = vld [vmem:[#allocation5 + $0xd38] sm:$0xff]
    %v529 = vld [vmem:[#allocation5 + $0xd40] sm:$0xff]
    %v530 = vld [vmem:[#allocation5 + $0xd48] sm:$0xff]
    %v531 = vld [vmem:[#allocation5 + $0xd50] sm:$0xff]
    %v532 = vld [vmem:[#allocation5 + $0xd58] sm:$0xff]
    %v533 = vld [vmem:[#allocation5 + $0xd60] sm:$0xff]
    %v534 = vld [vmem:[#allocation5 + $0xd68] sm:$0xff]
    %v535 = vld [vmem:[#allocation5 + $0xd70] sm:$0xff]
    %v536 = vld [vmem:[#allocation5 + $0xd78] sm:$0xff]
    %v537 = vld [vmem:[#allocation5 + $0xd80] sm:$0xff]
    %v538 = vld [vmem:[#allocation5 + $0xd88] sm:$0xff]
    %v539 = vld [vmem:[#allocation5 + $0xd90] sm:$0xff]
    %v540 = vld [vmem:[#allocation5 + $0xd98] sm:$0xff]
    %v541 = vld [vmem:[#allocation5 + $0xda0] sm:$0xff]
    %v542 = vld [vmem:[#allocation5 + $0xda8] sm:$0xff]
    %v543 = vld [vmem:[#allocation5 + $0xdb0] sm:$0xff]
    %v544 = vld [vmem:[#allocation5 + $0xdb8] sm:$0xff]
    %v545 = vld [vmem:[#allocation5 + $0xdc0] sm:$0xff]
    %v546 = vld [vmem:[#allocation5 + $0xdc8] sm:$0xff]
    %v547 = vld [vmem:[#allocation5 + $0xdd0] sm:$0xff]
    %v548 = vld [vmem:[#allocation5 + $0xdd8] sm:$0xff]
    %v549 = vld [vmem:[#allocation5 + $0xde0] sm:$0xff]
    %v550 = vld [vmem:[#allocation5 + $0xde8] sm:$0xff]
    %v551 = vld [vmem:[#allocation5 + $0xdf0] sm:$0xff]
    %v552 = vld [vmem:[#allocation5 + $0xdf8] sm:$0xff]
    %v553 = vld [vmem:[#allocation5 + $0xe00] sm:$0xff]
    %v554 = vld [vmem:[#allocation5 + $0xe08] sm:$0xff]
    %v555 = vld [vmem:[#allocation5 + $0xe10] sm:$0xff]
    %v556 = vld [vmem:[#allocation5 + $0xe18] sm:$0xff]
    %v557 = vld [vmem:[#allocation5 + $0xe20] sm:$0xff]
    %v558 = vld [vmem:[#allocation5 + $0xe28] sm:$0xff]
    %v559 = vld [vmem:[#allocation5 + $0xe30] sm:$0xff]
    %v560 = vld [vmem:[#allocation5 + $0xe38] sm:$0xff]
    %v561 = vld [vmem:[#allocation5 + $0xe40] sm:$0xff]
    %v562 = vld [vmem:[#allocation5 + $0xe48] sm:$0xff]
    %v563 = vld [vmem:[#allocation5 + $0xe50] sm:$0xff]
    %v564 = vld [vmem:[#allocation5 + $0xe58] sm:$0xff]
    %v565 = vld [vmem:[#allocation5 + $0xe60] sm:$0xff]
    %v566 = vld [vmem:[#allocation5 + $0xe68] sm:$0xff]
    %v567 = vld [vmem:[#allocation5 + $0xe70] sm:$0xff]
    %v568 = vld [vmem:[#allocation5 + $0xe78] sm:$0xff]
    %v569 = vld [vmem:[#allocation5 + $0xe80] sm:$0xff]
    %v570 = vld [vmem:[#allocation5 + $0xe88] sm:$0xff]
    %v571 = vld [vmem:[#allocation5 + $0xe90] sm:$0xff]
    %v572 = vld [vmem:[#allocation5 + $0xe98] sm:$0xff]
    %v573 = vld [vmem:[#allocation5 + $0xea0] sm:$0xff]
    %v574 = vld [vmem:[#allocation5 + $0xea8] sm:$0xff]
    %v575 = vld [vmem:[#allocation5 + $0xeb0] sm:$0xff]
    %v576 = vld [vmem:[#allocation5 + $0xeb8] sm:$0xff]
    %v577 = vld [vmem:[#allocation5 + $0xec0] sm:$0xff]
    %v578 = vld [vmem:[#allocation5 + $0xec8] sm:$0xff]
    %v579 = vld [vmem:[#allocation5 + $0xed0] sm:$0xff]
    %v580 = vld [vmem:[#allocation5 + $0xed8] sm:$0xff]
    %v581 = vld [vmem:[#allocation5 + $0xee0] sm:$0xff]
    %v582 = vld [vmem:[#allocation5 + $0xee8] sm:$0xff]
    %v583 = vld [vmem:[#allocation5 + $0xef0] sm:$0xff]
    %v584 = vld [vmem:[#allocation5 + $0xef8] sm:$0xff]
    %v585 = vld [vmem:[#allocation5 + $0xf00] sm:$0xff]
    %v586 = vld [vmem:[#allocation5 + $0xf08] sm:$0xff]
    %v587 = vld [vmem:[#allocation5 + $0xf10] sm:$0xff]
    %v588 = vld [vmem:[#allocation5 + $0xf18] sm:$0xff]
    %v589 = vld [vmem:[#allocation5 + $0xf20] sm:$0xff]
    %v590 = vld [vmem:[#allocation5 + $0xf28] sm:$0xff]
    %v591 = vld [vmem:[#allocation5 + $0xf30] sm:$0xff]
    %v592 = vld [vmem:[#allocation5 + $0xf38] sm:$0xff]
    %v593 = vld [vmem:[#allocation5 + $0xf40] sm:$0xff]
    %v594 = vld [vmem:[#allocation5 + $0xf48] sm:$0xff]
    %v595 = vld [vmem:[#allocation5 + $0xf50] sm:$0xff]
    %v596 = vld [vmem:[#allocation5 + $0xf58] sm:$0xff]
    %v597 = vld [vmem:[#allocation5 + $0xf60] sm:$0xff]
    %v598 = vld [vmem:[#allocation5 + $0xf68] sm:$0xff]
    %v599 = vld [vmem:[#allocation5 + $0xf70] sm:$0xff]
    %v600 = vld [vmem:[#allocation5 + $0xf78] sm:$0xff]
    %v601 = vld [vmem:[#allocation5 + $0xf80] sm:$0xff]
    %v602 = vld [vmem:[#allocation5 + $0xf88] sm:$0xff]
    %v603 = vld [vmem:[#allocation5 + $0xf90] sm:$0xff]
    %v604 = vld [vmem:[#allocation5 + $0xf98] sm:$0xff]
    %v605 = vld [vmem:[#allocation5 + $0xfa0] sm:$0xff]
    %v606 = vld [vmem:[#allocation5 + $0xfa8] sm:$0xff]
    %v607 = vld [vmem:[#allocation5 + $0xfb0] sm:$0xff]
    %v608 = vld [vmem:[#allocation5 + $0xfb8] sm:$0xff]
    %v609 = vld [vmem:[#allocation5 + $0xfc0] sm:$0xff]
    %v610 = vld [vmem:[#allocation5 + $0xfc8] sm:$0xff]
    %v611 = vld [vmem:[#allocation5 + $0xfd0] sm:$0xff]
    %v612 = vld [vmem:[#allocation5 + $0xfd8] sm:$0xff]
    %v613 = vld [vmem:[#allocation5 + $0xfe0] sm:$0xff]
    %v614 = vld [vmem:[#allocation5 + $0xfe8] sm:$0xff]
    %v615 = vld [vmem:[#allocation5 + $0xff0] sm:$0xff]
    %v616 = vld [vmem:[#allocation5 + $0xff8] sm:$0xff]
    %v617 = vld [vmem:[#allocation5 + $0x1000] sm:$0xff]
    %v618 = vld [vmem:[#allocation5 + $0x1008] sm:$0xff]
    %v619 = vld [vmem:[#allocation5 + $0x1010] sm:$0xff]
    %v620 = vld [vmem:[#allocation5 + $0x1018] sm:$0xff]
    %v621 = vld [vmem:[#allocation5 + $0x1020] sm:$0xff]
    %v622 = vld [vmem:[#allocation5 + $0x1028] sm:$0xff]
    %v623 = vld [vmem:[#allocation5 + $0x1030] sm:$0xff]
    %v624 = vld [vmem:[#allocation5 + $0x1038] sm:$0xff]
    %v625 = vld [vmem:[#allocation5 + $0x1040] sm:$0xff]
    %v626 = vld [vmem:[#allocation5 + $0x1048] sm:$0xff]
    %v627 = vld [vmem:[#allocation5 + $0x1050] sm:$0xff]
    %v628 = vld [vmem:[#allocation5 + $0x1058] sm:$0xff]
    %v629 = vld [vmem:[#allocation5 + $0x1060] sm:$0xff]
    %v630 = vld [vmem:[#allocation5 + $0x1068] sm:$0xff]
    %v631 = vld [vmem:[#allocation5 + $0x1070] sm:$0xff]
    %v632 = vld [vmem:[#allocation5 + $0x1078] sm:$0xff]
    %v633 = vld [vmem:[#allocation5 + $0x1080] sm:$0xff]
    %v634 = vld [vmem:[#allocation5 + $0x1088] sm:$0xff]
    %v635 = vld [vmem:[#allocation5 + $0x1090] sm:$0xff]
    %v636 = vld [vmem:[#allocation5 + $0x1098] sm:$0xff]
    %v637 = vld [vmem:[#allocation5 + $0x10a0] sm:$0xff]
    %v638 = vld [vmem:[#allocation5 + $0x10a8] sm:$0xff]
    %v639 = vld [vmem:[#allocation5 + $0x10b0] sm:$0xff]
    %v640 = vld [vmem:[#allocation5 + $0x10b8] sm:$0xff]
    %v641 = vld [vmem:[#allocation5 + $0x10c0] sm:$0xff]
    %v642 = vld [vmem:[#allocation5 + $0x10c8] sm:$0xff]
    %v643 = vld [vmem:[#allocation5 + $0x10d0] sm:$0xff]
    %v644 = vld [vmem:[#allocation5 + $0x10d8] sm:$0xff]
    %v645 = vld [vmem:[#allocation5 + $0x10e0] sm:$0xff]
    %v646 = vld [vmem:[#allocation5 + $0x10e8] sm:$0xff]
    %v647 = vld [vmem:[#allocation5 + $0x10f0] sm:$0xff]
    %v648 = vld [vmem:[#allocation5 + $0x10f8] sm:$0xff]
    %v649 = vld [vmem:[#allocation5 + $0x1100] sm:$0xff]
    %v650 = vld [vmem:[#allocation5 + $0x1108] sm:$0xff]
    %v651 = vld [vmem:[#allocation5 + $0x1110] sm:$0xff]
    %v652 = vld [vmem:[#allocation5 + $0x1118] sm:$0xff]
    %v653 = vld [vmem:[#allocation5 + $0x1120] sm:$0xff]
    %v654 = vld [vmem:[#allocation5 + $0x1128] sm:$0xff]
    %v655 = vld [vmem:[#allocation5 + $0x1130] sm:$0xff]
    %v656 = vld [vmem:[#allocation5 + $0x1138] sm:$0xff]
    %v657 = vld [vmem:[#allocation5 + $0x1140] sm:$0xff]
    %v658 = vld [vmem:[#allocation5 + $0x1148] sm:$0xff]
    %v659 = vld [vmem:[#allocation5 + $0x1150] sm:$0xff]
    %v660 = vld [vmem:[#allocation5 + $0x1158] sm:$0xff]
    %v661 = vld [vmem:[#allocation5 + $0x1160] sm:$0xff]
    %v662 = vld [vmem:[#allocation5 + $0x1168] sm:$0xff]
    %v663 = vld [vmem:[#allocation5 + $0x1170] sm:$0xff]
    %v664 = vld [vmem:[#allocation5 + $0x1178] sm:$0xff]
    %v665 = vld [vmem:[#allocation5 + $0x1180] sm:$0xff]
    %v666 = vld [vmem:[#allocation5 + $0x1188] sm:$0xff]
    %v667 = vld [vmem:[#allocation5 + $0x1190] sm:$0xff]
    %v668 = vld [vmem:[#allocation5 + $0x1198] sm:$0xff]
    %v669 = vld [vmem:[#allocation5 + $0x11a0] sm:$0xff]
    %v670 = vld [vmem:[#allocation5 + $0x11a8] sm:$0xff]
    %v671 = vld [vmem:[#allocation5 + $0x11b0] sm:$0xff]
    %v672 = vld [vmem:[#allocation5 + $0x11b8] sm:$0xff]
    %v673 = vld [vmem:[#allocation5 + $0x11c0] sm:$0xff]
    %v674 = vld [vmem:[#allocation5 + $0x11c8] sm:$0xff]
    %v675 = vld [vmem:[#allocation5 + $0x11d0] sm:$0xff]
    %v676 = vld [vmem:[#allocation5 + $0x11d8] sm:$0xff]
    %v677 = vld [vmem:[#allocation5 + $0x11e0] sm:$0xff]
    %v678 = vld [vmem:[#allocation5 + $0x11e8] sm:$0xff]
    %v679 = vld [vmem:[#allocation5 + $0x11f0] sm:$0xff]
    %v680 = vld [vmem:[#allocation5 + $0x11f8] sm:$0xff]
    %v681 = vld [vmem:[#allocation5 + $0x1200] sm:$0xff]
    %v682 = vld [vmem:[#allocation5 + $0x1208] sm:$0xff]
    %v683 = vld [vmem:[#allocation5 + $0x1210] sm:$0xff]
    %v684 = vld [vmem:[#allocation5 + $0x1218] sm:$0xff]
    %v685 = vld [vmem:[#allocation5 + $0x1220] sm:$0xff]
    %v686 = vld [vmem:[#allocation5 + $0x1228] sm:$0xff]
    %v687 = vld [vmem:[#allocation5 + $0x1230] sm:$0xff]
    %v688 = vld [vmem:[#allocation5 + $0x1238] sm:$0xff]
    %v689 = vld [vmem:[#allocation5 + $0x1240] sm:$0xff]
    %v690 = vld [vmem:[#allocation5 + $0x1248] sm:$0xff]
    %v691 = vld [vmem:[#allocation5 + $0x1250] sm:$0xff]
    %v692 = vld [vmem:[#allocation5 + $0x1258] sm:$0xff]
    %v693 = vld [vmem:[#allocation5 + $0x1260] sm:$0xff]
    %v694 = vld [vmem:[#allocation5 + $0x1268] sm:$0xff]
    %v695 = vld [vmem:[#allocation5 + $0x1270] sm:$0xff]
    %v696 = vld [vmem:[#allocation5 + $0x1278] sm:$0xff]
    %v697 = vld [vmem:[#allocation5 + $0x1280] sm:$0xff]
    %v698 = vld [vmem:[#allocation5 + $0x1288] sm:$0xff]
    %v699 = vld [vmem:[#allocation5 + $0x1290] sm:$0xff]
    %v700 = vld [vmem:[#allocation5 + $0x1298] sm:$0xff]
    %v701 = vld [vmem:[#allocation5 + $0x12a0] sm:$0xff]
    %v702 = vld [vmem:[#allocation5 + $0x12a8] sm:$0xff]
    %v703 = vld [vmem:[#allocation5 + $0x12b0] sm:$0xff]
    %v704 = vld [vmem:[#allocation5 + $0x12b8] sm:$0xff]
    %v705 = vld [vmem:[#allocation5 + $0x12c0] sm:$0xff]
    %v706 = vld [vmem:[#allocation5 + $0x12c8] sm:$0xff]
    %v707 = vld [vmem:[#allocation5 + $0x12d0] sm:$0xff]
    %v708 = vld [vmem:[#allocation5 + $0x12d8] sm:$0xff]
    %v709 = vld [vmem:[#allocation5 + $0x12e0] sm:$0xff]
    %v710 = vld [vmem:[#allocation5 + $0x12e8] sm:$0xff]
    %v711 = vld [vmem:[#allocation5 + $0x12f0] sm:$0xff]
    %v712 = vld [vmem:[#allocation5 + $0x12f8] sm:$0xff]
    %v713 = vld [vmem:[#allocation5 + $0x1300] sm:$0xff]
    %v714 = vld [vmem:[#allocation5 + $0x1308] sm:$0xff]
    %v715 = vld [vmem:[#allocation5 + $0x1310] sm:$0xff]
    %v716 = vld [vmem:[#allocation5 + $0x1318] sm:$0xff]
    %v717 = vld [vmem:[#allocation5 + $0x1320] sm:$0xff]
    %v718 = vld [vmem:[#allocation5 + $0x1328] sm:$0xff]
    %v719 = vld [vmem:[#allocation5 + $0x1330] sm:$0xff]
    %v720 = vld [vmem:[#allocation5 + $0x1338] sm:$0xff]
    %v721 = vld [vmem:[#allocation5 + $0x1340] sm:$0xff]
    %v722 = vld [vmem:[#allocation5 + $0x1348] sm:$0xff]
    %v723 = vld [vmem:[#allocation5 + $0x1350] sm:$0xff]
    %v724 = vld [vmem:[#allocation5 + $0x1358] sm:$0xff]
    %v725 = vld [vmem:[#allocation5 + $0x1360] sm:$0xff]
    %v726 = vld [vmem:[#allocation5 + $0x1368] sm:$0xff]
    %v727 = vld [vmem:[#allocation5 + $0x1370] sm:$0xff]
    %v728 = vld [vmem:[#allocation5 + $0x1378] sm:$0xff]
    %v729 = vld [vmem:[#allocation5 + $0x1380] sm:$0xff]
    %v730 = vld [vmem:[#allocation5 + $0x1388] sm:$0xff]
    %v731 = vld [vmem:[#allocation5 + $0x1390] sm:$0xff]
    %v732 = vld [vmem:[#allocation5 + $0x1398] sm:$0xff]
    %v733 = vld [vmem:[#allocation5 + $0x13a0] sm:$0xff]
    %v734 = vld [vmem:[#allocation5 + $0x13a8] sm:$0xff]
    %v735 = vld [vmem:[#allocation5 + $0x13b0] sm:$0xff]
    %v736 = vld [vmem:[#allocation5 + $0x13b8] sm:$0xff]
    %v737 = vld [vmem:[#allocation5 + $0x13c0] sm:$0xff]
    %v738 = vld [vmem:[#allocation5 + $0x13c8] sm:$0xff]
    %v739 = vld [vmem:[#allocation5 + $0x13d0] sm:$0xff]
    %v740 = vld [vmem:[#allocation5 + $0x13d8] sm:$0xff]
    %v741 = vld [vmem:[#allocation5 + $0x13e0] sm:$0xff]
    %v742 = vld [vmem:[#allocation5 + $0x13e8] sm:$0xff]
    %v743 = vld [vmem:[#allocation5 + $0x13f0] sm:$0xff]
    %v744 = vld [vmem:[#allocation5 + $0x13f8] sm:$0xff]
    %v745 = vld [vmem:[#allocation5 + $0x1400] sm:$0xff]
    %v746 = vld [vmem:[#allocation5 + $0x1408] sm:$0xff]
    %v747 = vld [vmem:[#allocation5 + $0x1410] sm:$0xff]
    %v748 = vld [vmem:[#allocation5 + $0x1418] sm:$0xff]
    %v749 = vld [vmem:[#allocation5 + $0x1420] sm:$0xff]
    %v750 = vld [vmem:[#allocation5 + $0x1428] sm:$0xff]
    %v751 = vld [vmem:[#allocation5 + $0x1430] sm:$0xff]
    %v752 = vld [vmem:[#allocation5 + $0x1438] sm:$0xff]
    %v753 = vld [vmem:[#allocation5 + $0x1440] sm:$0xff]
    %v754 = vld [vmem:[#allocation5 + $0x1448] sm:$0xff]
    %v755 = vld [vmem:[#allocation5 + $0x1450] sm:$0xff]
    %v756 = vld [vmem:[#allocation5 + $0x1458] sm:$0xff]
    %v757 = vld [vmem:[#allocation5 + $0x1460] sm:$0xff]
    %v758 = vld [vmem:[#allocation5 + $0x1468] sm:$0xff]
    %v759 = vld [vmem:[#allocation5 + $0x1470] sm:$0xff]
    %v760 = vld [vmem:[#allocation5 + $0x1478] sm:$0xff]
    %v761 = vld [vmem:[#allocation5 + $0x1480] sm:$0xff]
    %v762 = vld [vmem:[#allocation5 + $0x1488] sm:$0xff]
    %v763 = vld [vmem:[#allocation5 + $0x1490] sm:$0xff]
    %v764 = vld [vmem:[#allocation5 + $0x1498] sm:$0xff]
    %v765 = vld [vmem:[#allocation5 + $0x14a0] sm:$0xff]
    %v766 = vld [vmem:[#allocation5 + $0x14a8] sm:$0xff]
    %v767 = vld [vmem:[#allocation5 + $0x14b0] sm:$0xff]
    %v768 = vld [vmem:[#allocation5 + $0x14b8] sm:$0xff]
    %v769 = vld [vmem:[#allocation5 + $0x14c0] sm:$0xff]
    %v770 = vld [vmem:[#allocation5 + $0x14c8] sm:$0xff]
    %v771 = vld [vmem:[#allocation5 + $0x14d0] sm:$0xff]
    %v772 = vld [vmem:[#allocation5 + $0x14d8] sm:$0xff]
    %v773 = vld [vmem:[#allocation5 + $0x14e0] sm:$0xff]
    %v774 = vld [vmem:[#allocation5 + $0x14e8] sm:$0xff]
    %v775 = vld [vmem:[#allocation5 + $0x14f0] sm:$0xff]
    %v776 = vld [vmem:[#allocation5 + $0x14f8] sm:$0xff]
    %v777 = vld [vmem:[#allocation5 + $0x1500] sm:$0xff]
    %v778 = vld [vmem:[#allocation5 + $0x1508] sm:$0xff]
    %v779 = vld [vmem:[#allocation5 + $0x1510] sm:$0xff]
    %v780 = vld [vmem:[#allocation5 + $0x1518] sm:$0xff]
    %v781 = vld [vmem:[#allocation5 + $0x1520] sm:$0xff]
    %v782 = vld [vmem:[#allocation5 + $0x1528] sm:$0xff]
    %v783 = vld [vmem:[#allocation5 + $0x1530] sm:$0xff]
    %v784 = vld [vmem:[#allocation5 + $0x1538] sm:$0xff]
    %v785 = vld [vmem:[#allocation5 + $0x1540] sm:$0xff]
    %v786 = vld [vmem:[#allocation5 + $0x1548] sm:$0xff]
    %v787 = vld [vmem:[#allocation5 + $0x1550] sm:$0xff]
    %v788 = vld [vmem:[#allocation5 + $0x1558] sm:$0xff]
    %v789 = vld [vmem:[#allocation5 + $0x1560] sm:$0xff]
    %v790 = vld [vmem:[#allocation5 + $0x1568] sm:$0xff]
    %v791 = vld [vmem:[#allocation5 + $0x1570] sm:$0xff]
    %v792 = vld [vmem:[#allocation5 + $0x1578] sm:$0xff]
    %v793 = vld [vmem:[#allocation5 + $0x1580] sm:$0xff]
    %v794 = vld [vmem:[#allocation5 + $0x1588] sm:$0xff]
    %v795 = vld [vmem:[#allocation5 + $0x1590] sm:$0xff]
    %v796 = vld [vmem:[#allocation5 + $0x1598] sm:$0xff]
    %v797 = vld [vmem:[#allocation5 + $0x15a0] sm:$0xff]
    %v798 = vld [vmem:[#allocation5 + $0x15a8] sm:$0xff]
    %v799 = vld [vmem:[#allocation5 + $0x15b0] sm:$0xff]
    %v800 = vld [vmem:[#allocation5 + $0x15b8] sm:$0xff]
    %v801 = vld [vmem:[#allocation5 + $0x15c0] sm:$0xff]
    %v802 = vld [vmem:[#allocation5 + $0x15c8] sm:$0xff]
    %v803 = vld [vmem:[#allocation5 + $0x15d0] sm:$0xff]
    %v804 = vld [vmem:[#allocation5 + $0x15d8] sm:$0xff]
    %v805 = vld [vmem:[#allocation5 + $0x15e0] sm:$0xff]
    %v806 = vld [vmem:[#allocation5 + $0x15e8] sm:$0xff]
    %v807 = vld [vmem:[#allocation5 + $0x15f0] sm:$0xff]
    %v808 = vld [vmem:[#allocation5 + $0x15f8] sm:$0xff]
    %v809 = vld [vmem:[#allocation5 + $0x1600] sm:$0xff]
    %v810 = vld [vmem:[#allocation5 + $0x1608] sm:$0xff]
    %v811 = vld [vmem:[#allocation5 + $0x1610] sm:$0xff]
    %v812 = vld [vmem:[#allocation5 + $0x1618] sm:$0xff]
    %v813 = vld [vmem:[#allocation5 + $0x1620] sm:$0xff]
    %v814 = vld [vmem:[#allocation5 + $0x1628] sm:$0xff]
    %v815 = vld [vmem:[#allocation5 + $0x1630] sm:$0xff]
    %v816 = vld [vmem:[#allocation5 + $0x1638] sm:$0xff]
    %v817 = vld [vmem:[#allocation5 + $0x1640] sm:$0xff]
    %v818 = vld [vmem:[#allocation5 + $0x1648] sm:$0xff]
    %v819 = vld [vmem:[#allocation5 + $0x1650] sm:$0xff]
    %v820 = vld [vmem:[#allocation5 + $0x1658] sm:$0xff]
    %v821 = vld [vmem:[#allocation5 + $0x1660] sm:$0xff]
    %v822 = vld [vmem:[#allocation5 + $0x1668] sm:$0xff]
    %v823 = vld [vmem:[#allocation5 + $0x1670] sm:$0xff]
    %v824 = vld [vmem:[#allocation5 + $0x1678] sm:$0xff]
    %v825 = vld [vmem:[#allocation5 + $0x1680] sm:$0xff]
    %v826 = vld [vmem:[#allocation5 + $0x1688] sm:$0xff]
    %v827 = vld [vmem:[#allocation5 + $0x1690] sm:$0xff]
    %v828 = vld [vmem:[#allocation5 + $0x1698] sm:$0xff]
    %v829 = vld [vmem:[#allocation5 + $0x16a0] sm:$0xff]
    %v830 = vld [vmem:[#allocation5 + $0x16a8] sm:$0xff]
    %v831 = vld [vmem:[#allocation5 + $0x16b0] sm:$0xff]
    %v832 = vld [vmem:[#allocation5 + $0x16b8] sm:$0xff]
    %v833 = vld [vmem:[#allocation5 + $0x16c0] sm:$0xff]
    %v834 = vld [vmem:[#allocation5 + $0x16c8] sm:$0xff]
    %v835 = vld [vmem:[#allocation5 + $0x16d0] sm:$0xff]
    %v836 = vld [vmem:[#allocation5 + $0x16d8] sm:$0xff]
    %v837 = vld [vmem:[#allocation5 + $0x16e0] sm:$0xff]
    %v838 = vld [vmem:[#allocation5 + $0x16e8] sm:$0xff]
    %v839 = vld [vmem:[#allocation5 + $0x16f0] sm:$0xff]
    %v840 = vld [vmem:[#allocation5 + $0x16f8] sm:$0xff]
    %v841 = vld [vmem:[#allocation5 + $0x1700] sm:$0xff]
    %v842 = vld [vmem:[#allocation5 + $0x1708] sm:$0xff]
    %v843 = vld [vmem:[#allocation5 + $0x1710] sm:$0xff]
    %v844 = vld [vmem:[#allocation5 + $0x1718] sm:$0xff]
    %v845 = vld [vmem:[#allocation5 + $0x1720] sm:$0xff]
    %v846 = vld [vmem:[#allocation5 + $0x1728] sm:$0xff]
    %v847 = vld [vmem:[#allocation5 + $0x1730] sm:$0xff]
    %v848 = vld [vmem:[#allocation5 + $0x1738] sm:$0xff]
    %v849 = vld [vmem:[#allocation5 + $0x1740] sm:$0xff]
    %v850 = vld [vmem:[#allocation5 + $0x1748] sm:$0xff]
    %v851 = vld [vmem:[#allocation5 + $0x1750] sm:$0xff]
    %v852 = vld [vmem:[#allocation5 + $0x1758] sm:$0xff]
    %v853 = vld [vmem:[#allocation5 + $0x1760] sm:$0xff]
    %v854 = vld [vmem:[#allocation5 + $0x1768] sm:$0xff]
    %v855 = vld [vmem:[#allocation5 + $0x1770] sm:$0xff]
    %v856 = vld [vmem:[#allocation5 + $0x1778] sm:$0xff]
    %v857 = vld [vmem:[#allocation5 + $0x1780] sm:$0xff]
    %v858 = vld [vmem:[#allocation5 + $0x1788] sm:$0xff]
    %v859 = vld [vmem:[#allocation5 + $0x1790] sm:$0xff]
    %v860 = vld [vmem:[#allocation5 + $0x1798] sm:$0xff]
    %v861 = vld [vmem:[#allocation5 + $0x17a0] sm:$0xff]
    %v862 = vld [vmem:[#allocation5 + $0x17a8] sm:$0xff]
    %v863 = vld [vmem:[#allocation5 + $0x17b0] sm:$0xff]
    %v864 = vld [vmem:[#allocation5 + $0x17b8] sm:$0xff]
    %v865 = vld [vmem:[#allocation5 + $0x17c0] sm:$0xff]
    %v866 = vld [vmem:[#allocation5 + $0x17c8] sm:$0xff]
    %v867 = vld [vmem:[#allocation5 + $0x17d0] sm:$0xff]
    %v868 = vld [vmem:[#allocation5 + $0x17d8] sm:$0xff]
    %v869 = vld [vmem:[#allocation5 + $0x17e0] sm:$0xff]
    %v870 = vld [vmem:[#allocation5 + $0x17e8] sm:$0xff]
    %v871 = vld [vmem:[#allocation5 + $0x17f0] sm:$0xff]
    %v872 = vld [vmem:[#allocation5 + $0x17f8] sm:$0xff]
    %v879 = vunpack.c.l.b16 %v99
    %v880 = vunpack.c.h.b16 %v99
    %v881 = vunpack.c.l.b16 %v100
    %v882 = vunpack.c.h.b16 %v100
    %v883 = vunpack.c.l.b16 %v101
    %v884 = vunpack.c.h.b16 %v101
    %v885 = vunpack.c.l.b16 %v102
    %v886 = vunpack.c.h.b16 %v102
    %v887 = vunpack.c.l.b16 %v103
    %v888 = vunpack.c.h.b16 %v103
    %v889 = vunpack.c.l.b16 %v104
    %v890 = vunpack.c.h.b16 %v104
    %v891 = vpack.c.b16 %v879, %v879
    %v892 = vpack.c.b16 %v880, %v880
    %v893 = vpack.c.b16 %v881, %v881
    %v894 = vpack.c.b16 %v882, %v882
    %v895 = vpack.c.b16 %v883, %v883
    %v896 = vpack.c.b16 %v884, %v884
    %v897 = vpack.c.b16 %v885, %v885
    %v898 = vpack.c.b16 %v886, %v886
    %v899 = vpack.c.b16 %v887, %v887
    %v900 = vpack.c.b16 %v888, %v888
    %v901 = vpack.c.b16 %v889, %v889
    %v902 = vpack.c.b16 %v890, %v890
    %v1683 = vunpack.c.l.b16 %v105
    %v1684 = vunpack.c.h.b16 %v105
    %v1685 = vunpack.c.l.b16 %v106
    %v1686 = vunpack.c.h.b16 %v106
    %v1687 = vunpack.c.l.b16 %v107
    %v1688 = vunpack.c.h.b16 %v107
    %v1689 = vunpack.c.l.b16 %v108
    %v1690 = vunpack.c.h.b16 %v108
    %v1691 = vunpack.c.l.b16 %v109
    %v1692 = vunpack.c.h.b16 %v109
    %v1693 = vunpack.c.l.b16 %v110
    %v1694 = vunpack.c.h.b16 %v110
    %v1695 = vunpack.c.l.b16 %v111
    %v1696 = vunpack.c.h.b16 %v111
    %v1697 = vunpack.c.l.b16 %v112
    %v1698 = vunpack.c.h.b16 %v112
    %v1699 = vunpack.c.l.b16 %v113
    %v1700 = vunpack.c.h.b16 %v113
    %v1701 = vunpack.c.l.b16 %v114
    %v1702 = vunpack.c.h.b16 %v114
    %v1703 = vunpack.c.l.b16 %v115
    %v1704 = vunpack.c.h.b16 %v115
    %v1705 = vunpack.c.l.b16 %v116
    %v1706 = vunpack.c.h.b16 %v116
    %v1707 = vunpack.c.l.b16 %v117
    %v1708 = vunpack.c.h.b16 %v117
    %v1709 = vunpack.c.l.b16 %v118
    %v1710 = vunpack.c.h.b16 %v118
    %v1711 = vunpack.c.l.b16 %v119
    %v1712 = vunpack.c.h.b16 %v119
    %v1713 = vunpack.c.l.b16 %v120
    %v1714 = vunpack.c.h.b16 %v120
    %v1715 = vunpack.c.l.b16 %v121
    %v1716 = vunpack.c.h.b16 %v121
    %v1717 = vunpack.c.l.b16 %v122
    %v1718 = vunpack.c.h.b16 %v122
    %v1719 = vunpack.c.l.b16 %v123
    %v1720 = vunpack.c.h.b16 %v123
    %v1721 = vunpack.c.l.b16 %v124
    %v1722 = vunpack.c.h.b16 %v124
    %v1723 = vunpack.c.l.b16 %v125
    %v1724 = vunpack.c.h.b16 %v125
    %v1725 = vunpack.c.l.b16 %v126
    %v1726 = vunpack.c.h.b16 %v126
    %v1727 = vunpack.c.l.b16 %v127
    %v1728 = vunpack.c.h.b16 %v127
    %v1729 = vunpack.c.l.b16 %v128
    %v1730 = vunpack.c.h.b16 %v128
    %v1731 = vunpack.c.l.b16 %v129
    %v1732 = vunpack.c.h.b16 %v129
    %v1733 = vunpack.c.l.b16 %v130
    %v1734 = vunpack.c.h.b16 %v130
    %v1735 = vunpack.c.l.b16 %v131
    %v1736 = vunpack.c.h.b16 %v131
    %v1737 = vunpack.c.l.b16 %v132
    %v1738 = vunpack.c.h.b16 %v132
    %v1739 = vunpack.c.l.b16 %v133
    %v1740 = vunpack.c.h.b16 %v133
    %v1741 = vunpack.c.l.b16 %v134
    %v1742 = vunpack.c.h.b16 %v134
    %v1743 = vunpack.c.l.b16 %v135
    %v1744 = vunpack.c.h.b16 %v135
    %v1745 = vunpack.c.l.b16 %v136
    %v1746 = vunpack.c.h.b16 %v136
    %v1747 = vunpack.c.l.b16 %v137
    %v1748 = vunpack.c.h.b16 %v137
    %v1749 = vunpack.c.l.b16 %v138
    %v1750 = vunpack.c.h.b16 %v138
    %v1751 = vunpack.c.l.b16 %v139
    %v1752 = vunpack.c.h.b16 %v139
    %v1753 = vunpack.c.l.b16 %v140
    %v1754 = vunpack.c.h.b16 %v140
    %v1755 = vunpack.c.l.b16 %v141
    %v1756 = vunpack.c.h.b16 %v141
    %v1757 = vunpack.c.l.b16 %v142
    %v1758 = vunpack.c.h.b16 %v142
    %v1759 = vunpack.c.l.b16 %v143
    %v1760 = vunpack.c.h.b16 %v143
    %v1761 = vunpack.c.l.b16 %v144
    %v1762 = vunpack.c.h.b16 %v144
    %v1763 = vunpack.c.l.b16 %v145
    %v1764 = vunpack.c.h.b16 %v145
    %v1765 = vunpack.c.l.b16 %v146
    %v1766 = vunpack.c.h.b16 %v146
    %v1767 = vunpack.c.l.b16 %v147
    %v1768 = vunpack.c.h.b16 %v147
    %v1769 = vunpack.c.l.b16 %v148
    %v1770 = vunpack.c.h.b16 %v148
    %v1771 = vunpack.c.l.b16 %v149
    %v1772 = vunpack.c.h.b16 %v149
    %v1773 = vunpack.c.l.b16 %v150
    %v1774 = vunpack.c.h.b16 %v150
    %v1775 = vunpack.c.l.b16 %v151
    %v1776 = vunpack.c.h.b16 %v151
    %v1777 = vunpack.c.l.b16 %v152
    %v1778 = vunpack.c.h.b16 %v152
    %v1779 = vunpack.c.l.b16 %v153
    %v1780 = vunpack.c.h.b16 %v153
    %v1781 = vunpack.c.l.b16 %v154
    %v1782 = vunpack.c.h.b16 %v154
    %v1783 = vunpack.c.l.b16 %v155
    %v1784 = vunpack.c.h.b16 %v155
    %v1785 = vunpack.c.l.b16 %v156
    %v1786 = vunpack.c.h.b16 %v156
    %v1787 = vunpack.c.l.b16 %v157
    %v1788 = vunpack.c.h.b16 %v157
    %v1789 = vunpack.c.l.b16 %v158
    %v1790 = vunpack.c.h.b16 %v158
    %v1791 = vunpack.c.l.b16 %v159
    %v1792 = vunpack.c.h.b16 %v159
    %v1793 = vunpack.c.l.b16 %v160
    %v1794 = vunpack.c.h.b16 %v160
    %v1795 = vunpack.c.l.b16 %v161
    %v1796 = vunpack.c.h.b16 %v161
    %v1797 = vunpack.c.l.b16 %v162
    %v1798 = vunpack.c.h.b16 %v162
    %v1799 = vunpack.c.l.b16 %v163
    %v1800 = vunpack.c.h.b16 %v163
    %v1801 = vunpack.c.l.b16 %v164
    %v1802 = vunpack.c.h.b16 %v164
    %v1803 = vunpack.c.l.b16 %v165
    %v1804 = vunpack.c.h.b16 %v165
    %v1805 = vunpack.c.l.b16 %v166
    %v1806 = vunpack.c.h.b16 %v166
    %v1807 = vunpack.c.l.b16 %v167
    %v1808 = vunpack.c.h.b16 %v167
    %v1809 = vunpack.c.l.b16 %v168
    %v1810 = vunpack.c.h.b16 %v168
    %v1811 = vunpack.c.l.b16 %v169
    %v1812 = vunpack.c.h.b16 %v169
    %v1813 = vunpack.c.l.b16 %v170
    %v1814 = vunpack.c.h.b16 %v170
    %v1815 = vunpack.c.l.b16 %v171
    %v1816 = vunpack.c.h.b16 %v171
    %v1817 = vunpack.c.l.b16 %v172
    %v1818 = vunpack.c.h.b16 %v172
    %v1819 = vunpack.c.l.b16 %v173
    %v1820 = vunpack.c.h.b16 %v173
    %v1821 = vunpack.c.l.b16 %v174
    %v1822 = vunpack.c.h.b16 %v174
    %v1823 = vunpack.c.l.b16 %v175
    %v1824 = vunpack.c.h.b16 %v175
    %v1825 = vunpack.c.l.b16 %v176
    %v1826 = vunpack.c.h.b16 %v176
    %v1827 = vunpack.c.l.b16 %v177
    %v1828 = vunpack.c.h.b16 %v177
    %v1829 = vunpack.c.l.b16 %v178
    %v1830 = vunpack.c.h.b16 %v178
    %v1831 = vunpack.c.l.b16 %v179
    %v1832 = vunpack.c.h.b16 %v179
    %v1833 = vunpack.c.l.b16 %v180
    %v1834 = vunpack.c.h.b16 %v180
    %v1835 = vunpack.c.l.b16 %v181
    %v1836 = vunpack.c.h.b16 %v181
    %v1837 = vunpack.c.l.b16 %v182
    %v1838 = vunpack.c.h.b16 %v182
    %v1839 = vunpack.c.l.b16 %v183
    %v1840 = vunpack.c.h.b16 %v183
    %v1841 = vunpack.c.l.b16 %v184
    %v1842 = vunpack.c.h.b16 %v184
    %v1843 = vunpack.c.l.b16 %v185
    %v1844 = vunpack.c.h.b16 %v185
    %v1845 = vunpack.c.l.b16 %v186
    %v1846 = vunpack.c.h.b16 %v186
    %v1847 = vunpack.c.l.b16 %v187
    %v1848 = vunpack.c.h.b16 %v187
    %v1849 = vunpack.c.l.b16 %v188
    %v1850 = vunpack.c.h.b16 %v188
    %v1851 = vunpack.c.l.b16 %v189
    %v1852 = vunpack.c.h.b16 %v189
    %v1853 = vunpack.c.l.b16 %v190
    %v1854 = vunpack.c.h.b16 %v190
    %v1855 = vunpack.c.l.b16 %v191
    %v1856 = vunpack.c.h.b16 %v191
    %v1857 = vunpack.c.l.b16 %v192
    %v1858 = vunpack.c.h.b16 %v192
    %v1859 = vunpack.c.l.b16 %v193
    %v1860 = vunpack.c.h.b16 %v193
    %v1861 = vunpack.c.l.b16 %v194
    %v1862 = vunpack.c.h.b16 %v194
    %v1863 = vunpack.c.l.b16 %v195
    %v1864 = vunpack.c.h.b16 %v195
    %v1865 = vunpack.c.l.b16 %v196
    %v1866 = vunpack.c.h.b16 %v196
    %v1867 = vunpack.c.l.b16 %v197
    %v1868 = vunpack.c.h.b16 %v197
    %v1869 = vunpack.c.l.b16 %v198
    %v1870 = vunpack.c.h.b16 %v198
    %v1871 = vunpack.c.l.b16 %v199
    %v1872 = vunpack.c.h.b16 %v199
    %v1873 = vunpack.c.l.b16 %v200
    %v1874 = vunpack.c.h.b16 %v200
    %v1875 = vunpack.c.l.b16 %v201
    %v1876 = vunpack.c.h.b16 %v201
    %v1877 = vunpack.c.l.b16 %v202
    %v1878 = vunpack.c.h.b16 %v202
    %v1879 = vunpack.c.l.b16 %v203
    %v1880 = vunpack.c.h.b16 %v203
    %v1881 = vunpack.c.l.b16 %v204
    %v1882 = vunpack.c.h.b16 %v204
    %v1883 = vunpack.c.l.b16 %v205
    %v1884 = vunpack.c.h.b16 %v205
    %v1885 = vunpack.c.l.b16 %v206
    %v1886 = vunpack.c.h.b16 %v206
    %v1887 = vunpack.c.l.b16 %v207
    %v1888 = vunpack.c.h.b16 %v207
    %v1889 = vunpack.c.l.b16 %v208
    %v1890 = vunpack.c.h.b16 %v208
    %v1891 = vunpack.c.l.b16 %v209
    %v1892 = vunpack.c.h.b16 %v209
    %v1893 = vunpack.c.l.b16 %v210
    %v1894 = vunpack.c.h.b16 %v210
    %v1895 = vunpack.c.l.b16 %v211
    %v1896 = vunpack.c.h.b16 %v211
    %v1897 = vunpack.c.l.b16 %v212
    %v1898 = vunpack.c.h.b16 %v212
    %v1899 = vunpack.c.l.b16 %v213
    %v1900 = vunpack.c.h.b16 %v213
    %v1901 = vunpack.c.l.b16 %v214
    %v1902 = vunpack.c.h.b16 %v214
    %v1903 = vunpack.c.l.b16 %v215
    %v1904 = vunpack.c.h.b16 %v215
    %v1905 = vunpack.c.l.b16 %v216
    %v1906 = vunpack.c.h.b16 %v216
    %v1907 = vunpack.c.l.b16 %v217
    %v1908 = vunpack.c.h.b16 %v217
    %v1909 = vunpack.c.l.b16 %v218
    %v1910 = vunpack.c.h.b16 %v218
    %v1911 = vunpack.c.l.b16 %v219
    %v1912 = vunpack.c.h.b16 %v219
    %v1913 = vunpack.c.l.b16 %v220
    %v1914 = vunpack.c.h.b16 %v220
    %v1915 = vunpack.c.l.b16 %v221
    %v1916 = vunpack.c.h.b16 %v221
    %v1917 = vunpack.c.l.b16 %v222
    %v1918 = vunpack.c.h.b16 %v222
    %v1919 = vunpack.c.l.b16 %v223
    %v1920 = vunpack.c.h.b16 %v223
    %v1921 = vunpack.c.l.b16 %v224
    %v1922 = vunpack.c.h.b16 %v224
    %v1923 = vunpack.c.l.b16 %v225
    %v1924 = vunpack.c.h.b16 %v225
    %v1925 = vunpack.c.l.b16 %v226
    %v1926 = vunpack.c.h.b16 %v226
    %v1927 = vunpack.c.l.b16 %v227
    %v1928 = vunpack.c.h.b16 %v227
    %v1929 = vunpack.c.l.b16 %v228
    %v1930 = vunpack.c.h.b16 %v228
    %v1931 = vunpack.c.l.b16 %v229
    %v1932 = vunpack.c.h.b16 %v229
    %v1933 = vunpack.c.l.b16 %v230
    %v1934 = vunpack.c.h.b16 %v230
    %v1935 = vunpack.c.l.b16 %v231
    %v1936 = vunpack.c.h.b16 %v231
    %v1937 = vunpack.c.l.b16 %v232
    %v1938 = vunpack.c.h.b16 %v232
    %v1939 = vunpack.c.l.b16 %v233
    %v1940 = vunpack.c.h.b16 %v233
    %v1941 = vunpack.c.l.b16 %v234
    %v1942 = vunpack.c.h.b16 %v234
    %v1943 = vunpack.c.l.b16 %v235
    %v1944 = vunpack.c.h.b16 %v235
    %v1945 = vunpack.c.l.b16 %v236
    %v1946 = vunpack.c.h.b16 %v236
    %v1947 = vunpack.c.l.b16 %v237
    %v1948 = vunpack.c.h.b16 %v237
    %v1949 = vunpack.c.l.b16 %v238
    %v1950 = vunpack.c.h.b16 %v238
    %v1951 = vunpack.c.l.b16 %v239
    %v1952 = vunpack.c.h.b16 %v239
    %v1953 = vunpack.c.l.b16 %v240
    %v1954 = vunpack.c.h.b16 %v240
    %v1955 = vunpack.c.l.b16 %v241
    %v1956 = vunpack.c.h.b16 %v241
    %v1957 = vunpack.c.l.b16 %v242
    %v1958 = vunpack.c.h.b16 %v242
    %v1959 = vunpack.c.l.b16 %v243
    %v1960 = vunpack.c.h.b16 %v243
    %v1961 = vunpack.c.l.b16 %v244
    %v1962 = vunpack.c.h.b16 %v244
    %v1963 = vunpack.c.l.b16 %v245
    %v1964 = vunpack.c.h.b16 %v245
    %v1965 = vunpack.c.l.b16 %v246
    %v1966 = vunpack.c.h.b16 %v246
    %v1967 = vunpack.c.l.b16 %v247
    %v1968 = vunpack.c.h.b16 %v247
    %v1969 = vunpack.c.l.b16 %v248
    %v1970 = vunpack.c.h.b16 %v248
    %v1971 = vunpack.c.l.b16 %v249
    %v1972 = vunpack.c.h.b16 %v249
    %v1973 = vunpack.c.l.b16 %v250
    %v1974 = vunpack.c.h.b16 %v250
    %v1975 = vunpack.c.l.b16 %v251
    %v1976 = vunpack.c.h.b16 %v251
    %v1977 = vunpack.c.l.b16 %v252
    %v1978 = vunpack.c.h.b16 %v252
    %v1979 = vunpack.c.l.b16 %v253
    %v1980 = vunpack.c.h.b16 %v253
    %v1981 = vunpack.c.l.b16 %v254
    %v1982 = vunpack.c.h.b16 %v254
    %v1983 = vunpack.c.l.b16 %v255
    %v1984 = vunpack.c.h.b16 %v255
    %v1985 = vunpack.c.l.b16 %v256
    %v1986 = vunpack.c.h.b16 %v256
    %v1987 = vunpack.c.l.b16 %v257
    %v1988 = vunpack.c.h.b16 %v257
    %v1989 = vunpack.c.l.b16 %v258
    %v1990 = vunpack.c.h.b16 %v258
    %v1991 = vunpack.c.l.b16 %v259
    %v1992 = vunpack.c.h.b16 %v259
    %v1993 = vunpack.c.l.b16 %v260
    %v1994 = vunpack.c.h.b16 %v260
    %v1995 = vunpack.c.l.b16 %v261
    %v1996 = vunpack.c.h.b16 %v261
    %v1997 = vunpack.c.l.b16 %v262
    %v1998 = vunpack.c.h.b16 %v262
    %v1999 = vunpack.c.l.b16 %v263
    %v2000 = vunpack.c.h.b16 %v263
    %v2001 = vunpack.c.l.b16 %v264
    %v2002 = vunpack.c.h.b16 %v264
    %v2003 = vunpack.c.l.b16 %v265
    %v2004 = vunpack.c.h.b16 %v265
    %v2005 = vunpack.c.l.b16 %v266
    %v2006 = vunpack.c.h.b16 %v266
    %v2007 = vunpack.c.l.b16 %v267
    %v2008 = vunpack.c.h.b16 %v267
    %v2009 = vunpack.c.l.b16 %v268
    %v2010 = vunpack.c.h.b16 %v268
    %v2011 = vunpack.c.l.b16 %v269
    %v2012 = vunpack.c.h.b16 %v269
    %v2013 = vunpack.c.l.b16 %v270
    %v2014 = vunpack.c.h.b16 %v270
    %v2015 = vunpack.c.l.b16 %v271
    %v2016 = vunpack.c.h.b16 %v271
    %v2017 = vunpack.c.l.b16 %v272
    %v2018 = vunpack.c.h.b16 %v272
    %v2019 = vunpack.c.l.b16 %v273
    %v2020 = vunpack.c.h.b16 %v273
    %v2021 = vunpack.c.l.b16 %v274
    %v2022 = vunpack.c.h.b16 %v274
    %v2023 = vunpack.c.l.b16 %v275
    %v2024 = vunpack.c.h.b16 %v275
    %v2025 = vunpack.c.l.b16 %v276
    %v2026 = vunpack.c.h.b16 %v276
    %v2027 = vunpack.c.l.b16 %v277
    %v2028 = vunpack.c.h.b16 %v277
    %v2029 = vunpack.c.l.b16 %v278
    %v2030 = vunpack.c.h.b16 %v278
    %v2031 = vunpack.c.l.b16 %v279
    %v2032 = vunpack.c.h.b16 %v279
    %v2033 = vunpack.c.l.b16 %v280
    %v2034 = vunpack.c.h.b16 %v280
    %v2035 = vunpack.c.l.b16 %v281
    %v2036 = vunpack.c.h.b16 %v281
    %v2037 = vunpack.c.l.b16 %v282
    %v2038 = vunpack.c.h.b16 %v282
    %v2039 = vunpack.c.l.b16 %v283
    %v2040 = vunpack.c.h.b16 %v283
    %v2041 = vunpack.c.l.b16 %v284
    %v2042 = vunpack.c.h.b16 %v284
    %v2043 = vunpack.c.l.b16 %v285
    %v2044 = vunpack.c.h.b16 %v285
    %v2045 = vunpack.c.l.b16 %v286
    %v2046 = vunpack.c.h.b16 %v286
    %v2047 = vunpack.c.l.b16 %v287
    %v2048 = vunpack.c.h.b16 %v287
    %v2049 = vunpack.c.l.b16 %v288
    %v2050 = vunpack.c.h.b16 %v288
    %v2051 = vunpack.c.l.b16 %v289
    %v2052 = vunpack.c.h.b16 %v289
    %v2053 = vunpack.c.l.b16 %v290
    %v2054 = vunpack.c.h.b16 %v290
    %v2055 = vunpack.c.l.b16 %v291
    %v2056 = vunpack.c.h.b16 %v291
    %v2057 = vunpack.c.l.b16 %v292
    %v2058 = vunpack.c.h.b16 %v292
    %v2059 = vunpack.c.l.b16 %v293
    %v2060 = vunpack.c.h.b16 %v293
    %v2061 = vunpack.c.l.b16 %v294
    %v2062 = vunpack.c.h.b16 %v294
    %v2063 = vunpack.c.l.b16 %v295
    %v2064 = vunpack.c.h.b16 %v295
    %v2065 = vunpack.c.l.b16 %v296
    %v2066 = vunpack.c.h.b16 %v296
    %v2067 = vunpack.c.l.b16 %v297
    %v2068 = vunpack.c.h.b16 %v297
    %v2069 = vunpack.c.l.b16 %v298
    %v2070 = vunpack.c.h.b16 %v298
    %v2071 = vunpack.c.l.b16 %v299
    %v2072 = vunpack.c.h.b16 %v299
    %v2073 = vunpack.c.l.b16 %v300
    %v2074 = vunpack.c.h.b16 %v300
    %v2075 = vunpack.c.l.b16 %v301
    %v2076 = vunpack.c.h.b16 %v301
    %v2077 = vunpack.c.l.b16 %v302
    %v2078 = vunpack.c.h.b16 %v302
    %v2079 = vunpack.c.l.b16 %v303
    %v2080 = vunpack.c.h.b16 %v303
    %v2081 = vunpack.c.l.b16 %v304
    %v2082 = vunpack.c.h.b16 %v304
    %v2083 = vunpack.c.l.b16 %v305
    %v2084 = vunpack.c.h.b16 %v305
    %v2085 = vunpack.c.l.b16 %v306
    %v2086 = vunpack.c.h.b16 %v306
    %v2087 = vunpack.c.l.b16 %v307
    %v2088 = vunpack.c.h.b16 %v307
    %v2089 = vunpack.c.l.b16 %v308
    %v2090 = vunpack.c.h.b16 %v308
    %v2091 = vunpack.c.l.b16 %v309
    %v2092 = vunpack.c.h.b16 %v309
    %v2093 = vunpack.c.l.b16 %v310
    %v2094 = vunpack.c.h.b16 %v310
    %v2095 = vunpack.c.l.b16 %v311
    %v2096 = vunpack.c.h.b16 %v311
    %v2097 = vunpack.c.l.b16 %v312
    %v2098 = vunpack.c.h.b16 %v312
    %v2099 = vunpack.c.l.b16 %v313
    %v2100 = vunpack.c.h.b16 %v313
    %v2101 = vunpack.c.l.b16 %v314
    %v2102 = vunpack.c.h.b16 %v314
    %v2103 = vunpack.c.l.b16 %v315
    %v2104 = vunpack.c.h.b16 %v315
    %v2105 = vunpack.c.l.b16 %v316
    %v2106 = vunpack.c.h.b16 %v316
    %v2107 = vunpack.c.l.b16 %v317
    %v2108 = vunpack.c.h.b16 %v317
    %v2109 = vunpack.c.l.b16 %v318
    %v2110 = vunpack.c.h.b16 %v318
    %v2111 = vunpack.c.l.b16 %v319
    %v2112 = vunpack.c.h.b16 %v319
    %v2113 = vunpack.c.l.b16 %v320
    %v2114 = vunpack.c.h.b16 %v320
    %v2115 = vunpack.c.l.b16 %v321
    %v2116 = vunpack.c.h.b16 %v321
    %v2117 = vunpack.c.l.b16 %v322
    %v2118 = vunpack.c.h.b16 %v322
    %v2119 = vunpack.c.l.b16 %v323
    %v2120 = vunpack.c.h.b16 %v323
    %v2121 = vunpack.c.l.b16 %v324
    %v2122 = vunpack.c.h.b16 %v324
    %v2123 = vunpack.c.l.b16 %v325
    %v2124 = vunpack.c.h.b16 %v325
    %v2125 = vunpack.c.l.b16 %v326
    %v2126 = vunpack.c.h.b16 %v326
    %v2127 = vunpack.c.l.b16 %v327
    %v2128 = vunpack.c.h.b16 %v327
    %v2129 = vunpack.c.l.b16 %v328
    %v2130 = vunpack.c.h.b16 %v328
    %v2131 = vunpack.c.l.b16 %v329
    %v2132 = vunpack.c.h.b16 %v329
    %v2133 = vunpack.c.l.b16 %v330
    %v2134 = vunpack.c.h.b16 %v330
    %v2135 = vunpack.c.l.b16 %v331
    %v2136 = vunpack.c.h.b16 %v331
    %v2137 = vunpack.c.l.b16 %v332
    %v2138 = vunpack.c.h.b16 %v332
    %v2139 = vunpack.c.l.b16 %v333
    %v2140 = vunpack.c.h.b16 %v333
    %v2141 = vunpack.c.l.b16 %v334
    %v2142 = vunpack.c.h.b16 %v334
    %v2143 = vunpack.c.l.b16 %v335
    %v2144 = vunpack.c.h.b16 %v335
    %v2145 = vunpack.c.l.b16 %v336
    %v2146 = vunpack.c.h.b16 %v336
    %v2147 = vunpack.c.l.b16 %v337
    %v2148 = vunpack.c.h.b16 %v337
    %v2149 = vunpack.c.l.b16 %v338
    %v2150 = vunpack.c.h.b16 %v338
    %v2151 = vunpack.c.l.b16 %v339
    %v2152 = vunpack.c.h.b16 %v339
    %v2153 = vunpack.c.l.b16 %v340
    %v2154 = vunpack.c.h.b16 %v340
    %v2155 = vunpack.c.l.b16 %v341
    %v2156 = vunpack.c.h.b16 %v341
    %v2157 = vunpack.c.l.b16 %v342
    %v2158 = vunpack.c.h.b16 %v342
    %v2159 = vunpack.c.l.b16 %v343
    %v2160 = vunpack.c.h.b16 %v343
    %v2161 = vunpack.c.l.b16 %v344
    %v2162 = vunpack.c.h.b16 %v344
    %v2163 = vunpack.c.l.b16 %v345
    %v2164 = vunpack.c.h.b16 %v345
    %v2165 = vunpack.c.l.b16 %v346
    %v2166 = vunpack.c.h.b16 %v346
    %v2167 = vunpack.c.l.b16 %v347
    %v2168 = vunpack.c.h.b16 %v347
    %v2169 = vunpack.c.l.b16 %v348
    %v2170 = vunpack.c.h.b16 %v348
    %v2171 = vunpack.c.l.b16 %v349
    %v2172 = vunpack.c.h.b16 %v349
    %v2173 = vunpack.c.l.b16 %v350
    %v2174 = vunpack.c.h.b16 %v350
    %v2175 = vunpack.c.l.b16 %v351
    %v2176 = vunpack.c.h.b16 %v351
    %v2177 = vunpack.c.l.b16 %v352
    %v2178 = vunpack.c.h.b16 %v352
    %v2179 = vunpack.c.l.b16 %v353
    %v2180 = vunpack.c.h.b16 %v353
    %v2181 = vunpack.c.l.b16 %v354
    %v2182 = vunpack.c.h.b16 %v354
    %v2183 = vunpack.c.l.b16 %v355
    %v2184 = vunpack.c.h.b16 %v355
    %v2185 = vunpack.c.l.b16 %v356
    %v2186 = vunpack.c.h.b16 %v356
    %v2187 = vunpack.c.l.b16 %v357
    %v2188 = vunpack.c.h.b16 %v357
    %v2189 = vunpack.c.l.b16 %v358
    %v2190 = vunpack.c.h.b16 %v358
    %v2191 = vunpack.c.l.b16 %v359
    %v2192 = vunpack.c.h.b16 %v359
    %v2193 = vunpack.c.l.b16 %v360
    %v2194 = vunpack.c.h.b16 %v360
    %v2195 = vunpack.c.l.b16 %v361
    %v2196 = vunpack.c.h.b16 %v361
    %v2197 = vunpack.c.l.b16 %v362
    %v2198 = vunpack.c.h.b16 %v362
    %v2199 = vunpack.c.l.b16 %v363
    %v2200 = vunpack.c.h.b16 %v363
    %v2201 = vunpack.c.l.b16 %v364
    %v2202 = vunpack.c.h.b16 %v364
    %v2203 = vunpack.c.l.b16 %v365
    %v2204 = vunpack.c.h.b16 %v365
    %v2205 = vunpack.c.l.b16 %v366
    %v2206 = vunpack.c.h.b16 %v366
    %v2207 = vunpack.c.l.b16 %v367
    %v2208 = vunpack.c.h.b16 %v367
    %v2209 = vunpack.c.l.b16 %v368
    %v2210 = vunpack.c.h.b16 %v368
    %v2211 = vunpack.c.l.b16 %v369
    %v2212 = vunpack.c.h.b16 %v369
    %v2213 = vunpack.c.l.b16 %v370
    %v2214 = vunpack.c.h.b16 %v370
    %v2215 = vunpack.c.l.b16 %v371
    %v2216 = vunpack.c.h.b16 %v371
    %v2217 = vunpack.c.l.b16 %v372
    %v2218 = vunpack.c.h.b16 %v372
    %v2219 = vunpack.c.l.b16 %v373
    %v2220 = vunpack.c.h.b16 %v373
    %v2221 = vunpack.c.l.b16 %v374
    %v2222 = vunpack.c.h.b16 %v374
    %v2223 = vunpack.c.l.b16 %v375
    %v2224 = vunpack.c.h.b16 %v375
    %v2225 = vunpack.c.l.b16 %v376
    %v2226 = vunpack.c.h.b16 %v376
    %v2227 = vunpack.c.l.b16 %v377
    %v2228 = vunpack.c.h.b16 %v377
    %v2229 = vunpack.c.l.b16 %v378
    %v2230 = vunpack.c.h.b16 %v378
    %v2231 = vunpack.c.l.b16 %v379
    %v2232 = vunpack.c.h.b16 %v379
    %v2233 = vunpack.c.l.b16 %v380
    %v2234 = vunpack.c.h.b16 %v380
    %v2235 = vunpack.c.l.b16 %v381
    %v2236 = vunpack.c.h.b16 %v381
    %v2237 = vunpack.c.l.b16 %v382
    %v2238 = vunpack.c.h.b16 %v382
    %v2239 = vunpack.c.l.b16 %v383
    %v2240 = vunpack.c.h.b16 %v383
    %v2241 = vunpack.c.l.b16 %v384
    %v2242 = vunpack.c.h.b16 %v384
    %v2243 = vunpack.c.l.b16 %v385
    %v2244 = vunpack.c.h.b16 %v385
    %v2245 = vunpack.c.l.b16 %v386
    %v2246 = vunpack.c.h.b16 %v386
    %v2247 = vunpack.c.l.b16 %v387
    %v2248 = vunpack.c.h.b16 %v387
    %v2249 = vunpack.c.l.b16 %v388
    %v2250 = vunpack.c.h.b16 %v388
    %v2251 = vunpack.c.l.b16 %v389
    %v2252 = vunpack.c.h.b16 %v389
    %v2253 = vunpack.c.l.b16 %v390
    %v2254 = vunpack.c.h.b16 %v390
    %v2255 = vunpack.c.l.b16 %v391
    %v2256 = vunpack.c.h.b16 %v391
    %v2257 = vunpack.c.l.b16 %v392
    %v2258 = vunpack.c.h.b16 %v392
    %v2259 = vunpack.c.l.b16 %v393
    %v2260 = vunpack.c.h.b16 %v393
    %v2261 = vunpack.c.l.b16 %v394
    %v2262 = vunpack.c.h.b16 %v394
    %v2263 = vunpack.c.l.b16 %v395
    %v2264 = vunpack.c.h.b16 %v395
    %v2265 = vunpack.c.l.b16 %v396
    %v2266 = vunpack.c.h.b16 %v396
    %v2267 = vunpack.c.l.b16 %v397
    %v2268 = vunpack.c.h.b16 %v397
    %v2269 = vunpack.c.l.b16 %v398
    %v2270 = vunpack.c.h.b16 %v398
    %v2271 = vunpack.c.l.b16 %v399
    %v2272 = vunpack.c.h.b16 %v399
    %v2273 = vunpack.c.l.b16 %v400
    %v2274 = vunpack.c.h.b16 %v400
    %v2275 = vunpack.c.l.b16 %v401
    %v2276 = vunpack.c.h.b16 %v401
    %v2277 = vunpack.c.l.b16 %v402
    %v2278 = vunpack.c.h.b16 %v402
    %v2279 = vunpack.c.l.b16 %v403
    %v2280 = vunpack.c.h.b16 %v403
    %v2281 = vunpack.c.l.b16 %v404
    %v2282 = vunpack.c.h.b16 %v404
    %v2283 = vunpack.c.l.b16 %v405
    %v2284 = vunpack.c.h.b16 %v405
    %v2285 = vunpack.c.l.b16 %v406
    %v2286 = vunpack.c.h.b16 %v406
    %v2287 = vunpack.c.l.b16 %v407
    %v2288 = vunpack.c.h.b16 %v407
    %v2289 = vunpack.c.l.b16 %v408
    %v2290 = vunpack.c.h.b16 %v408
    %v2291 = vunpack.c.l.b16 %v409
    %v2292 = vunpack.c.h.b16 %v409
    %v2293 = vunpack.c.l.b16 %v410
    %v2294 = vunpack.c.h.b16 %v410
    %v2295 = vunpack.c.l.b16 %v411
    %v2296 = vunpack.c.h.b16 %v411
    %v2297 = vunpack.c.l.b16 %v412
    %v2298 = vunpack.c.h.b16 %v412
    %v2299 = vunpack.c.l.b16 %v413
    %v2300 = vunpack.c.h.b16 %v413
    %v2301 = vunpack.c.l.b16 %v414
    %v2302 = vunpack.c.h.b16 %v414
    %v2303 = vunpack.c.l.b16 %v415
    %v2304 = vunpack.c.h.b16 %v415
    %v2305 = vunpack.c.l.b16 %v416
    %v2306 = vunpack.c.h.b16 %v416
    %v2307 = vunpack.c.l.b16 %v417
    %v2308 = vunpack.c.h.b16 %v417
    %v2309 = vunpack.c.l.b16 %v418
    %v2310 = vunpack.c.h.b16 %v418
    %v2311 = vunpack.c.l.b16 %v419
    %v2312 = vunpack.c.h.b16 %v419
    %v2313 = vunpack.c.l.b16 %v420
    %v2314 = vunpack.c.h.b16 %v420
    %v2315 = vunpack.c.l.b16 %v421
    %v2316 = vunpack.c.h.b16 %v421
    %v2317 = vunpack.c.l.b16 %v422
    %v2318 = vunpack.c.h.b16 %v422
    %v2319 = vunpack.c.l.b16 %v423
    %v2320 = vunpack.c.h.b16 %v423
    %v2321 = vunpack.c.l.b16 %v424
    %v2322 = vunpack.c.h.b16 %v424
    %v2323 = vunpack.c.l.b16 %v425
    %v2324 = vunpack.c.h.b16 %v425
    %v2325 = vunpack.c.l.b16 %v426
    %v2326 = vunpack.c.h.b16 %v426
    %v2327 = vunpack.c.l.b16 %v427
    %v2328 = vunpack.c.h.b16 %v427
    %v2329 = vunpack.c.l.b16 %v428
    %v2330 = vunpack.c.h.b16 %v428
    %v2331 = vunpack.c.l.b16 %v429
    %v2332 = vunpack.c.h.b16 %v429
    %v2333 = vunpack.c.l.b16 %v430
    %v2334 = vunpack.c.h.b16 %v430
    %v2335 = vunpack.c.l.b16 %v431
    %v2336 = vunpack.c.h.b16 %v431
    %v2337 = vunpack.c.l.b16 %v432
    %v2338 = vunpack.c.h.b16 %v432
    %v2339 = vunpack.c.l.b16 %v433
    %v2340 = vunpack.c.h.b16 %v433
    %v2341 = vunpack.c.l.b16 %v434
    %v2342 = vunpack.c.h.b16 %v434
    %v2343 = vunpack.c.l.b16 %v435
    %v2344 = vunpack.c.h.b16 %v435
    %v2345 = vunpack.c.l.b16 %v436
    %v2346 = vunpack.c.h.b16 %v436
    %v2347 = vunpack.c.l.b16 %v437
    %v2348 = vunpack.c.h.b16 %v437
    %v2349 = vunpack.c.l.b16 %v438
    %v2350 = vunpack.c.h.b16 %v438
    %v2351 = vunpack.c.l.b16 %v439
    %v2352 = vunpack.c.h.b16 %v439
    %v2353 = vunpack.c.l.b16 %v440
    %v2354 = vunpack.c.h.b16 %v440
    %v2355 = vunpack.c.l.b16 %v441
    %v2356 = vunpack.c.h.b16 %v441
    %v2357 = vunpack.c.l.b16 %v442
    %v2358 = vunpack.c.h.b16 %v442
    %v2359 = vunpack.c.l.b16 %v443
    %v2360 = vunpack.c.h.b16 %v443
    %v2361 = vunpack.c.l.b16 %v444
    %v2362 = vunpack.c.h.b16 %v444
    %v2363 = vunpack.c.l.b16 %v445
    %v2364 = vunpack.c.h.b16 %v445
    %v2365 = vunpack.c.l.b16 %v446
    %v2366 = vunpack.c.h.b16 %v446
    %v2367 = vunpack.c.l.b16 %v447
    %v2368 = vunpack.c.h.b16 %v447
    %v2369 = vunpack.c.l.b16 %v448
    %v2370 = vunpack.c.h.b16 %v448
    %v2371 = vunpack.c.l.b16 %v449
    %v2372 = vunpack.c.h.b16 %v449
    %v2373 = vunpack.c.l.b16 %v450
    %v2374 = vunpack.c.h.b16 %v450
    %v2375 = vunpack.c.l.b16 %v451
    %v2376 = vunpack.c.h.b16 %v451
    %v2377 = vunpack.c.l.b16 %v452
    %v2378 = vunpack.c.h.b16 %v452
    %v2379 = vunpack.c.l.b16 %v453
    %v2380 = vunpack.c.h.b16 %v453
    %v2381 = vunpack.c.l.b16 %v454
    %v2382 = vunpack.c.h.b16 %v454
    %v2383 = vunpack.c.l.b16 %v455
    %v2384 = vunpack.c.h.b16 %v455
    %v2385 = vunpack.c.l.b16 %v456
    %v2386 = vunpack.c.h.b16 %v456
    %v2387 = vunpack.c.l.b16 %v457
    %v2388 = vunpack.c.h.b16 %v457
    %v2389 = vunpack.c.l.b16 %v458
    %v2390 = vunpack.c.h.b16 %v458
    %v2391 = vunpack.c.l.b16 %v459
    %v2392 = vunpack.c.h.b16 %v459
    %v2393 = vunpack.c.l.b16 %v460
    %v2394 = vunpack.c.h.b16 %v460
    %v2395 = vunpack.c.l.b16 %v461
    %v2396 = vunpack.c.h.b16 %v461
    %v2397 = vunpack.c.l.b16 %v462
    %v2398 = vunpack.c.h.b16 %v462
    %v2399 = vunpack.c.l.b16 %v463
    %v2400 = vunpack.c.h.b16 %v463
    %v2401 = vunpack.c.l.b16 %v464
    %v2402 = vunpack.c.h.b16 %v464
    %v2403 = vunpack.c.l.b16 %v465
    %v2404 = vunpack.c.h.b16 %v465
    %v2405 = vunpack.c.l.b16 %v466
    %v2406 = vunpack.c.h.b16 %v466
    %v2407 = vunpack.c.l.b16 %v467
    %v2408 = vunpack.c.h.b16 %v467
    %v2409 = vunpack.c.l.b16 %v468
    %v2410 = vunpack.c.h.b16 %v468
    %v2411 = vunpack.c.l.b16 %v469
    %v2412 = vunpack.c.h.b16 %v469
    %v2413 = vunpack.c.l.b16 %v470
    %v2414 = vunpack.c.h.b16 %v470
    %v2415 = vunpack.c.l.b16 %v471
    %v2416 = vunpack.c.h.b16 %v471
    %v2417 = vunpack.c.l.b16 %v472
    %v2418 = vunpack.c.h.b16 %v472
    %v2419 = vunpack.c.l.b16 %v473
    %v2420 = vunpack.c.h.b16 %v473
    %v2421 = vunpack.c.l.b16 %v474
    %v2422 = vunpack.c.h.b16 %v474
    %v2423 = vunpack.c.l.b16 %v475
    %v2424 = vunpack.c.h.b16 %v475
    %v2425 = vunpack.c.l.b16 %v476
    %v2426 = vunpack.c.h.b16 %v476
    %v2427 = vunpack.c.l.b16 %v477
    %v2428 = vunpack.c.h.b16 %v477
    %v2429 = vunpack.c.l.b16 %v478
    %v2430 = vunpack.c.h.b16 %v478
    %v2431 = vunpack.c.l.b16 %v479
    %v2432 = vunpack.c.h.b16 %v479
    %v2433 = vunpack.c.l.b16 %v480
    %v2434 = vunpack.c.h.b16 %v480
    %v2435 = vunpack.c.l.b16 %v481
    %v2436 = vunpack.c.h.b16 %v481
    %v2437 = vunpack.c.l.b16 %v482
    %v2438 = vunpack.c.h.b16 %v482
    %v2439 = vunpack.c.l.b16 %v483
    %v2440 = vunpack.c.h.b16 %v483
    %v2441 = vunpack.c.l.b16 %v484
    %v2442 = vunpack.c.h.b16 %v484
    %v2443 = vunpack.c.l.b16 %v485
    %v2444 = vunpack.c.h.b16 %v485
    %v2445 = vunpack.c.l.b16 %v486
    %v2446 = vunpack.c.h.b16 %v486
    %v2447 = vunpack.c.l.b16 %v487
    %v2448 = vunpack.c.h.b16 %v487
    %v2449 = vunpack.c.l.b16 %v488
    %v2450 = vunpack.c.h.b16 %v488
    %v2451 = vunpack.c.l.b16 %v489
    %v2452 = vunpack.c.h.b16 %v489
    %v2453 = vunpack.c.l.b16 %v490
    %v2454 = vunpack.c.h.b16 %v490
    %v2455 = vunpack.c.l.b16 %v491
    %v2456 = vunpack.c.h.b16 %v491
    %v2457 = vunpack.c.l.b16 %v492
    %v2458 = vunpack.c.h.b16 %v492
    %v2459 = vunpack.c.l.b16 %v493
    %v2460 = vunpack.c.h.b16 %v493
    %v2461 = vunpack.c.l.b16 %v494
    %v2462 = vunpack.c.h.b16 %v494
    %v2463 = vunpack.c.l.b16 %v495
    %v2464 = vunpack.c.h.b16 %v495
    %v2465 = vunpack.c.l.b16 %v496
    %v2466 = vunpack.c.h.b16 %v496
    %v2467 = vunpack.c.l.b16 %v497
    %v2468 = vunpack.c.h.b16 %v497
    %v2469 = vunpack.c.l.b16 %v498
    %v2470 = vunpack.c.h.b16 %v498
    %v2471 = vunpack.c.l.b16 %v499
    %v2472 = vunpack.c.h.b16 %v499
    %v2473 = vunpack.c.l.b16 %v500
    %v2474 = vunpack.c.h.b16 %v500
    %v2475 = vunpack.c.l.b16 %v501
    %v2476 = vunpack.c.h.b16 %v501
    %v2477 = vunpack.c.l.b16 %v502
    %v2478 = vunpack.c.h.b16 %v502
    %v2479 = vunpack.c.l.b16 %v503
    %v2480 = vunpack.c.h.b16 %v503
    %v2481 = vunpack.c.l.b16 %v504
    %v2482 = vunpack.c.h.b16 %v504
    %v2483 = vunpack.c.l.b16 %v505
    %v2484 = vunpack.c.h.b16 %v505
    %v2485 = vunpack.c.l.b16 %v506
    %v2486 = vunpack.c.h.b16 %v506
    %v2487 = vunpack.c.l.b16 %v507
    %v2488 = vunpack.c.h.b16 %v507
    %v2489 = vunpack.c.l.b16 %v508
    %v2490 = vunpack.c.h.b16 %v508
    %v2491 = vunpack.c.l.b16 %v509
    %v2492 = vunpack.c.h.b16 %v509
    %v2493 = vunpack.c.l.b16 %v510
    %v2494 = vunpack.c.h.b16 %v510
    %v2495 = vunpack.c.l.b16 %v511
    %v2496 = vunpack.c.h.b16 %v511
    %v2497 = vunpack.c.l.b16 %v512
    %v2498 = vunpack.c.h.b16 %v512
    %v2499 = vunpack.c.l.b16 %v513
    %v2500 = vunpack.c.h.b16 %v513
    %v2501 = vunpack.c.l.b16 %v514
    %v2502 = vunpack.c.h.b16 %v514
    %v2503 = vunpack.c.l.b16 %v515
    %v2504 = vunpack.c.h.b16 %v515
    %v2505 = vunpack.c.l.b16 %v516
    %v2506 = vunpack.c.h.b16 %v516
    %v2507 = vunpack.c.l.b16 %v517
    %v2508 = vunpack.c.h.b16 %v517
    %v2509 = vunpack.c.l.b16 %v518
    %v2510 = vunpack.c.h.b16 %v518
    %v2511 = vunpack.c.l.b16 %v519
    %v2512 = vunpack.c.h.b16 %v519
    %v2513 = vunpack.c.l.b16 %v520
    %v2514 = vunpack.c.h.b16 %v520
    %v2515 = vunpack.c.l.b16 %v521
    %v2516 = vunpack.c.h.b16 %v521
    %v2517 = vunpack.c.l.b16 %v522
    %v2518 = vunpack.c.h.b16 %v522
    %v2519 = vunpack.c.l.b16 %v523
    %v2520 = vunpack.c.h.b16 %v523
    %v2521 = vunpack.c.l.b16 %v524
    %v2522 = vunpack.c.h.b16 %v524
    %v2523 = vunpack.c.l.b16 %v525
    %v2524 = vunpack.c.h.b16 %v525
    %v2525 = vunpack.c.l.b16 %v526
    %v2526 = vunpack.c.h.b16 %v526
    %v2527 = vunpack.c.l.b16 %v527
    %v2528 = vunpack.c.h.b16 %v527
    %v2529 = vunpack.c.l.b16 %v528
    %v2530 = vunpack.c.h.b16 %v528
    %v2531 = vunpack.c.l.b16 %v529
    %v2532 = vunpack.c.h.b16 %v529
    %v2533 = vunpack.c.l.b16 %v530
    %v2534 = vunpack.c.h.b16 %v530
    %v2535 = vunpack.c.l.b16 %v531
    %v2536 = vunpack.c.h.b16 %v531
    %v2537 = vunpack.c.l.b16 %v532
    %v2538 = vunpack.c.h.b16 %v532
    %v2539 = vunpack.c.l.b16 %v533
    %v2540 = vunpack.c.h.b16 %v533
    %v2541 = vunpack.c.l.b16 %v534
    %v2542 = vunpack.c.h.b16 %v534
    %v2543 = vunpack.c.l.b16 %v535
    %v2544 = vunpack.c.h.b16 %v535
    %v2545 = vunpack.c.l.b16 %v536
    %v2546 = vunpack.c.h.b16 %v536
    %v2547 = vunpack.c.l.b16 %v537
    %v2548 = vunpack.c.h.b16 %v537
    %v2549 = vunpack.c.l.b16 %v538
    %v2550 = vunpack.c.h.b16 %v538
    %v2551 = vunpack.c.l.b16 %v539
    %v2552 = vunpack.c.h.b16 %v539
    %v2553 = vunpack.c.l.b16 %v540
    %v2554 = vunpack.c.h.b16 %v540
    %v2555 = vunpack.c.l.b16 %v541
    %v2556 = vunpack.c.h.b16 %v541
    %v2557 = vunpack.c.l.b16 %v542
    %v2558 = vunpack.c.h.b16 %v542
    %v2559 = vunpack.c.l.b16 %v543
    %v2560 = vunpack.c.h.b16 %v543
    %v2561 = vunpack.c.l.b16 %v544
    %v2562 = vunpack.c.h.b16 %v544
    %v2563 = vunpack.c.l.b16 %v545
    %v2564 = vunpack.c.h.b16 %v545
    %v2565 = vunpack.c.l.b16 %v546
    %v2566 = vunpack.c.h.b16 %v546
    %v2567 = vunpack.c.l.b16 %v547
    %v2568 = vunpack.c.h.b16 %v547
    %v2569 = vunpack.c.l.b16 %v548
    %v2570 = vunpack.c.h.b16 %v548
    %v2571 = vunpack.c.l.b16 %v549
    %v2572 = vunpack.c.h.b16 %v549
    %v2573 = vunpack.c.l.b16 %v550
    %v2574 = vunpack.c.h.b16 %v550
    %v2575 = vunpack.c.l.b16 %v551
    %v2576 = vunpack.c.h.b16 %v551
    %v2577 = vunpack.c.l.b16 %v552
    %v2578 = vunpack.c.h.b16 %v552
    %v2579 = vunpack.c.l.b16 %v553
    %v2580 = vunpack.c.h.b16 %v553
    %v2581 = vunpack.c.l.b16 %v554
    %v2582 = vunpack.c.h.b16 %v554
    %v2583 = vunpack.c.l.b16 %v555
    %v2584 = vunpack.c.h.b16 %v555
    %v2585 = vunpack.c.l.b16 %v556
    %v2586 = vunpack.c.h.b16 %v556
    %v2587 = vunpack.c.l.b16 %v557
    %v2588 = vunpack.c.h.b16 %v557
    %v2589 = vunpack.c.l.b16 %v558
    %v2590 = vunpack.c.h.b16 %v558
    %v2591 = vunpack.c.l.b16 %v559
    %v2592 = vunpack.c.h.b16 %v559
    %v2593 = vunpack.c.l.b16 %v560
    %v2594 = vunpack.c.h.b16 %v560
    %v2595 = vunpack.c.l.b16 %v561
    %v2596 = vunpack.c.h.b16 %v561
    %v2597 = vunpack.c.l.b16 %v562
    %v2598 = vunpack.c.h.b16 %v562
    %v2599 = vunpack.c.l.b16 %v563
    %v2600 = vunpack.c.h.b16 %v563
    %v2601 = vunpack.c.l.b16 %v564
    %v2602 = vunpack.c.h.b16 %v564
    %v2603 = vunpack.c.l.b16 %v565
    %v2604 = vunpack.c.h.b16 %v565
    %v2605 = vunpack.c.l.b16 %v566
    %v2606 = vunpack.c.h.b16 %v566
    %v2607 = vunpack.c.l.b16 %v567
    %v2608 = vunpack.c.h.b16 %v567
    %v2609 = vunpack.c.l.b16 %v568
    %v2610 = vunpack.c.h.b16 %v568
    %v2611 = vunpack.c.l.b16 %v569
    %v2612 = vunpack.c.h.b16 %v569
    %v2613 = vunpack.c.l.b16 %v570
    %v2614 = vunpack.c.h.b16 %v570
    %v2615 = vunpack.c.l.b16 %v571
    %v2616 = vunpack.c.h.b16 %v571
    %v2617 = vunpack.c.l.b16 %v572
    %v2618 = vunpack.c.h.b16 %v572
    %v2619 = vunpack.c.l.b16 %v573
    %v2620 = vunpack.c.h.b16 %v573
    %v2621 = vunpack.c.l.b16 %v574
    %v2622 = vunpack.c.h.b16 %v574
    %v2623 = vunpack.c.l.b16 %v575
    %v2624 = vunpack.c.h.b16 %v575
    %v2625 = vunpack.c.l.b16 %v576
    %v2626 = vunpack.c.h.b16 %v576
    %v2627 = vunpack.c.l.b16 %v577
    %v2628 = vunpack.c.h.b16 %v577
    %v2629 = vunpack.c.l.b16 %v578
    %v2630 = vunpack.c.h.b16 %v578
    %v2631 = vunpack.c.l.b16 %v579
    %v2632 = vunpack.c.h.b16 %v579
    %v2633 = vunpack.c.l.b16 %v580
    %v2634 = vunpack.c.h.b16 %v580
    %v2635 = vunpack.c.l.b16 %v581
    %v2636 = vunpack.c.h.b16 %v581
    %v2637 = vunpack.c.l.b16 %v582
    %v2638 = vunpack.c.h.b16 %v582
    %v2639 = vunpack.c.l.b16 %v583
    %v2640 = vunpack.c.h.b16 %v583
    %v2641 = vunpack.c.l.b16 %v584
    %v2642 = vunpack.c.h.b16 %v584
    %v2643 = vunpack.c.l.b16 %v585
    %v2644 = vunpack.c.h.b16 %v585
    %v2645 = vunpack.c.l.b16 %v586
    %v2646 = vunpack.c.h.b16 %v586
    %v2647 = vunpack.c.l.b16 %v587
    %v2648 = vunpack.c.h.b16 %v587
    %v2649 = vunpack.c.l.b16 %v588
    %v2650 = vunpack.c.h.b16 %v588
    %v2651 = vunpack.c.l.b16 %v589
    %v2652 = vunpack.c.h.b16 %v589
    %v2653 = vunpack.c.l.b16 %v590
    %v2654 = vunpack.c.h.b16 %v590
    %v2655 = vunpack.c.l.b16 %v591
    %v2656 = vunpack.c.h.b16 %v591
    %v2657 = vunpack.c.l.b16 %v592
    %v2658 = vunpack.c.h.b16 %v592
    %v2659 = vunpack.c.l.b16 %v593
    %v2660 = vunpack.c.h.b16 %v593
    %v2661 = vunpack.c.l.b16 %v594
    %v2662 = vunpack.c.h.b16 %v594
    %v2663 = vunpack.c.l.b16 %v595
    %v2664 = vunpack.c.h.b16 %v595
    %v2665 = vunpack.c.l.b16 %v596
    %v2666 = vunpack.c.h.b16 %v596
    %v2667 = vunpack.c.l.b16 %v597
    %v2668 = vunpack.c.h.b16 %v597
    %v2669 = vunpack.c.l.b16 %v598
    %v2670 = vunpack.c.h.b16 %v598
    %v2671 = vunpack.c.l.b16 %v599
    %v2672 = vunpack.c.h.b16 %v599
    %v2673 = vunpack.c.l.b16 %v600
    %v2674 = vunpack.c.h.b16 %v600
    %v2675 = vunpack.c.l.b16 %v601
    %v2676 = vunpack.c.h.b16 %v601
    %v2677 = vunpack.c.l.b16 %v602
    %v2678 = vunpack.c.h.b16 %v602
    %v2679 = vunpack.c.l.b16 %v603
    %v2680 = vunpack.c.h.b16 %v603
    %v2681 = vunpack.c.l.b16 %v604
    %v2682 = vunpack.c.h.b16 %v604
    %v2683 = vunpack.c.l.b16 %v605
    %v2684 = vunpack.c.h.b16 %v605
    %v2685 = vunpack.c.l.b16 %v606
    %v2686 = vunpack.c.h.b16 %v606
    %v2687 = vunpack.c.l.b16 %v607
    %v2688 = vunpack.c.h.b16 %v607
    %v2689 = vunpack.c.l.b16 %v608
    %v2690 = vunpack.c.h.b16 %v608
    %v2691 = vunpack.c.l.b16 %v609
    %v2692 = vunpack.c.h.b16 %v609
    %v2693 = vunpack.c.l.b16 %v610
    %v2694 = vunpack.c.h.b16 %v610
    %v2695 = vunpack.c.l.b16 %v611
    %v2696 = vunpack.c.h.b16 %v611
    %v2697 = vunpack.c.l.b16 %v612
    %v2698 = vunpack.c.h.b16 %v612
    %v2699 = vunpack.c.l.b16 %v613
    %v2700 = vunpack.c.h.b16 %v613
    %v2701 = vunpack.c.l.b16 %v614
    %v2702 = vunpack.c.h.b16 %v614
    %v2703 = vunpack.c.l.b16 %v615
    %v2704 = vunpack.c.h.b16 %v615
    %v2705 = vunpack.c.l.b16 %v616
    %v2706 = vunpack.c.h.b16 %v616
    %v2707 = vunpack.c.l.b16 %v617
    %v2708 = vunpack.c.h.b16 %v617
    %v2709 = vunpack.c.l.b16 %v618
    %v2710 = vunpack.c.h.b16 %v618
    %v2711 = vunpack.c.l.b16 %v619
    %v2712 = vunpack.c.h.b16 %v619
    %v2713 = vunpack.c.l.b16 %v620
    %v2714 = vunpack.c.h.b16 %v620
    %v2715 = vunpack.c.l.b16 %v621
    %v2716 = vunpack.c.h.b16 %v621
    %v2717 = vunpack.c.l.b16 %v622
    %v2718 = vunpack.c.h.b16 %v622
    %v2719 = vunpack.c.l.b16 %v623
    %v2720 = vunpack.c.h.b16 %v623
    %v2721 = vunpack.c.l.b16 %v624
    %v2722 = vunpack.c.h.b16 %v624
    %v2723 = vunpack.c.l.b16 %v625
    %v2724 = vunpack.c.h.b16 %v625
    %v2725 = vunpack.c.l.b16 %v626
    %v2726 = vunpack.c.h.b16 %v626
    %v2727 = vunpack.c.l.b16 %v627
    %v2728 = vunpack.c.h.b16 %v627
    %v2729 = vunpack.c.l.b16 %v628
    %v2730 = vunpack.c.h.b16 %v628
    %v2731 = vunpack.c.l.b16 %v629
    %v2732 = vunpack.c.h.b16 %v629
    %v2733 = vunpack.c.l.b16 %v630
    %v2734 = vunpack.c.h.b16 %v630
    %v2735 = vunpack.c.l.b16 %v631
    %v2736 = vunpack.c.h.b16 %v631
    %v2737 = vunpack.c.l.b16 %v632
    %v2738 = vunpack.c.h.b16 %v632
    %v2739 = vunpack.c.l.b16 %v633
    %v2740 = vunpack.c.h.b16 %v633
    %v2741 = vunpack.c.l.b16 %v634
    %v2742 = vunpack.c.h.b16 %v634
    %v2743 = vunpack.c.l.b16 %v635
    %v2744 = vunpack.c.h.b16 %v635
    %v2745 = vunpack.c.l.b16 %v636
    %v2746 = vunpack.c.h.b16 %v636
    %v2747 = vunpack.c.l.b16 %v637
    %v2748 = vunpack.c.h.b16 %v637
    %v2749 = vunpack.c.l.b16 %v638
    %v2750 = vunpack.c.h.b16 %v638
    %v2751 = vunpack.c.l.b16 %v639
    %v2752 = vunpack.c.h.b16 %v639
    %v2753 = vunpack.c.l.b16 %v640
    %v2754 = vunpack.c.h.b16 %v640
    %v2755 = vunpack.c.l.b16 %v641
    %v2756 = vunpack.c.h.b16 %v641
    %v2757 = vunpack.c.l.b16 %v642
    %v2758 = vunpack.c.h.b16 %v642
    %v2759 = vunpack.c.l.b16 %v643
    %v2760 = vunpack.c.h.b16 %v643
    %v2761 = vunpack.c.l.b16 %v644
    %v2762 = vunpack.c.h.b16 %v644
    %v2763 = vunpack.c.l.b16 %v645
    %v2764 = vunpack.c.h.b16 %v645
    %v2765 = vunpack.c.l.b16 %v646
    %v2766 = vunpack.c.h.b16 %v646
    %v2767 = vunpack.c.l.b16 %v647
    %v2768 = vunpack.c.h.b16 %v647
    %v2769 = vunpack.c.l.b16 %v648
    %v2770 = vunpack.c.h.b16 %v648
    %v2771 = vunpack.c.l.b16 %v649
    %v2772 = vunpack.c.h.b16 %v649
    %v2773 = vunpack.c.l.b16 %v650
    %v2774 = vunpack.c.h.b16 %v650
    %v2775 = vunpack.c.l.b16 %v651
    %v2776 = vunpack.c.h.b16 %v651
    %v2777 = vunpack.c.l.b16 %v652
    %v2778 = vunpack.c.h.b16 %v652
    %v2779 = vunpack.c.l.b16 %v653
    %v2780 = vunpack.c.h.b16 %v653
    %v2781 = vunpack.c.l.b16 %v654
    %v2782 = vunpack.c.h.b16 %v654
    %v2783 = vunpack.c.l.b16 %v655
    %v2784 = vunpack.c.h.b16 %v655
    %v2785 = vunpack.c.l.b16 %v656
    %v2786 = vunpack.c.h.b16 %v656
    %v2787 = vunpack.c.l.b16 %v657
    %v2788 = vunpack.c.h.b16 %v657
    %v2789 = vunpack.c.l.b16 %v658
    %v2790 = vunpack.c.h.b16 %v658
    %v2791 = vunpack.c.l.b16 %v659
    %v2792 = vunpack.c.h.b16 %v659
    %v2793 = vunpack.c.l.b16 %v660
    %v2794 = vunpack.c.h.b16 %v660
    %v2795 = vunpack.c.l.b16 %v661
    %v2796 = vunpack.c.h.b16 %v661
    %v2797 = vunpack.c.l.b16 %v662
    %v2798 = vunpack.c.h.b16 %v662
    %v2799 = vunpack.c.l.b16 %v663
    %v2800 = vunpack.c.h.b16 %v663
    %v2801 = vunpack.c.l.b16 %v664
    %v2802 = vunpack.c.h.b16 %v664
    %v2803 = vunpack.c.l.b16 %v665
    %v2804 = vunpack.c.h.b16 %v665
    %v2805 = vunpack.c.l.b16 %v666
    %v2806 = vunpack.c.h.b16 %v666
    %v2807 = vunpack.c.l.b16 %v667
    %v2808 = vunpack.c.h.b16 %v667
    %v2809 = vunpack.c.l.b16 %v668
    %v2810 = vunpack.c.h.b16 %v668
    %v2811 = vunpack.c.l.b16 %v669
    %v2812 = vunpack.c.h.b16 %v669
    %v2813 = vunpack.c.l.b16 %v670
    %v2814 = vunpack.c.h.b16 %v670
    %v2815 = vunpack.c.l.b16 %v671
    %v2816 = vunpack.c.h.b16 %v671
    %v2817 = vunpack.c.l.b16 %v672
    %v2818 = vunpack.c.h.b16 %v672
    %v2819 = vunpack.c.l.b16 %v673
    %v2820 = vunpack.c.h.b16 %v673
    %v2821 = vunpack.c.l.b16 %v674
    %v2822 = vunpack.c.h.b16 %v674
    %v2823 = vunpack.c.l.b16 %v675
    %v2824 = vunpack.c.h.b16 %v675
    %v2825 = vunpack.c.l.b16 %v676
    %v2826 = vunpack.c.h.b16 %v676
    %v2827 = vunpack.c.l.b16 %v677
    %v2828 = vunpack.c.h.b16 %v677
    %v2829 = vunpack.c.l.b16 %v678
    %v2830 = vunpack.c.h.b16 %v678
    %v2831 = vunpack.c.l.b16 %v679
    %v2832 = vunpack.c.h.b16 %v679
    %v2833 = vunpack.c.l.b16 %v680
    %v2834 = vunpack.c.h.b16 %v680
    %v2835 = vunpack.c.l.b16 %v681
    %v2836 = vunpack.c.h.b16 %v681
    %v2837 = vunpack.c.l.b16 %v682
    %v2838 = vunpack.c.h.b16 %v682
    %v2839 = vunpack.c.l.b16 %v683
    %v2840 = vunpack.c.h.b16 %v683
    %v2841 = vunpack.c.l.b16 %v684
    %v2842 = vunpack.c.h.b16 %v684
    %v2843 = vunpack.c.l.b16 %v685
    %v2844 = vunpack.c.h.b16 %v685
    %v2845 = vunpack.c.l.b16 %v686
    %v2846 = vunpack.c.h.b16 %v686
    %v2847 = vunpack.c.l.b16 %v687
    %v2848 = vunpack.c.h.b16 %v687
    %v2849 = vunpack.c.l.b16 %v688
    %v2850 = vunpack.c.h.b16 %v688
    %v2851 = vunpack.c.l.b16 %v689
    %v2852 = vunpack.c.h.b16 %v689
    %v2853 = vunpack.c.l.b16 %v690
    %v2854 = vunpack.c.h.b16 %v690
    %v2855 = vunpack.c.l.b16 %v691
    %v2856 = vunpack.c.h.b16 %v691
    %v2857 = vunpack.c.l.b16 %v692
    %v2858 = vunpack.c.h.b16 %v692
    %v2859 = vunpack.c.l.b16 %v693
    %v2860 = vunpack.c.h.b16 %v693
    %v2861 = vunpack.c.l.b16 %v694
    %v2862 = vunpack.c.h.b16 %v694
    %v2863 = vunpack.c.l.b16 %v695
    %v2864 = vunpack.c.h.b16 %v695
    %v2865 = vunpack.c.l.b16 %v696
    %v2866 = vunpack.c.h.b16 %v696
    %v2867 = vunpack.c.l.b16 %v697
    %v2868 = vunpack.c.h.b16 %v697
    %v2869 = vunpack.c.l.b16 %v698
    %v2870 = vunpack.c.h.b16 %v698
    %v2871 = vunpack.c.l.b16 %v699
    %v2872 = vunpack.c.h.b16 %v699
    %v2873 = vunpack.c.l.b16 %v700
    %v2874 = vunpack.c.h.b16 %v700
    %v2875 = vunpack.c.l.b16 %v701
    %v2876 = vunpack.c.h.b16 %v701
    %v2877 = vunpack.c.l.b16 %v702
    %v2878 = vunpack.c.h.b16 %v702
    %v2879 = vunpack.c.l.b16 %v703
    %v2880 = vunpack.c.h.b16 %v703
    %v2881 = vunpack.c.l.b16 %v704
    %v2882 = vunpack.c.h.b16 %v704
    %v2883 = vunpack.c.l.b16 %v705
    %v2884 = vunpack.c.h.b16 %v705
    %v2885 = vunpack.c.l.b16 %v706
    %v2886 = vunpack.c.h.b16 %v706
    %v2887 = vunpack.c.l.b16 %v707
    %v2888 = vunpack.c.h.b16 %v707
    %v2889 = vunpack.c.l.b16 %v708
    %v2890 = vunpack.c.h.b16 %v708
    %v2891 = vunpack.c.l.b16 %v709
    %v2892 = vunpack.c.h.b16 %v709
    %v2893 = vunpack.c.l.b16 %v710
    %v2894 = vunpack.c.h.b16 %v710
    %v2895 = vunpack.c.l.b16 %v711
    %v2896 = vunpack.c.h.b16 %v711
    %v2897 = vunpack.c.l.b16 %v712
    %v2898 = vunpack.c.h.b16 %v712
    %v2899 = vunpack.c.l.b16 %v713
    %v2900 = vunpack.c.h.b16 %v713
    %v2901 = vunpack.c.l.b16 %v714
    %v2902 = vunpack.c.h.b16 %v714
    %v2903 = vunpack.c.l.b16 %v715
    %v2904 = vunpack.c.h.b16 %v715
    %v2905 = vunpack.c.l.b16 %v716
    %v2906 = vunpack.c.h.b16 %v716
    %v2907 = vunpack.c.l.b16 %v717
    %v2908 = vunpack.c.h.b16 %v717
    %v2909 = vunpack.c.l.b16 %v718
    %v2910 = vunpack.c.h.b16 %v718
    %v2911 = vunpack.c.l.b16 %v719
    %v2912 = vunpack.c.h.b16 %v719
    %v2913 = vunpack.c.l.b16 %v720
    %v2914 = vunpack.c.h.b16 %v720
    %v2915 = vunpack.c.l.b16 %v721
    %v2916 = vunpack.c.h.b16 %v721
    %v2917 = vunpack.c.l.b16 %v722
    %v2918 = vunpack.c.h.b16 %v722
    %v2919 = vunpack.c.l.b16 %v723
    %v2920 = vunpack.c.h.b16 %v723
    %v2921 = vunpack.c.l.b16 %v724
    %v2922 = vunpack.c.h.b16 %v724
    %v2923 = vunpack.c.l.b16 %v725
    %v2924 = vunpack.c.h.b16 %v725
    %v2925 = vunpack.c.l.b16 %v726
    %v2926 = vunpack.c.h.b16 %v726
    %v2927 = vunpack.c.l.b16 %v727
    %v2928 = vunpack.c.h.b16 %v727
    %v2929 = vunpack.c.l.b16 %v728
    %v2930 = vunpack.c.h.b16 %v728
    %v2931 = vunpack.c.l.b16 %v729
    %v2932 = vunpack.c.h.b16 %v729
    %v2933 = vunpack.c.l.b16 %v730
    %v2934 = vunpack.c.h.b16 %v730
    %v2935 = vunpack.c.l.b16 %v731
    %v2936 = vunpack.c.h.b16 %v731
    %v2937 = vunpack.c.l.b16 %v732
    %v2938 = vunpack.c.h.b16 %v732
    %v2939 = vunpack.c.l.b16 %v733
    %v2940 = vunpack.c.h.b16 %v733
    %v2941 = vunpack.c.l.b16 %v734
    %v2942 = vunpack.c.h.b16 %v734
    %v2943 = vunpack.c.l.b16 %v735
    %v2944 = vunpack.c.h.b16 %v735
    %v2945 = vunpack.c.l.b16 %v736
    %v2946 = vunpack.c.h.b16 %v736
    %v2947 = vunpack.c.l.b16 %v737
    %v2948 = vunpack.c.h.b16 %v737
    %v2949 = vunpack.c.l.b16 %v738
    %v2950 = vunpack.c.h.b16 %v738
    %v2951 = vunpack.c.l.b16 %v739
    %v2952 = vunpack.c.h.b16 %v739
    %v2953 = vunpack.c.l.b16 %v740
    %v2954 = vunpack.c.h.b16 %v740
    %v2955 = vunpack.c.l.b16 %v741
    %v2956 = vunpack.c.h.b16 %v741
    %v2957 = vunpack.c.l.b16 %v742
    %v2958 = vunpack.c.h.b16 %v742
    %v2959 = vunpack.c.l.b16 %v743
    %v2960 = vunpack.c.h.b16 %v743
    %v2961 = vunpack.c.l.b16 %v744
    %v2962 = vunpack.c.h.b16 %v744
    %v2963 = vunpack.c.l.b16 %v745
    %v2964 = vunpack.c.h.b16 %v745
    %v2965 = vunpack.c.l.b16 %v746
    %v2966 = vunpack.c.h.b16 %v746
    %v2967 = vunpack.c.l.b16 %v747
    %v2968 = vunpack.c.h.b16 %v747
    %v2969 = vunpack.c.l.b16 %v748
    %v2970 = vunpack.c.h.b16 %v748
    %v2971 = vunpack.c.l.b16 %v749
    %v2972 = vunpack.c.h.b16 %v749
    %v2973 = vunpack.c.l.b16 %v750
    %v2974 = vunpack.c.h.b16 %v750
    %v2975 = vunpack.c.l.b16 %v751
    %v2976 = vunpack.c.h.b16 %v751
    %v2977 = vunpack.c.l.b16 %v752
    %v2978 = vunpack.c.h.b16 %v752
    %v2979 = vunpack.c.l.b16 %v753
    %v2980 = vunpack.c.h.b16 %v753
    %v2981 = vunpack.c.l.b16 %v754
    %v2982 = vunpack.c.h.b16 %v754
    %v2983 = vunpack.c.l.b16 %v755
    %v2984 = vunpack.c.h.b16 %v755
    %v2985 = vunpack.c.l.b16 %v756
    %v2986 = vunpack.c.h.b16 %v756
    %v2987 = vunpack.c.l.b16 %v757
    %v2988 = vunpack.c.h.b16 %v757
    %v2989 = vunpack.c.l.b16 %v758
    %v2990 = vunpack.c.h.b16 %v758
    %v2991 = vunpack.c.l.b16 %v759
    %v2992 = vunpack.c.h.b16 %v759
    %v2993 = vunpack.c.l.b16 %v760
    %v2994 = vunpack.c.h.b16 %v760
    %v2995 = vunpack.c.l.b16 %v761
    %v2996 = vunpack.c.h.b16 %v761
    %v2997 = vunpack.c.l.b16 %v762
    %v2998 = vunpack.c.h.b16 %v762
    %v2999 = vunpack.c.l.b16 %v763
    %v3000 = vunpack.c.h.b16 %v763
    %v3001 = vunpack.c.l.b16 %v764
    %v3002 = vunpack.c.h.b16 %v764
    %v3003 = vunpack.c.l.b16 %v765
    %v3004 = vunpack.c.h.b16 %v765
    %v3005 = vunpack.c.l.b16 %v766
    %v3006 = vunpack.c.h.b16 %v766
    %v3007 = vunpack.c.l.b16 %v767
    %v3008 = vunpack.c.h.b16 %v767
    %v3009 = vunpack.c.l.b16 %v768
    %v3010 = vunpack.c.h.b16 %v768
    %v3011 = vunpack.c.l.b16 %v769
    %v3012 = vunpack.c.h.b16 %v769
    %v3013 = vunpack.c.l.b16 %v770
    %v3014 = vunpack.c.h.b16 %v770
    %v3015 = vunpack.c.l.b16 %v771
    %v3016 = vunpack.c.h.b16 %v771
    %v3017 = vunpack.c.l.b16 %v772
    %v3018 = vunpack.c.h.b16 %v772
    %v3019 = vunpack.c.l.b16 %v773
    %v3020 = vunpack.c.h.b16 %v773
    %v3021 = vunpack.c.l.b16 %v774
    %v3022 = vunpack.c.h.b16 %v774
    %v3023 = vunpack.c.l.b16 %v775
    %v3024 = vunpack.c.h.b16 %v775
    %v3025 = vunpack.c.l.b16 %v776
    %v3026 = vunpack.c.h.b16 %v776
    %v3027 = vunpack.c.l.b16 %v777
    %v3028 = vunpack.c.h.b16 %v777
    %v3029 = vunpack.c.l.b16 %v778
    %v3030 = vunpack.c.h.b16 %v778
    %v3031 = vunpack.c.l.b16 %v779
    %v3032 = vunpack.c.h.b16 %v779
    %v3033 = vunpack.c.l.b16 %v780
    %v3034 = vunpack.c.h.b16 %v780
    %v3035 = vunpack.c.l.b16 %v781
    %v3036 = vunpack.c.h.b16 %v781
    %v3037 = vunpack.c.l.b16 %v782
    %v3038 = vunpack.c.h.b16 %v782
    %v3039 = vunpack.c.l.b16 %v783
    %v3040 = vunpack.c.h.b16 %v783
    %v3041 = vunpack.c.l.b16 %v784
    %v3042 = vunpack.c.h.b16 %v784
    %v3043 = vunpack.c.l.b16 %v785
    %v3044 = vunpack.c.h.b16 %v785
    %v3045 = vunpack.c.l.b16 %v786
    %v3046 = vunpack.c.h.b16 %v786
    %v3047 = vunpack.c.l.b16 %v787
    %v3048 = vunpack.c.h.b16 %v787
    %v3049 = vunpack.c.l.b16 %v788
    %v3050 = vunpack.c.h.b16 %v788
    %v3051 = vunpack.c.l.b16 %v789
    %v3052 = vunpack.c.h.b16 %v789
    %v3053 = vunpack.c.l.b16 %v790
    %v3054 = vunpack.c.h.b16 %v790
    %v3055 = vunpack.c.l.b16 %v791
    %v3056 = vunpack.c.h.b16 %v791
    %v3057 = vunpack.c.l.b16 %v792
    %v3058 = vunpack.c.h.b16 %v792
    %v3059 = vunpack.c.l.b16 %v793
    %v3060 = vunpack.c.h.b16 %v793
    %v3061 = vunpack.c.l.b16 %v794
    %v3062 = vunpack.c.h.b16 %v794
    %v3063 = vunpack.c.l.b16 %v795
    %v3064 = vunpack.c.h.b16 %v795
    %v3065 = vunpack.c.l.b16 %v796
    %v3066 = vunpack.c.h.b16 %v796
    %v3067 = vunpack.c.l.b16 %v797
    %v3068 = vunpack.c.h.b16 %v797
    %v3069 = vunpack.c.l.b16 %v798
    %v3070 = vunpack.c.h.b16 %v798
    %v3071 = vunpack.c.l.b16 %v799
    %v3072 = vunpack.c.h.b16 %v799
    %v3073 = vunpack.c.l.b16 %v800
    %v3074 = vunpack.c.h.b16 %v800
    %v3075 = vunpack.c.l.b16 %v801
    %v3076 = vunpack.c.h.b16 %v801
    %v3077 = vunpack.c.l.b16 %v802
    %v3078 = vunpack.c.h.b16 %v802
    %v3079 = vunpack.c.l.b16 %v803
    %v3080 = vunpack.c.h.b16 %v803
    %v3081 = vunpack.c.l.b16 %v804
    %v3082 = vunpack.c.h.b16 %v804
    %v3083 = vunpack.c.l.b16 %v805
    %v3084 = vunpack.c.h.b16 %v805
    %v3085 = vunpack.c.l.b16 %v806
    %v3086 = vunpack.c.h.b16 %v806
    %v3087 = vunpack.c.l.b16 %v807
    %v3088 = vunpack.c.h.b16 %v807
    %v3089 = vunpack.c.l.b16 %v808
    %v3090 = vunpack.c.h.b16 %v808
    %v3091 = vunpack.c.l.b16 %v809
    %v3092 = vunpack.c.h.b16 %v809
    %v3093 = vunpack.c.l.b16 %v810
    %v3094 = vunpack.c.h.b16 %v810
    %v3095 = vunpack.c.l.b16 %v811
    %v3096 = vunpack.c.h.b16 %v811
    %v3097 = vunpack.c.l.b16 %v812
    %v3098 = vunpack.c.h.b16 %v812
    %v3099 = vunpack.c.l.b16 %v813
    %v3100 = vunpack.c.h.b16 %v813
    %v3101 = vunpack.c.l.b16 %v814
    %v3102 = vunpack.c.h.b16 %v814
    %v3103 = vunpack.c.l.b16 %v815
    %v3104 = vunpack.c.h.b16 %v815
    %v3105 = vunpack.c.l.b16 %v816
    %v3106 = vunpack.c.h.b16 %v816
    %v3107 = vunpack.c.l.b16 %v817
    %v3108 = vunpack.c.h.b16 %v817
    %v3109 = vunpack.c.l.b16 %v818
    %v3110 = vunpack.c.h.b16 %v818
    %v3111 = vunpack.c.l.b16 %v819
    %v3112 = vunpack.c.h.b16 %v819
    %v3113 = vunpack.c.l.b16 %v820
    %v3114 = vunpack.c.h.b16 %v820
    %v3115 = vunpack.c.l.b16 %v821
    %v3116 = vunpack.c.h.b16 %v821
    %v3117 = vunpack.c.l.b16 %v822
    %v3118 = vunpack.c.h.b16 %v822
    %v3119 = vunpack.c.l.b16 %v823
    %v3120 = vunpack.c.h.b16 %v823
    %v3121 = vunpack.c.l.b16 %v824
    %v3122 = vunpack.c.h.b16 %v824
    %v3123 = vunpack.c.l.b16 %v825
    %v3124 = vunpack.c.h.b16 %v825
    %v3125 = vunpack.c.l.b16 %v826
    %v3126 = vunpack.c.h.b16 %v826
    %v3127 = vunpack.c.l.b16 %v827
    %v3128 = vunpack.c.h.b16 %v827
    %v3129 = vunpack.c.l.b16 %v828
    %v3130 = vunpack.c.h.b16 %v828
    %v3131 = vunpack.c.l.b16 %v829
    %v3132 = vunpack.c.h.b16 %v829
    %v3133 = vunpack.c.l.b16 %v830
    %v3134 = vunpack.c.h.b16 %v830
    %v3135 = vunpack.c.l.b16 %v831
    %v3136 = vunpack.c.h.b16 %v831
    %v3137 = vunpack.c.l.b16 %v832
    %v3138 = vunpack.c.h.b16 %v832
    %v3139 = vunpack.c.l.b16 %v833
    %v3140 = vunpack.c.h.b16 %v833
    %v3141 = vunpack.c.l.b16 %v834
    %v3142 = vunpack.c.h.b16 %v834
    %v3143 = vunpack.c.l.b16 %v835
    %v3144 = vunpack.c.h.b16 %v835
    %v3145 = vunpack.c.l.b16 %v836
    %v3146 = vunpack.c.h.b16 %v836
    %v3147 = vunpack.c.l.b16 %v837
    %v3148 = vunpack.c.h.b16 %v837
    %v3149 = vunpack.c.l.b16 %v838
    %v3150 = vunpack.c.h.b16 %v838
    %v3151 = vunpack.c.l.b16 %v839
    %v3152 = vunpack.c.h.b16 %v839
    %v3153 = vunpack.c.l.b16 %v840
    %v3154 = vunpack.c.h.b16 %v840
    %v3155 = vunpack.c.l.b16 %v841
    %v3156 = vunpack.c.h.b16 %v841
    %v3157 = vunpack.c.l.b16 %v842
    %v3158 = vunpack.c.h.b16 %v842
    %v3159 = vunpack.c.l.b16 %v843
    %v3160 = vunpack.c.h.b16 %v843
    %v3161 = vunpack.c.l.b16 %v844
    %v3162 = vunpack.c.h.b16 %v844
    %v3163 = vunpack.c.l.b16 %v845
    %v3164 = vunpack.c.h.b16 %v845
    %v3165 = vunpack.c.l.b16 %v846
    %v3166 = vunpack.c.h.b16 %v846
    %v3167 = vunpack.c.l.b16 %v847
    %v3168 = vunpack.c.h.b16 %v847
    %v3169 = vunpack.c.l.b16 %v848
    %v3170 = vunpack.c.h.b16 %v848
    %v3171 = vunpack.c.l.b16 %v849
    %v3172 = vunpack.c.h.b16 %v849
    %v3173 = vunpack.c.l.b16 %v850
    %v3174 = vunpack.c.h.b16 %v850
    %v3175 = vunpack.c.l.b16 %v851
    %v3176 = vunpack.c.h.b16 %v851
    %v3177 = vunpack.c.l.b16 %v852
    %v3178 = vunpack.c.h.b16 %v852
    %v3179 = vunpack.c.l.b16 %v853
    %v3180 = vunpack.c.h.b16 %v853
    %v3181 = vunpack.c.l.b16 %v854
    %v3182 = vunpack.c.h.b16 %v854
    %v3183 = vunpack.c.l.b16 %v855
    %v3184 = vunpack.c.h.b16 %v855
    %v3185 = vunpack.c.l.b16 %v856
    %v3186 = vunpack.c.h.b16 %v856
    %v3187 = vunpack.c.l.b16 %v857
    %v3188 = vunpack.c.h.b16 %v857
    %v3189 = vunpack.c.l.b16 %v858
    %v3190 = vunpack.c.h.b16 %v858
    %v3191 = vunpack.c.l.b16 %v859
    %v3192 = vunpack.c.h.b16 %v859
    %v3193 = vunpack.c.l.b16 %v860
    %v3194 = vunpack.c.h.b16 %v860
    %v3195 = vunpack.c.l.b16 %v861
    %v3196 = vunpack.c.h.b16 %v861
    %v3197 = vunpack.c.l.b16 %v862
    %v3198 = vunpack.c.h.b16 %v862
    %v3199 = vunpack.c.l.b16 %v863
    %v3200 = vunpack.c.h.b16 %v863
    %v3201 = vunpack.c.l.b16 %v864
    %v3202 = vunpack.c.h.b16 %v864
    %v3203 = vunpack.c.l.b16 %v865
    %v3204 = vunpack.c.h.b16 %v865
    %v3205 = vunpack.c.l.b16 %v866
    %v3206 = vunpack.c.h.b16 %v866
    %v3207 = vunpack.c.l.b16 %v867
    %v3208 = vunpack.c.h.b16 %v867
    %v3209 = vunpack.c.l.b16 %v868
    %v3210 = vunpack.c.h.b16 %v868
    %v3211 = vunpack.c.l.b16 %v869
    %v3212 = vunpack.c.h.b16 %v869
    %v3213 = vunpack.c.l.b16 %v870
    %v3214 = vunpack.c.h.b16 %v870
    %v3215 = vunpack.c.l.b16 %v871
    %v3216 = vunpack.c.h.b16 %v871
    %v3217 = vunpack.c.l.b16 %v872
    %v3218 = vunpack.c.h.b16 %v872
    %v3219 = vpack.c.b16 %v1691, %v1683
    %v3220 = vpack.c.b16 %v1692, %v1684
    %v3221 = vpack.c.b16 %v1693, %v1685
    %v3222 = vpack.c.b16 %v1694, %v1686
    %v3223 = vpack.c.b16 %v1695, %v1687
    %v3224 = vpack.c.b16 %v1696, %v1688
    %v3225 = vpack.c.b16 %v1697, %v1689
    %v3226 = vpack.c.b16 %v1698, %v1690
    %v3227 = vpack.c.b16 %v1707, %v1699
    %v3228 = vpack.c.b16 %v1708, %v1700
    %v3229 = vpack.c.b16 %v1709, %v1701
    %v3230 = vpack.c.b16 %v1710, %v1702
    %v3231 = vpack.c.b16 %v1711, %v1703
    %v3232 = vpack.c.b16 %v1712, %v1704
    %v3233 = vpack.c.b16 %v1713, %v1705
    %v3234 = vpack.c.b16 %v1714, %v1706
    %v3235 = vpack.c.b16 %v1723, %v1715
    %v3236 = vpack.c.b16 %v1724, %v1716
    %v3237 = vpack.c.b16 %v1725, %v1717
    %v3238 = vpack.c.b16 %v1726, %v1718
    %v3239 = vpack.c.b16 %v1727, %v1719
    %v3240 = vpack.c.b16 %v1728, %v1720
    %v3241 = vpack.c.b16 %v1729, %v1721
    %v3242 = vpack.c.b16 %v1730, %v1722
    %v3243 = vpack.c.b16 %v1739, %v1731
    %v3244 = vpack.c.b16 %v1740, %v1732
    %v3245 = vpack.c.b16 %v1741, %v1733
    %v3246 = vpack.c.b16 %v1742, %v1734
    %v3247 = vpack.c.b16 %v1743, %v1735
    %v3248 = vpack.c.b16 %v1744, %v1736
    %v3249 = vpack.c.b16 %v1745, %v1737
    %v3250 = vpack.c.b16 %v1746, %v1738
    %v3251 = vpack.c.b16 %v1755, %v1747
    %v3252 = vpack.c.b16 %v1756, %v1748
    %v3253 = vpack.c.b16 %v1757, %v1749
    %v3254 = vpack.c.b16 %v1758, %v1750
    %v3255 = vpack.c.b16 %v1759, %v1751
    %v3256 = vpack.c.b16 %v1760, %v1752
    %v3257 = vpack.c.b16 %v1761, %v1753
    %v3258 = vpack.c.b16 %v1762, %v1754
    %v3259 = vpack.c.b16 %v1771, %v1763
    %v3260 = vpack.c.b16 %v1772, %v1764
    %v3261 = vpack.c.b16 %v1773, %v1765
    %v3262 = vpack.c.b16 %v1774, %v1766
    %v3263 = vpack.c.b16 %v1775, %v1767
    %v3264 = vpack.c.b16 %v1776, %v1768
    %v3265 = vpack.c.b16 %v1777, %v1769
    %v3266 = vpack.c.b16 %v1778, %v1770
    %v3267 = vpack.c.b16 %v1787, %v1779
    %v3268 = vpack.c.b16 %v1788, %v1780
    %v3269 = vpack.c.b16 %v1789, %v1781
    %v3270 = vpack.c.b16 %v1790, %v1782
    %v3271 = vpack.c.b16 %v1791, %v1783
    %v3272 = vpack.c.b16 %v1792, %v1784
    %v3273 = vpack.c.b16 %v1793, %v1785
    %v3274 = vpack.c.b16 %v1794, %v1786
    %v3275 = vpack.c.b16 %v1803, %v1795
    %v3276 = vpack.c.b16 %v1804, %v1796
    %v3277 = vpack.c.b16 %v1805, %v1797
    %v3278 = vpack.c.b16 %v1806, %v1798
    %v3279 = vpack.c.b16 %v1807, %v1799
    %v3280 = vpack.c.b16 %v1808, %v1800
    %v3281 = vpack.c.b16 %v1809, %v1801
    %v3282 = vpack.c.b16 %v1810, %v1802
    %v3283 = vpack.c.b16 %v1819, %v1811
    %v3284 = vpack.c.b16 %v1820, %v1812
    %v3285 = vpack.c.b16 %v1821, %v1813
    %v3286 = vpack.c.b16 %v1822, %v1814
    %v3287 = vpack.c.b16 %v1823, %v1815
    %v3288 = vpack.c.b16 %v1824, %v1816
    %v3289 = vpack.c.b16 %v1825, %v1817
    %v3290 = vpack.c.b16 %v1826, %v1818
    %v3291 = vpack.c.b16 %v1835, %v1827
    %v3292 = vpack.c.b16 %v1836, %v1828
    %v3293 = vpack.c.b16 %v1837, %v1829
    %v3294 = vpack.c.b16 %v1838, %v1830
    %v3295 = vpack.c.b16 %v1839, %v1831
    %v3296 = vpack.c.b16 %v1840, %v1832
    %v3297 = vpack.c.b16 %v1841, %v1833
    %v3298 = vpack.c.b16 %v1842, %v1834
    %v3299 = vpack.c.b16 %v1851, %v1843
    %v3300 = vpack.c.b16 %v1852, %v1844
    %v3301 = vpack.c.b16 %v1853, %v1845
    %v3302 = vpack.c.b16 %v1854, %v1846
    %v3303 = vpack.c.b16 %v1855, %v1847
    %v3304 = vpack.c.b16 %v1856, %v1848
    %v3305 = vpack.c.b16 %v1857, %v1849
    %v3306 = vpack.c.b16 %v1858, %v1850
    %v3307 = vpack.c.b16 %v1867, %v1859
    %v3308 = vpack.c.b16 %v1868, %v1860
    %v3309 = vpack.c.b16 %v1869, %v1861
    %v3310 = vpack.c.b16 %v1870, %v1862
    %v3311 = vpack.c.b16 %v1871, %v1863
    %v3312 = vpack.c.b16 %v1872, %v1864
    %v3313 = vpack.c.b16 %v1873, %v1865
    %v3314 = vpack.c.b16 %v1874, %v1866
    %v3315 = vpack.c.b16 %v1883, %v1875
    %v3316 = vpack.c.b16 %v1884, %v1876
    %v3317 = vpack.c.b16 %v1885, %v1877
    %v3318 = vpack.c.b16 %v1886, %v1878
    %v3319 = vpack.c.b16 %v1887, %v1879
    %v3320 = vpack.c.b16 %v1888, %v1880
    %v3321 = vpack.c.b16 %v1889, %v1881
    %v3322 = vpack.c.b16 %v1890, %v1882
    %v3323 = vpack.c.b16 %v1899, %v1891
    %v3324 = vpack.c.b16 %v1900, %v1892
    %v3325 = vpack.c.b16 %v1901, %v1893
    %v3326 = vpack.c.b16 %v1902, %v1894
    %v3327 = vpack.c.b16 %v1903, %v1895
    %v3328 = vpack.c.b16 %v1904, %v1896
    %v3329 = vpack.c.b16 %v1905, %v1897
    %v3330 = vpack.c.b16 %v1906, %v1898
    %v3331 = vpack.c.b16 %v1915, %v1907
    %v3332 = vpack.c.b16 %v1916, %v1908
    %v3333 = vpack.c.b16 %v1917, %v1909
    %v3334 = vpack.c.b16 %v1918, %v1910
    %v3335 = vpack.c.b16 %v1919, %v1911
    %v3336 = vpack.c.b16 %v1920, %v1912
    %v3337 = vpack.c.b16 %v1921, %v1913
    %v3338 = vpack.c.b16 %v1922, %v1914
    %v3339 = vpack.c.b16 %v1931, %v1923
    %v3340 = vpack.c.b16 %v1932, %v1924
    %v3341 = vpack.c.b16 %v1933, %v1925
    %v3342 = vpack.c.b16 %v1934, %v1926
    %v3343 = vpack.c.b16 %v1935, %v1927
    %v3344 = vpack.c.b16 %v1936, %v1928
    %v3345 = vpack.c.b16 %v1937, %v1929
    %v3346 = vpack.c.b16 %v1938, %v1930
    %v3347 = vpack.c.b16 %v1947, %v1939
    %v3348 = vpack.c.b16 %v1948, %v1940
    %v3349 = vpack.c.b16 %v1949, %v1941
    %v3350 = vpack.c.b16 %v1950, %v1942
    %v3351 = vpack.c.b16 %v1951, %v1943
    %v3352 = vpack.c.b16 %v1952, %v1944
    %v3353 = vpack.c.b16 %v1953, %v1945
    %v3354 = vpack.c.b16 %v1954, %v1946
    %v3355 = vpack.c.b16 %v1963, %v1955
    %v3356 = vpack.c.b16 %v1964, %v1956
    %v3357 = vpack.c.b16 %v1965, %v1957
    %v3358 = vpack.c.b16 %v1966, %v1958
    %v3359 = vpack.c.b16 %v1967, %v1959
    %v3360 = vpack.c.b16 %v1968, %v1960
    %v3361 = vpack.c.b16 %v1969, %v1961
    %v3362 = vpack.c.b16 %v1970, %v1962
    %v3363 = vpack.c.b16 %v1979, %v1971
    %v3364 = vpack.c.b16 %v1980, %v1972
    %v3365 = vpack.c.b16 %v1981, %v1973
    %v3366 = vpack.c.b16 %v1982, %v1974
    %v3367 = vpack.c.b16 %v1983, %v1975
    %v3368 = vpack.c.b16 %v1984, %v1976
    %v3369 = vpack.c.b16 %v1985, %v1977
    %v3370 = vpack.c.b16 %v1986, %v1978
    %v3371 = vpack.c.b16 %v1995, %v1987
    %v3372 = vpack.c.b16 %v1996, %v1988
    %v3373 = vpack.c.b16 %v1997, %v1989
    %v3374 = vpack.c.b16 %v1998, %v1990
    %v3375 = vpack.c.b16 %v1999, %v1991
    %v3376 = vpack.c.b16 %v2000, %v1992
    %v3377 = vpack.c.b16 %v2001, %v1993
    %v3378 = vpack.c.b16 %v2002, %v1994
    %v3379 = vpack.c.b16 %v2011, %v2003
    %v3380 = vpack.c.b16 %v2012, %v2004
    %v3381 = vpack.c.b16 %v2013, %v2005
    %v3382 = vpack.c.b16 %v2014, %v2006
    %v3383 = vpack.c.b16 %v2015, %v2007
    %v3384 = vpack.c.b16 %v2016, %v2008
    %v3385 = vpack.c.b16 %v2017, %v2009
    %v3386 = vpack.c.b16 %v2018, %v2010
    %v3387 = vpack.c.b16 %v2027, %v2019
    %v3388 = vpack.c.b16 %v2028, %v2020
    %v3389 = vpack.c.b16 %v2029, %v2021
    %v3390 = vpack.c.b16 %v2030, %v2022
    %v3391 = vpack.c.b16 %v2031, %v2023
    %v3392 = vpack.c.b16 %v2032, %v2024
    %v3393 = vpack.c.b16 %v2033, %v2025
    %v3394 = vpack.c.b16 %v2034, %v2026
    %v3395 = vpack.c.b16 %v2043, %v2035
    %v3396 = vpack.c.b16 %v2044, %v2036
    %v3397 = vpack.c.b16 %v2045, %v2037
    %v3398 = vpack.c.b16 %v2046, %v2038
    %v3399 = vpack.c.b16 %v2047, %v2039
    %v3400 = vpack.c.b16 %v2048, %v2040
    %v3401 = vpack.c.b16 %v2049, %v2041
    %v3402 = vpack.c.b16 %v2050, %v2042
    %v3403 = vpack.c.b16 %v2059, %v2051
    %v3404 = vpack.c.b16 %v2060, %v2052
    %v3405 = vpack.c.b16 %v2061, %v2053
    %v3406 = vpack.c.b16 %v2062, %v2054
    %v3407 = vpack.c.b16 %v2063, %v2055
    %v3408 = vpack.c.b16 %v2064, %v2056
    %v3409 = vpack.c.b16 %v2065, %v2057
    %v3410 = vpack.c.b16 %v2066, %v2058
    %v3411 = vpack.c.b16 %v2075, %v2067
    %v3412 = vpack.c.b16 %v2076, %v2068
    %v3413 = vpack.c.b16 %v2077, %v2069
    %v3414 = vpack.c.b16 %v2078, %v2070
    %v3415 = vpack.c.b16 %v2079, %v2071
    %v3416 = vpack.c.b16 %v2080, %v2072
    %v3417 = vpack.c.b16 %v2081, %v2073
    %v3418 = vpack.c.b16 %v2082, %v2074
    %v3419 = vpack.c.b16 %v2091, %v2083
    %v3420 = vpack.c.b16 %v2092, %v2084
    %v3421 = vpack.c.b16 %v2093, %v2085
    %v3422 = vpack.c.b16 %v2094, %v2086
    %v3423 = vpack.c.b16 %v2095, %v2087
    %v3424 = vpack.c.b16 %v2096, %v2088
    %v3425 = vpack.c.b16 %v2097, %v2089
    %v3426 = vpack.c.b16 %v2098, %v2090
    %v3427 = vpack.c.b16 %v2107, %v2099
    %v3428 = vpack.c.b16 %v2108, %v2100
    %v3429 = vpack.c.b16 %v2109, %v2101
    %v3430 = vpack.c.b16 %v2110, %v2102
    %v3431 = vpack.c.b16 %v2111, %v2103
    %v3432 = vpack.c.b16 %v2112, %v2104
    %v3433 = vpack.c.b16 %v2113, %v2105
    %v3434 = vpack.c.b16 %v2114, %v2106
    %v3435 = vpack.c.b16 %v2123, %v2115
    %v3436 = vpack.c.b16 %v2124, %v2116
    %v3437 = vpack.c.b16 %v2125, %v2117
    %v3438 = vpack.c.b16 %v2126, %v2118
    %v3439 = vpack.c.b16 %v2127, %v2119
    %v3440 = vpack.c.b16 %v2128, %v2120
    %v3441 = vpack.c.b16 %v2129, %v2121
    %v3442 = vpack.c.b16 %v2130, %v2122
    %v3443 = vpack.c.b16 %v2139, %v2131
    %v3444 = vpack.c.b16 %v2140, %v2132
    %v3445 = vpack.c.b16 %v2141, %v2133
    %v3446 = vpack.c.b16 %v2142, %v2134
    %v3447 = vpack.c.b16 %v2143, %v2135
    %v3448 = vpack.c.b16 %v2144, %v2136
    %v3449 = vpack.c.b16 %v2145, %v2137
    %v3450 = vpack.c.b16 %v2146, %v2138
    %v3451 = vpack.c.b16 %v2155, %v2147
    %v3452 = vpack.c.b16 %v2156, %v2148
    %v3453 = vpack.c.b16 %v2157, %v2149
    %v3454 = vpack.c.b16 %v2158, %v2150
    %v3455 = vpack.c.b16 %v2159, %v2151
    %v3456 = vpack.c.b16 %v2160, %v2152
    %v3457 = vpack.c.b16 %v2161, %v2153
    %v3458 = vpack.c.b16 %v2162, %v2154
    %v3459 = vpack.c.b16 %v2171, %v2163
    %v3460 = vpack.c.b16 %v2172, %v2164
    %v3461 = vpack.c.b16 %v2173, %v2165
    %v3462 = vpack.c.b16 %v2174, %v2166
    %v3463 = vpack.c.b16 %v2175, %v2167
    %v3464 = vpack.c.b16 %v2176, %v2168
    %v3465 = vpack.c.b16 %v2177, %v2169
    %v3466 = vpack.c.b16 %v2178, %v2170
    %v3467 = vpack.c.b16 %v2187, %v2179
    %v3468 = vpack.c.b16 %v2188, %v2180
    %v3469 = vpack.c.b16 %v2189, %v2181
    %v3470 = vpack.c.b16 %v2190, %v2182
    %v3471 = vpack.c.b16 %v2191, %v2183
    %v3472 = vpack.c.b16 %v2192, %v2184
    %v3473 = vpack.c.b16 %v2193, %v2185
    %v3474 = vpack.c.b16 %v2194, %v2186
    %v3475 = vpack.c.b16 %v2203, %v2195
    %v3476 = vpack.c.b16 %v2204, %v2196
    %v3477 = vpack.c.b16 %v2205, %v2197
    %v3478 = vpack.c.b16 %v2206, %v2198
    %v3479 = vpack.c.b16 %v2207, %v2199
    %v3480 = vpack.c.b16 %v2208, %v2200
    %v3481 = vpack.c.b16 %v2209, %v2201
    %v3482 = vpack.c.b16 %v2210, %v2202
    %v3483 = vpack.c.b16 %v2219, %v2211
    %v3484 = vpack.c.b16 %v2220, %v2212
    %v3485 = vpack.c.b16 %v2221, %v2213
    %v3486 = vpack.c.b16 %v2222, %v2214
    %v3487 = vpack.c.b16 %v2223, %v2215
    %v3488 = vpack.c.b16 %v2224, %v2216
    %v3489 = vpack.c.b16 %v2225, %v2217
    %v3490 = vpack.c.b16 %v2226, %v2218
    %v3491 = vpack.c.b16 %v2235, %v2227
    %v3492 = vpack.c.b16 %v2236, %v2228
    %v3493 = vpack.c.b16 %v2237, %v2229
    %v3494 = vpack.c.b16 %v2238, %v2230
    %v3495 = vpack.c.b16 %v2239, %v2231
    %v3496 = vpack.c.b16 %v2240, %v2232
    %v3497 = vpack.c.b16 %v2241, %v2233
    %v3498 = vpack.c.b16 %v2242, %v2234
    %v3499 = vpack.c.b16 %v2251, %v2243
    %v3500 = vpack.c.b16 %v2252, %v2244
    %v3501 = vpack.c.b16 %v2253, %v2245
    %v3502 = vpack.c.b16 %v2254, %v2246
    %v3503 = vpack.c.b16 %v2255, %v2247
    %v3504 = vpack.c.b16 %v2256, %v2248
    %v3505 = vpack.c.b16 %v2257, %v2249
    %v3506 = vpack.c.b16 %v2258, %v2250
    %v3507 = vpack.c.b16 %v2267, %v2259
    %v3508 = vpack.c.b16 %v2268, %v2260
    %v3509 = vpack.c.b16 %v2269, %v2261
    %v3510 = vpack.c.b16 %v2270, %v2262
    %v3511 = vpack.c.b16 %v2271, %v2263
    %v3512 = vpack.c.b16 %v2272, %v2264
    %v3513 = vpack.c.b16 %v2273, %v2265
    %v3514 = vpack.c.b16 %v2274, %v2266
    %v3515 = vpack.c.b16 %v2283, %v2275
    %v3516 = vpack.c.b16 %v2284, %v2276
    %v3517 = vpack.c.b16 %v2285, %v2277
    %v3518 = vpack.c.b16 %v2286, %v2278
    %v3519 = vpack.c.b16 %v2287, %v2279
    %v3520 = vpack.c.b16 %v2288, %v2280
    %v3521 = vpack.c.b16 %v2289, %v2281
    %v3522 = vpack.c.b16 %v2290, %v2282
    %v3523 = vpack.c.b16 %v2299, %v2291
    %v3524 = vpack.c.b16 %v2300, %v2292
    %v3525 = vpack.c.b16 %v2301, %v2293
    %v3526 = vpack.c.b16 %v2302, %v2294
    %v3527 = vpack.c.b16 %v2303, %v2295
    %v3528 = vpack.c.b16 %v2304, %v2296
    %v3529 = vpack.c.b16 %v2305, %v2297
    %v3530 = vpack.c.b16 %v2306, %v2298
    %v3531 = vpack.c.b16 %v2315, %v2307
    %v3532 = vpack.c.b16 %v2316, %v2308
    %v3533 = vpack.c.b16 %v2317, %v2309
    %v3534 = vpack.c.b16 %v2318, %v2310
    %v3535 = vpack.c.b16 %v2319, %v2311
    %v3536 = vpack.c.b16 %v2320, %v2312
    %v3537 = vpack.c.b16 %v2321, %v2313
    %v3538 = vpack.c.b16 %v2322, %v2314
    %v3539 = vpack.c.b16 %v2331, %v2323
    %v3540 = vpack.c.b16 %v2332, %v2324
    %v3541 = vpack.c.b16 %v2333, %v2325
    %v3542 = vpack.c.b16 %v2334, %v2326
    %v3543 = vpack.c.b16 %v2335, %v2327
    %v3544 = vpack.c.b16 %v2336, %v2328
    %v3545 = vpack.c.b16 %v2337, %v2329
    %v3546 = vpack.c.b16 %v2338, %v2330
    %v3547 = vpack.c.b16 %v2347, %v2339
    %v3548 = vpack.c.b16 %v2348, %v2340
    %v3549 = vpack.c.b16 %v2349, %v2341
    %v3550 = vpack.c.b16 %v2350, %v2342
    %v3551 = vpack.c.b16 %v2351, %v2343
    %v3552 = vpack.c.b16 %v2352, %v2344
    %v3553 = vpack.c.b16 %v2353, %v2345
    %v3554 = vpack.c.b16 %v2354, %v2346
    %v3555 = vpack.c.b16 %v2363, %v2355
    %v3556 = vpack.c.b16 %v2364, %v2356
    %v3557 = vpack.c.b16 %v2365, %v2357
    %v3558 = vpack.c.b16 %v2366, %v2358
    %v3559 = vpack.c.b16 %v2367, %v2359
    %v3560 = vpack.c.b16 %v2368, %v2360
    %v3561 = vpack.c.b16 %v2369, %v2361
    %v3562 = vpack.c.b16 %v2370, %v2362
    %v3563 = vpack.c.b16 %v2379, %v2371
    %v3564 = vpack.c.b16 %v2380, %v2372
    %v3565 = vpack.c.b16 %v2381, %v2373
    %v3566 = vpack.c.b16 %v2382, %v2374
    %v3567 = vpack.c.b16 %v2383, %v2375
    %v3568 = vpack.c.b16 %v2384, %v2376
    %v3569 = vpack.c.b16 %v2385, %v2377
    %v3570 = vpack.c.b16 %v2386, %v2378
    %v3571 = vpack.c.b16 %v2395, %v2387
    %v3572 = vpack.c.b16 %v2396, %v2388
    %v3573 = vpack.c.b16 %v2397, %v2389
    %v3574 = vpack.c.b16 %v2398, %v2390
    %v3575 = vpack.c.b16 %v2399, %v2391
    %v3576 = vpack.c.b16 %v2400, %v2392
    %v3577 = vpack.c.b16 %v2401, %v2393
    %v3578 = vpack.c.b16 %v2402, %v2394
    %v3579 = vpack.c.b16 %v2411, %v2403
    %v3580 = vpack.c.b16 %v2412, %v2404
    %v3581 = vpack.c.b16 %v2413, %v2405
    %v3582 = vpack.c.b16 %v2414, %v2406
    %v3583 = vpack.c.b16 %v2415, %v2407
    %v3584 = vpack.c.b16 %v2416, %v2408
    %v3585 = vpack.c.b16 %v2417, %v2409
    %v3586 = vpack.c.b16 %v2418, %v2410
    %v3587 = vpack.c.b16 %v2427, %v2419
    %v3588 = vpack.c.b16 %v2428, %v2420
    %v3589 = vpack.c.b16 %v2429, %v2421
    %v3590 = vpack.c.b16 %v2430, %v2422
    %v3591 = vpack.c.b16 %v2431, %v2423
    %v3592 = vpack.c.b16 %v2432, %v2424
    %v3593 = vpack.c.b16 %v2433, %v2425
    %v3594 = vpack.c.b16 %v2434, %v2426
    %v3595 = vpack.c.b16 %v2443, %v2435
    %v3596 = vpack.c.b16 %v2444, %v2436
    %v3597 = vpack.c.b16 %v2445, %v2437
    %v3598 = vpack.c.b16 %v2446, %v2438
    %v3599 = vpack.c.b16 %v2447, %v2439
    %v3600 = vpack.c.b16 %v2448, %v2440
    %v3601 = vpack.c.b16 %v2449, %v2441
    %v3602 = vpack.c.b16 %v2450, %v2442
    %v3603 = vpack.c.b16 %v2459, %v2451
    %v3604 = vpack.c.b16 %v2460, %v2452
    %v3605 = vpack.c.b16 %v2461, %v2453
    %v3606 = vpack.c.b16 %v2462, %v2454
    %v3607 = vpack.c.b16 %v2463, %v2455
    %v3608 = vpack.c.b16 %v2464, %v2456
    %v3609 = vpack.c.b16 %v2465, %v2457
    %v3610 = vpack.c.b16 %v2466, %v2458
    %v3611 = vpack.c.b16 %v2475, %v2467
    %v3612 = vpack.c.b16 %v2476, %v2468
    %v3613 = vpack.c.b16 %v2477, %v2469
    %v3614 = vpack.c.b16 %v2478, %v2470
    %v3615 = vpack.c.b16 %v2479, %v2471
    %v3616 = vpack.c.b16 %v2480, %v2472
    %v3617 = vpack.c.b16 %v2481, %v2473
    %v3618 = vpack.c.b16 %v2482, %v2474
    %v3619 = vpack.c.b16 %v2491, %v2483
    %v3620 = vpack.c.b16 %v2492, %v2484
    %v3621 = vpack.c.b16 %v2493, %v2485
    %v3622 = vpack.c.b16 %v2494, %v2486
    %v3623 = vpack.c.b16 %v2495, %v2487
    %v3624 = vpack.c.b16 %v2496, %v2488
    %v3625 = vpack.c.b16 %v2497, %v2489
    %v3626 = vpack.c.b16 %v2498, %v2490
    %v3627 = vpack.c.b16 %v2507, %v2499
    %v3628 = vpack.c.b16 %v2508, %v2500
    %v3629 = vpack.c.b16 %v2509, %v2501
    %v3630 = vpack.c.b16 %v2510, %v2502
    %v3631 = vpack.c.b16 %v2511, %v2503
    %v3632 = vpack.c.b16 %v2512, %v2504
    %v3633 = vpack.c.b16 %v2513, %v2505
    %v3634 = vpack.c.b16 %v2514, %v2506
    %v3635 = vpack.c.b16 %v2523, %v2515
    %v3636 = vpack.c.b16 %v2524, %v2516
    %v3637 = vpack.c.b16 %v2525, %v2517
    %v3638 = vpack.c.b16 %v2526, %v2518
    %v3639 = vpack.c.b16 %v2527, %v2519
    %v3640 = vpack.c.b16 %v2528, %v2520
    %v3641 = vpack.c.b16 %v2529, %v2521
    %v3642 = vpack.c.b16 %v2530, %v2522
    %v3643 = vpack.c.b16 %v2539, %v2531
    %v3644 = vpack.c.b16 %v2540, %v2532
    %v3645 = vpack.c.b16 %v2541, %v2533
    %v3646 = vpack.c.b16 %v2542, %v2534
    %v3647 = vpack.c.b16 %v2543, %v2535
    %v3648 = vpack.c.b16 %v2544, %v2536
    %v3649 = vpack.c.b16 %v2545, %v2537
    %v3650 = vpack.c.b16 %v2546, %v2538
    %v3651 = vpack.c.b16 %v2555, %v2547
    %v3652 = vpack.c.b16 %v2556, %v2548
    %v3653 = vpack.c.b16 %v2557, %v2549
    %v3654 = vpack.c.b16 %v2558, %v2550
    %v3655 = vpack.c.b16 %v2559, %v2551
    %v3656 = vpack.c.b16 %v2560, %v2552
    %v3657 = vpack.c.b16 %v2561, %v2553
    %v3658 = vpack.c.b16 %v2562, %v2554
    %v3659 = vpack.c.b16 %v2571, %v2563
    %v3660 = vpack.c.b16 %v2572, %v2564
    %v3661 = vpack.c.b16 %v2573, %v2565
    %v3662 = vpack.c.b16 %v2574, %v2566
    %v3663 = vpack.c.b16 %v2575, %v2567
    %v3664 = vpack.c.b16 %v2576, %v2568
    %v3665 = vpack.c.b16 %v2577, %v2569
    %v3666 = vpack.c.b16 %v2578, %v2570
    %v3667 = vpack.c.b16 %v2587, %v2579
    %v3668 = vpack.c.b16 %v2588, %v2580
    %v3669 = vpack.c.b16 %v2589, %v2581
    %v3670 = vpack.c.b16 %v2590, %v2582
    %v3671 = vpack.c.b16 %v2591, %v2583
    %v3672 = vpack.c.b16 %v2592, %v2584
    %v3673 = vpack.c.b16 %v2593, %v2585
    %v3674 = vpack.c.b16 %v2594, %v2586
    %v3675 = vpack.c.b16 %v2603, %v2595
    %v3676 = vpack.c.b16 %v2604, %v2596
    %v3677 = vpack.c.b16 %v2605, %v2597
    %v3678 = vpack.c.b16 %v2606, %v2598
    %v3679 = vpack.c.b16 %v2607, %v2599
    %v3680 = vpack.c.b16 %v2608, %v2600
    %v3681 = vpack.c.b16 %v2609, %v2601
    %v3682 = vpack.c.b16 %v2610, %v2602
    %v3683 = vpack.c.b16 %v2619, %v2611
    %v3684 = vpack.c.b16 %v2620, %v2612
    %v3685 = vpack.c.b16 %v2621, %v2613
    %v3686 = vpack.c.b16 %v2622, %v2614
    %v3687 = vpack.c.b16 %v2623, %v2615
    %v3688 = vpack.c.b16 %v2624, %v2616
    %v3689 = vpack.c.b16 %v2625, %v2617
    %v3690 = vpack.c.b16 %v2626, %v2618
    %v3691 = vpack.c.b16 %v2635, %v2627
    %v3692 = vpack.c.b16 %v2636, %v2628
    %v3693 = vpack.c.b16 %v2637, %v2629
    %v3694 = vpack.c.b16 %v2638, %v2630
    %v3695 = vpack.c.b16 %v2639, %v2631
    %v3696 = vpack.c.b16 %v2640, %v2632
    %v3697 = vpack.c.b16 %v2641, %v2633
    %v3698 = vpack.c.b16 %v2642, %v2634
    %v3699 = vpack.c.b16 %v2651, %v2643
    %v3700 = vpack.c.b16 %v2652, %v2644
    %v3701 = vpack.c.b16 %v2653, %v2645
    %v3702 = vpack.c.b16 %v2654, %v2646
    %v3703 = vpack.c.b16 %v2655, %v2647
    %v3704 = vpack.c.b16 %v2656, %v2648
    %v3705 = vpack.c.b16 %v2657, %v2649
    %v3706 = vpack.c.b16 %v2658, %v2650
    %v3707 = vpack.c.b16 %v2667, %v2659
    %v3708 = vpack.c.b16 %v2668, %v2660
    %v3709 = vpack.c.b16 %v2669, %v2661
    %v3710 = vpack.c.b16 %v2670, %v2662
    %v3711 = vpack.c.b16 %v2671, %v2663
    %v3712 = vpack.c.b16 %v2672, %v2664
    %v3713 = vpack.c.b16 %v2673, %v2665
    %v3714 = vpack.c.b16 %v2674, %v2666
    %v3715 = vpack.c.b16 %v2683, %v2675
    %v3716 = vpack.c.b16 %v2684, %v2676
    %v3717 = vpack.c.b16 %v2685, %v2677
    %v3718 = vpack.c.b16 %v2686, %v2678
    %v3719 = vpack.c.b16 %v2687, %v2679
    %v3720 = vpack.c.b16 %v2688, %v2680
    %v3721 = vpack.c.b16 %v2689, %v2681
    %v3722 = vpack.c.b16 %v2690, %v2682
    %v3723 = vpack.c.b16 %v2699, %v2691
    %v3724 = vpack.c.b16 %v2700, %v2692
    %v3725 = vpack.c.b16 %v2701, %v2693
    %v3726 = vpack.c.b16 %v2702, %v2694
    %v3727 = vpack.c.b16 %v2703, %v2695
    %v3728 = vpack.c.b16 %v2704, %v2696
    %v3729 = vpack.c.b16 %v2705, %v2697
    %v3730 = vpack.c.b16 %v2706, %v2698
    %v3731 = vpack.c.b16 %v2715, %v2707
    %v3732 = vpack.c.b16 %v2716, %v2708
    %v3733 = vpack.c.b16 %v2717, %v2709
    %v3734 = vpack.c.b16 %v2718, %v2710
    %v3735 = vpack.c.b16 %v2719, %v2711
    %v3736 = vpack.c.b16 %v2720, %v2712
    %v3737 = vpack.c.b16 %v2721, %v2713
    %v3738 = vpack.c.b16 %v2722, %v2714
    %v3739 = vpack.c.b16 %v2731, %v2723
    %v3740 = vpack.c.b16 %v2732, %v2724
    %v3741 = vpack.c.b16 %v2733, %v2725
    %v3742 = vpack.c.b16 %v2734, %v2726
    %v3743 = vpack.c.b16 %v2735, %v2727
    %v3744 = vpack.c.b16 %v2736, %v2728
    %v3745 = vpack.c.b16 %v2737, %v2729
    %v3746 = vpack.c.b16 %v2738, %v2730
    %v3747 = vpack.c.b16 %v2747, %v2739
    %v3748 = vpack.c.b16 %v2748, %v2740
    %v3749 = vpack.c.b16 %v2749, %v2741
    %v3750 = vpack.c.b16 %v2750, %v2742
    %v3751 = vpack.c.b16 %v2751, %v2743
    %v3752 = vpack.c.b16 %v2752, %v2744
    %v3753 = vpack.c.b16 %v2753, %v2745
    %v3754 = vpack.c.b16 %v2754, %v2746
    %v3755 = vpack.c.b16 %v2763, %v2755
    %v3756 = vpack.c.b16 %v2764, %v2756
    %v3757 = vpack.c.b16 %v2765, %v2757
    %v3758 = vpack.c.b16 %v2766, %v2758
    %v3759 = vpack.c.b16 %v2767, %v2759
    %v3760 = vpack.c.b16 %v2768, %v2760
    %v3761 = vpack.c.b16 %v2769, %v2761
    %v3762 = vpack.c.b16 %v2770, %v2762
    %v3763 = vpack.c.b16 %v2779, %v2771
    %v3764 = vpack.c.b16 %v2780, %v2772
    %v3765 = vpack.c.b16 %v2781, %v2773
    %v3766 = vpack.c.b16 %v2782, %v2774
    %v3767 = vpack.c.b16 %v2783, %v2775
    %v3768 = vpack.c.b16 %v2784, %v2776
    %v3769 = vpack.c.b16 %v2785, %v2777
    %v3770 = vpack.c.b16 %v2786, %v2778
    %v3771 = vpack.c.b16 %v2795, %v2787
    %v3772 = vpack.c.b16 %v2796, %v2788
    %v3773 = vpack.c.b16 %v2797, %v2789
    %v3774 = vpack.c.b16 %v2798, %v2790
    %v3775 = vpack.c.b16 %v2799, %v2791
    %v3776 = vpack.c.b16 %v2800, %v2792
    %v3777 = vpack.c.b16 %v2801, %v2793
    %v3778 = vpack.c.b16 %v2802, %v2794
    %v3779 = vpack.c.b16 %v2811, %v2803
    %v3780 = vpack.c.b16 %v2812, %v2804
    %v3781 = vpack.c.b16 %v2813, %v2805
    %v3782 = vpack.c.b16 %v2814, %v2806
    %v3783 = vpack.c.b16 %v2815, %v2807
    %v3784 = vpack.c.b16 %v2816, %v2808
    %v3785 = vpack.c.b16 %v2817, %v2809
    %v3786 = vpack.c.b16 %v2818, %v2810
    %v3787 = vpack.c.b16 %v2827, %v2819
    %v3788 = vpack.c.b16 %v2828, %v2820
    %v3789 = vpack.c.b16 %v2829, %v2821
    %v3790 = vpack.c.b16 %v2830, %v2822
    %v3791 = vpack.c.b16 %v2831, %v2823
    %v3792 = vpack.c.b16 %v2832, %v2824
    %v3793 = vpack.c.b16 %v2833, %v2825
    %v3794 = vpack.c.b16 %v2834, %v2826
    %v3795 = vpack.c.b16 %v2843, %v2835
    %v3796 = vpack.c.b16 %v2844, %v2836
    %v3797 = vpack.c.b16 %v2845, %v2837
    %v3798 = vpack.c.b16 %v2846, %v2838
    %v3799 = vpack.c.b16 %v2847, %v2839
    %v3800 = vpack.c.b16 %v2848, %v2840
    %v3801 = vpack.c.b16 %v2849, %v2841
    %v3802 = vpack.c.b16 %v2850, %v2842
    %v3803 = vpack.c.b16 %v2859, %v2851
    %v3804 = vpack.c.b16 %v2860, %v2852
    %v3805 = vpack.c.b16 %v2861, %v2853
    %v3806 = vpack.c.b16 %v2862, %v2854
    %v3807 = vpack.c.b16 %v2863, %v2855
    %v3808 = vpack.c.b16 %v2864, %v2856
    %v3809 = vpack.c.b16 %v2865, %v2857
    %v3810 = vpack.c.b16 %v2866, %v2858
    %v3811 = vpack.c.b16 %v2875, %v2867
    %v3812 = vpack.c.b16 %v2876, %v2868
    %v3813 = vpack.c.b16 %v2877, %v2869
    %v3814 = vpack.c.b16 %v2878, %v2870
    %v3815 = vpack.c.b16 %v2879, %v2871
    %v3816 = vpack.c.b16 %v2880, %v2872
    %v3817 = vpack.c.b16 %v2881, %v2873
    %v3818 = vpack.c.b16 %v2882, %v2874
    %v3819 = vpack.c.b16 %v2891, %v2883
    %v3820 = vpack.c.b16 %v2892, %v2884
    %v3821 = vpack.c.b16 %v2893, %v2885
    %v3822 = vpack.c.b16 %v2894, %v2886
    %v3823 = vpack.c.b16 %v2895, %v2887
    %v3824 = vpack.c.b16 %v2896, %v2888
    %v3825 = vpack.c.b16 %v2897, %v2889
    %v3826 = vpack.c.b16 %v2898, %v2890
    %v3827 = vpack.c.b16 %v2907, %v2899
    %v3828 = vpack.c.b16 %v2908, %v2900
    %v3829 = vpack.c.b16 %v2909, %v2901
    %v3830 = vpack.c.b16 %v2910, %v2902
    %v3831 = vpack.c.b16 %v2911, %v2903
    %v3832 = vpack.c.b16 %v2912, %v2904
    %v3833 = vpack.c.b16 %v2913, %v2905
    %v3834 = vpack.c.b16 %v2914, %v2906
    %v3835 = vpack.c.b16 %v2923, %v2915
    %v3836 = vpack.c.b16 %v2924, %v2916
    %v3837 = vpack.c.b16 %v2925, %v2917
    %v3838 = vpack.c.b16 %v2926, %v2918
    %v3839 = vpack.c.b16 %v2927, %v2919
    %v3840 = vpack.c.b16 %v2928, %v2920
    %v3841 = vpack.c.b16 %v2929, %v2921
    %v3842 = vpack.c.b16 %v2930, %v2922
    %v3843 = vpack.c.b16 %v2939, %v2931
    %v3844 = vpack.c.b16 %v2940, %v2932
    %v3845 = vpack.c.b16 %v2941, %v2933
    %v3846 = vpack.c.b16 %v2942, %v2934
    %v3847 = vpack.c.b16 %v2943, %v2935
    %v3848 = vpack.c.b16 %v2944, %v2936
    %v3849 = vpack.c.b16 %v2945, %v2937
    %v3850 = vpack.c.b16 %v2946, %v2938
    %v3851 = vpack.c.b16 %v2955, %v2947
    %v3852 = vpack.c.b16 %v2956, %v2948
    %v3853 = vpack.c.b16 %v2957, %v2949
    %v3854 = vpack.c.b16 %v2958, %v2950
    %v3855 = vpack.c.b16 %v2959, %v2951
    %v3856 = vpack.c.b16 %v2960, %v2952
    %v3857 = vpack.c.b16 %v2961, %v2953
    %v3858 = vpack.c.b16 %v2962, %v2954
    %v3859 = vpack.c.b16 %v2971, %v2963
    %v3860 = vpack.c.b16 %v2972, %v2964
    %v3861 = vpack.c.b16 %v2973, %v2965
    %v3862 = vpack.c.b16 %v2974, %v2966
    %v3863 = vpack.c.b16 %v2975, %v2967
    %v3864 = vpack.c.b16 %v2976, %v2968
    %v3865 = vpack.c.b16 %v2977, %v2969
    %v3866 = vpack.c.b16 %v2978, %v2970
    %v3867 = vpack.c.b16 %v2987, %v2979
    %v3868 = vpack.c.b16 %v2988, %v2980
    %v3869 = vpack.c.b16 %v2989, %v2981
    %v3870 = vpack.c.b16 %v2990, %v2982
    %v3871 = vpack.c.b16 %v2991, %v2983
    %v3872 = vpack.c.b16 %v2992, %v2984
    %v3873 = vpack.c.b16 %v2993, %v2985
    %v3874 = vpack.c.b16 %v2994, %v2986
    %v3875 = vpack.c.b16 %v3003, %v2995
    %v3876 = vpack.c.b16 %v3004, %v2996
    %v3877 = vpack.c.b16 %v3005, %v2997
    %v3878 = vpack.c.b16 %v3006, %v2998
    %v3879 = vpack.c.b16 %v3007, %v2999
    %v3880 = vpack.c.b16 %v3008, %v3000
    %v3881 = vpack.c.b16 %v3009, %v3001
    %v3882 = vpack.c.b16 %v3010, %v3002
    %v3883 = vpack.c.b16 %v3019, %v3011
    %v3884 = vpack.c.b16 %v3020, %v3012
    %v3885 = vpack.c.b16 %v3021, %v3013
    %v3886 = vpack.c.b16 %v3022, %v3014
    %v3887 = vpack.c.b16 %v3023, %v3015
    %v3888 = vpack.c.b16 %v3024, %v3016
    %v3889 = vpack.c.b16 %v3025, %v3017
    %v3890 = vpack.c.b16 %v3026, %v3018
    %v3891 = vpack.c.b16 %v3035, %v3027
    %v3892 = vpack.c.b16 %v3036, %v3028
    %v3893 = vpack.c.b16 %v3037, %v3029
    %v3894 = vpack.c.b16 %v3038, %v3030
    %v3895 = vpack.c.b16 %v3039, %v3031
    %v3896 = vpack.c.b16 %v3040, %v3032
    %v3897 = vpack.c.b16 %v3041, %v3033
    %v3898 = vpack.c.b16 %v3042, %v3034
    %v3899 = vpack.c.b16 %v3051, %v3043
    %v3900 = vpack.c.b16 %v3052, %v3044
    %v3901 = vpack.c.b16 %v3053, %v3045
    %v3902 = vpack.c.b16 %v3054, %v3046
    %v3903 = vpack.c.b16 %v3055, %v3047
    %v3904 = vpack.c.b16 %v3056, %v3048
    %v3905 = vpack.c.b16 %v3057, %v3049
    %v3906 = vpack.c.b16 %v3058, %v3050
    %v3907 = vpack.c.b16 %v3067, %v3059
    %v3908 = vpack.c.b16 %v3068, %v3060
    %v3909 = vpack.c.b16 %v3069, %v3061
    %v3910 = vpack.c.b16 %v3070, %v3062
    %v3911 = vpack.c.b16 %v3071, %v3063
    %v3912 = vpack.c.b16 %v3072, %v3064
    %v3913 = vpack.c.b16 %v3073, %v3065
    %v3914 = vpack.c.b16 %v3074, %v3066
    %v3915 = vpack.c.b16 %v3083, %v3075
    %v3916 = vpack.c.b16 %v3084, %v3076
    %v3917 = vpack.c.b16 %v3085, %v3077
    %v3918 = vpack.c.b16 %v3086, %v3078
    %v3919 = vpack.c.b16 %v3087, %v3079
    %v3920 = vpack.c.b16 %v3088, %v3080
    %v3921 = vpack.c.b16 %v3089, %v3081
    %v3922 = vpack.c.b16 %v3090, %v3082
    %v3923 = vpack.c.b16 %v3099, %v3091
    %v3924 = vpack.c.b16 %v3100, %v3092
    %v3925 = vpack.c.b16 %v3101, %v3093
    %v3926 = vpack.c.b16 %v3102, %v3094
    %v3927 = vpack.c.b16 %v3103, %v3095
    %v3928 = vpack.c.b16 %v3104, %v3096
    %v3929 = vpack.c.b16 %v3105, %v3097
    %v3930 = vpack.c.b16 %v3106, %v3098
    %v3931 = vpack.c.b16 %v3115, %v3107
    %v3932 = vpack.c.b16 %v3116, %v3108
    %v3933 = vpack.c.b16 %v3117, %v3109
    %v3934 = vpack.c.b16 %v3118, %v3110
    %v3935 = vpack.c.b16 %v3119, %v3111
    %v3936 = vpack.c.b16 %v3120, %v3112
    %v3937 = vpack.c.b16 %v3121, %v3113
    %v3938 = vpack.c.b16 %v3122, %v3114
    %v3939 = vpack.c.b16 %v3131, %v3123
    %v3940 = vpack.c.b16 %v3132, %v3124
    %v3941 = vpack.c.b16 %v3133, %v3125
    %v3942 = vpack.c.b16 %v3134, %v3126
    %v3943 = vpack.c.b16 %v3135, %v3127
    %v3944 = vpack.c.b16 %v3136, %v3128
    %v3945 = vpack.c.b16 %v3137, %v3129
    %v3946 = vpack.c.b16 %v3138, %v3130
    %v3947 = vpack.c.b16 %v3147, %v3139
    %v3948 = vpack.c.b16 %v3148, %v3140
    %v3949 = vpack.c.b16 %v3149, %v3141
    %v3950 = vpack.c.b16 %v3150, %v3142
    %v3951 = vpack.c.b16 %v3151, %v3143
    %v3952 = vpack.c.b16 %v3152, %v3144
    %v3953 = vpack.c.b16 %v3153, %v3145
    %v3954 = vpack.c.b16 %v3154, %v3146
    %v3955 = vpack.c.b16 %v3163, %v3155
    %v3956 = vpack.c.b16 %v3164, %v3156
    %v3957 = vpack.c.b16 %v3165, %v3157
    %v3958 = vpack.c.b16 %v3166, %v3158
    %v3959 = vpack.c.b16 %v3167, %v3159
    %v3960 = vpack.c.b16 %v3168, %v3160
    %v3961 = vpack.c.b16 %v3169, %v3161
    %v3962 = vpack.c.b16 %v3170, %v3162
    %v3963 = vpack.c.b16 %v3179, %v3171
    %v3964 = vpack.c.b16 %v3180, %v3172
    %v3965 = vpack.c.b16 %v3181, %v3173
    %v3966 = vpack.c.b16 %v3182, %v3174
    %v3967 = vpack.c.b16 %v3183, %v3175
    %v3968 = vpack.c.b16 %v3184, %v3176
    %v3969 = vpack.c.b16 %v3185, %v3177
    %v3970 = vpack.c.b16 %v3186, %v3178
    %v3971 = vpack.c.b16 %v3195, %v3187
    %v3972 = vpack.c.b16 %v3196, %v3188
    %v3973 = vpack.c.b16 %v3197, %v3189
    %v3974 = vpack.c.b16 %v3198, %v3190
    %v3975 = vpack.c.b16 %v3199, %v3191
    %v3976 = vpack.c.b16 %v3200, %v3192
    %v3977 = vpack.c.b16 %v3201, %v3193
    %v3978 = vpack.c.b16 %v3202, %v3194
    %v3979 = vpack.c.b16 %v3211, %v3203
    %v3980 = vpack.c.b16 %v3212, %v3204
    %v3981 = vpack.c.b16 %v3213, %v3205
    %v3982 = vpack.c.b16 %v3214, %v3206
    %v3983 = vpack.c.b16 %v3215, %v3207
    %v3984 = vpack.c.b16 %v3216, %v3208
    %v3985 = vpack.c.b16 %v3217, %v3209
    %v3986 = vpack.c.b16 %v3218, %v3210
    %4755 = vmatprep.subr.bf16.mxu0 %v3220
    %4756 = vmatpush1.bf16.msra.mxu0 %v3219
    %4757 = vmatprep.subr.bf16.mxu0 %v3228
    %4758 = vmatpush1.bf16.msra.mxu0 %v3227
    %4759 = vmatprep.subr.bf16.mxu0 %v3236
    %4760 = vmatpush1.bf16.msra.mxu0 %v3235
    %4761 = vmatprep.subr.bf16.mxu0 %v3244
    %4762 = vmatpush1.bf16.msra.mxu0 %v3243
    %4763 = vmatprep.subr.bf16.mxu0 %v3252
    %4764 = vmatpush1.bf16.msra.mxu0 %v3251
    %4765 = vmatprep.subr.bf16.mxu0 %v3260
    %4766 = vmatpush1.bf16.msra.mxu0 %v3259
    %4767 = vmatprep.subr.bf16.mxu0 %v3268
    %4768 = vmatpush1.bf16.msra.mxu0 %v3267
    %4769 = vmatprep.subr.bf16.mxu0 %v3276
    %4770 = vmatpush1.bf16.msra.mxu0 %v3275
    %4771 = vmatprep.subr.bf16.mxu0 %v3284
    %4772 = vmatpush1.bf16.msra.mxu0 %v3283
    %4773 = vmatprep.subr.bf16.mxu0 %v3292
    %4774 = vmatpush1.bf16.msra.mxu0 %v3291
    %4775 = vmatprep.subr.bf16.mxu0 %v3300
    %4776 = vmatpush1.bf16.msra.mxu0 %v3299
    %4777 = vmatprep.subr.bf16.mxu0 %v3308
    %4778 = vmatpush1.bf16.msra.mxu0 %v3307
    %4779 = vmatprep.subr.bf16.mxu0 %v3316
    %4780 = vmatpush1.bf16.msra.mxu0 %v3315
    %4781 = vmatprep.subr.bf16.mxu0 %v3324
    %4782 = vmatpush1.bf16.msra.mxu0 %v3323
    %4783 = vmatprep.subr.bf16.mxu0 %v3332
    %4784 = vmatpush1.bf16.msra.mxu0 %v3331
    %4785 = vmatprep.subr.bf16.mxu0 %v3340
    %4786 = vmatpush1.bf16.msra.mxu0 %v3339
    %4787 = vmatprep.mubr.bf16.mxu0 %v892
    %4788 = vmatmul.mubr.bf16.gmra.mrb[0].mxu0 %v891
    %v4789 = vpop.f32.mrb[0].mxu0
    %v4790 = vadd.f32 0.0, %v4789
    %v4791 = vpop.f32.mrb[0].mxu0
    %v4792 = vadd.f32 0.0, %v4791
    %v4793 = vpop.f32.mrb[0].mxu0
    %v4794 = vpop.f32.mrb[0].mxu0
    %4795 = vdwg.mxu0
    %4796 = vmatprep.subr.bf16.mxu0 %v3348
    %4797 = vmatpush1.bf16.msra.mxu0 %v3347
    %4798 = vmatprep.subr.bf16.mxu0 %v3356
    %4799 = vmatpush1.bf16.msra.mxu0 %v3355
    %4800 = vmatprep.subr.bf16.mxu0 %v3364
    %4801 = vmatpush1.bf16.msra.mxu0 %v3363
    %4802 = vmatprep.subr.bf16.mxu0 %v3372
    %4803 = vmatpush1.bf16.msra.mxu0 %v3371
    %4804 = vmatprep.subr.bf16.mxu0 %v3380
    %4805 = vmatpush1.bf16.msra.mxu0 %v3379
    %4806 = vmatprep.subr.bf16.mxu0 %v3388
    %4807 = vmatpush1.bf16.msra.mxu0 %v3387
    %4808 = vmatprep.subr.bf16.mxu0 %v3396
    %4809 = vmatpush1.bf16.msra.mxu0 %v3395
    %4810 = vmatprep.subr.bf16.mxu0 %v3404
    %4811 = vmatpush1.bf16.msra.mxu0 %v3403
    %4812 = vmatprep.subr.bf16.mxu0 %v3412
    %4813 = vmatpush1.bf16.msra.mxu0 %v3411
    %4814 = vmatprep.subr.bf16.mxu0 %v3420
    %4815 = vmatpush1.bf16.msra.mxu0 %v3419
    %4816 = vmatprep.subr.bf16.mxu0 %v3428
    %4817 = vmatpush1.bf16.msra.mxu0 %v3427
    %4818 = vmatprep.subr.bf16.mxu0 %v3436
    %4819 = vmatpush1.bf16.msra.mxu0 %v3435
    %4820 = vmatprep.subr.bf16.mxu0 %v3444
    %4821 = vmatpush1.bf16.msra.mxu0 %v3443
    %4822 = vmatprep.subr.bf16.mxu0 %v3452
    %4823 = vmatpush1.bf16.msra.mxu0 %v3451
    %4824 = vmatprep.subr.bf16.mxu0 %v3460
    %4825 = vmatpush1.bf16.msra.mxu0 %v3459
    %4826 = vmatprep.subr.bf16.mxu0 %v3468
    %4827 = vmatpush1.bf16.msra.mxu0 %v3467
    %4828 = vmatprep.mubr.bf16.mxu0 %v894
    %4829 = vmatmul.mubr.bf16.gmra.mrb[0].mxu0 %v893
    %v4830 = vpop.f32.mrb[0].mxu0
    %v4831 = vadd.f32 %v4790, %v4830
    %v4832 = vpop.f32.mrb[0].mxu0
    %v4833 = vadd.f32 %v4792, %v4832
    %v4834 = vpop.f32.mrb[0].mxu0
    %v4835 = vpop.f32.mrb[0].mxu0
    %4836 = vdwg.mxu0
    %4837 = vmatprep.subr.bf16.mxu0 %v3476
    %4838 = vmatpush1.bf16.msra.mxu0 %v3475
    %4839 = vmatprep.subr.bf16.mxu0 %v3484
    %4840 = vmatpush1.bf16.msra.mxu0 %v3483
    %4841 = vmatprep.subr.bf16.mxu0 %v3492
    %4842 = vmatpush1.bf16.msra.mxu0 %v3491
    %4843 = vmatprep.subr.bf16.mxu0 %v3500
    %4844 = vmatpush1.bf16.msra.mxu0 %v3499
    %4845 = vmatprep.subr.bf16.mxu0 %v3508
    %4846 = vmatpush1.bf16.msra.mxu0 %v3507
    %4847 = vmatprep.subr.bf16.mxu0 %v3516
    %4848 = vmatpush1.bf16.msra.mxu0 %v3515
    %4849 = vmatprep.subr.bf16.mxu0 %v3524
    %4850 = vmatpush1.bf16.msra.mxu0 %v3523
    %4851 = vmatprep.subr.bf16.mxu0 %v3532
    %4852 = vmatpush1.bf16.msra.mxu0 %v3531
    %4853 = vmatprep.subr.bf16.mxu0 %v3540
    %4854 = vmatpush1.bf16.msra.mxu0 %v3539
    %4855 = vmatprep.subr.bf16.mxu0 %v3548
    %4856 = vmatpush1.bf16.msra.mxu0 %v3547
    %4857 = vmatprep.subr.bf16.mxu0 %v3556
    %4858 = vmatpush1.bf16.msra.mxu0 %v3555
    %4859 = vmatprep.subr.bf16.mxu0 %v3564
    %4860 = vmatpush1.bf16.msra.mxu0 %v3563
    %4861 = vmatprep.subr.bf16.mxu0 %v3572
    %4862 = vmatpush1.bf16.msra.mxu0 %v3571
    %4863 = vmatprep.subr.bf16.mxu0 %v3580
    %4864 = vmatpush1.bf16.msra.mxu0 %v3579
    %4865 = vmatprep.subr.bf16.mxu0 %v3588
    %4866 = vmatpush1.bf16.msra.mxu0 %v3587
    %4867 = vmatprep.subr.bf16.mxu0 %v3596
    %4868 = vmatpush1.bf16.msra.mxu0 %v3595
    %4869 = vmatprep.mubr.bf16.mxu0 %v896
    %4870 = vmatmul.mubr.bf16.gmra.mrb[0].mxu0 %v895
    %v4871 = vpop.f32.mrb[0].mxu0
    %v4872 = vadd.f32 %v4831, %v4871
    %v4873 = vpop.f32.mrb[0].mxu0
    %v4874 = vadd.f32 %v4833, %v4873
    %v4875 = vpop.f32.mrb[0].mxu0
    %v4876 = vpop.f32.mrb[0].mxu0
    %4877 = vdwg.mxu0
    %4878 = vmatprep.subr.bf16.mxu0 %v3604
    %4879 = vmatpush1.bf16.msra.mxu0 %v3603
    %4880 = vmatprep.subr.bf16.mxu0 %v3612
    %4881 = vmatpush1.bf16.msra.mxu0 %v3611
    %4882 = vmatprep.subr.bf16.mxu0 %v3620
    %4883 = vmatpush1.bf16.msra.mxu0 %v3619
    %4884 = vmatprep.subr.bf16.mxu0 %v3628
    %4885 = vmatpush1.bf16.msra.mxu0 %v3627
    %4886 = vmatprep.subr.bf16.mxu0 %v3636
    %4887 = vmatpush1.bf16.msra.mxu0 %v3635
    %4888 = vmatprep.subr.bf16.mxu0 %v3644
    %4889 = vmatpush1.bf16.msra.mxu0 %v3643
    %4890 = vmatprep.subr.bf16.mxu0 %v3652
    %4891 = vmatpush1.bf16.msra.mxu0 %v3651
    %4892 = vmatprep.subr.bf16.mxu0 %v3660
    %4893 = vmatpush1.bf16.msra.mxu0 %v3659
    %4894 = vmatprep.subr.bf16.mxu0 %v3668
    %4895 = vmatpush1.bf16.msra.mxu0 %v3667
    %4896 = vmatprep.subr.bf16.mxu0 %v3676
    %4897 = vmatpush1.bf16.msra.mxu0 %v3675
    %4898 = vmatprep.subr.bf16.mxu0 %v3684
    %4899 = vmatpush1.bf16.msra.mxu0 %v3683
    %4900 = vmatprep.subr.bf16.mxu0 %v3692
    %4901 = vmatpush1.bf16.msra.mxu0 %v3691
    %4902 = vmatprep.subr.bf16.mxu0 %v3700
    %4903 = vmatpush1.bf16.msra.mxu0 %v3699
    %4904 = vmatprep.subr.bf16.mxu0 %v3708
    %4905 = vmatpush1.bf16.msra.mxu0 %v3707
    %4906 = vmatprep.subr.bf16.mxu0 %v3716
    %4907 = vmatpush1.bf16.msra.mxu0 %v3715
    %4908 = vmatprep.subr.bf16.mxu0 %v3724
    %4909 = vmatpush1.bf16.msra.mxu0 %v3723
    %4910 = vmatprep.mubr.bf16.mxu0 %v898
    %4911 = vmatmul.mubr.bf16.gmra.mrb[0].mxu0 %v897
    %v4912 = vpop.f32.mrb[0].mxu0
    %v4913 = vadd.f32 %v4872, %v4912
    %v4914 = vpop.f32.mrb[0].mxu0
    %v4915 = vadd.f32 %v4874, %v4914
    %v4916 = vpop.f32.mrb[0].mxu0
    %v4917 = vpop.f32.mrb[0].mxu0
    %4918 = vdwg.mxu0
    %4919 = vmatprep.subr.bf16.mxu0 %v3732
    %4920 = vmatpush1.bf16.msra.mxu0 %v3731
    %4921 = vmatprep.subr.bf16.mxu0 %v3740
    %4922 = vmatpush1.bf16.msra.mxu0 %v3739
    %4923 = vmatprep.subr.bf16.mxu0 %v3748
    %4924 = vmatpush1.bf16.msra.mxu0 %v3747
    %4925 = vmatprep.subr.bf16.mxu0 %v3756
    %4926 = vmatpush1.bf16.msra.mxu0 %v3755
    %4927 = vmatprep.subr.bf16.mxu0 %v3764
    %4928 = vmatpush1.bf16.msra.mxu0 %v3763
    %4929 = vmatprep.subr.bf16.mxu0 %v3772
    %4930 = vmatpush1.bf16.msra.mxu0 %v3771
    %4931 = vmatprep.subr.bf16.mxu0 %v3780
    %4932 = vmatpush1.bf16.msra.mxu0 %v3779
    %4933 = vmatprep.subr.bf16.mxu0 %v3788
    %4934 = vmatpush1.bf16.msra.mxu0 %v3787
    %4935 = vmatprep.subr.bf16.mxu0 %v3796
    %4936 = vmatpush1.bf16.msra.mxu0 %v3795
    %4937 = vmatprep.subr.bf16.mxu0 %v3804
    %4938 = vmatpush1.bf16.msra.mxu0 %v3803
    %4939 = vmatprep.subr.bf16.mxu0 %v3812
    %4940 = vmatpush1.bf16.msra.mxu0 %v3811
    %4941 = vmatprep.subr.bf16.mxu0 %v3820
    %4942 = vmatpush1.bf16.msra.mxu0 %v3819
    %4943 = vmatprep.subr.bf16.mxu0 %v3828
    %4944 = vmatpush1.bf16.msra.mxu0 %v3827
    %4945 = vmatprep.subr.bf16.mxu0 %v3836
    %4946 = vmatpush1.bf16.msra.mxu0 %v3835
    %4947 = vmatprep.subr.bf16.mxu0 %v3844
    %4948 = vmatpush1.bf16.msra.mxu0 %v3843
    %4949 = vmatprep.subr.bf16.mxu0 %v3852
    %4950 = vmatpush1.bf16.msra.mxu0 %v3851
    %4951 = vmatprep.mubr.bf16.mxu0 %v900
    %4952 = vmatmul.mubr.bf16.gmra.mrb[0].mxu0 %v899
    %v4953 = vpop.f32.mrb[0].mxu0
    %v4954 = vadd.f32 %v4913, %v4953
    %v4955 = vpop.f32.mrb[0].mxu0
    %v4956 = vadd.f32 %v4915, %v4955
    %v4957 = vpop.f32.mrb[0].mxu0
    %v4958 = vpop.f32.mrb[0].mxu0
    %4959 = vdwg.mxu0
    %4960 = vmatprep.subr.bf16.mxu0 %v3860
    %4961 = vmatpush1.bf16.msra.mxu0 %v3859
    %4962 = vmatprep.subr.bf16.mxu0 %v3868
    %4963 = vmatpush1.bf16.msra.mxu0 %v3867
    %4964 = vmatprep.subr.bf16.mxu0 %v3876
    %4965 = vmatpush1.bf16.msra.mxu0 %v3875
    %4966 = vmatprep.subr.bf16.mxu0 %v3884
    %4967 = vmatpush1.bf16.msra.mxu0 %v3883
    %4968 = vmatprep.subr.bf16.mxu0 %v3892
    %4969 = vmatpush1.bf16.msra.mxu0 %v3891
    %4970 = vmatprep.subr.bf16.mxu0 %v3900
    %4971 = vmatpush1.bf16.msra.mxu0 %v3899
    %4972 = vmatprep.subr.bf16.mxu0 %v3908
    %4973 = vmatpush1.bf16.msra.mxu0 %v3907
    %4974 = vmatprep.subr.bf16.mxu0 %v3916
    %4975 = vmatpush1.bf16.msra.mxu0 %v3915
    %4976 = vmatprep.subr.bf16.mxu0 %v3924
    %4977 = vmatpush1.bf16.msra.mxu0 %v3923
    %4978 = vmatprep.subr.bf16.mxu0 %v3932
    %4979 = vmatpush1.bf16.msra.mxu0 %v3931
    %4980 = vmatprep.subr.bf16.mxu0 %v3940
    %4981 = vmatpush1.bf16.msra.mxu0 %v3939
    %4982 = vmatprep.subr.bf16.mxu0 %v3948
    %4983 = vmatpush1.bf16.msra.mxu0 %v3947
    %4984 = vmatprep.subr.bf16.mxu0 %v3956
    %4985 = vmatpush1.bf16.msra.mxu0 %v3955
    %4986 = vmatprep.subr.bf16.mxu0 %v3964
    %4987 = vmatpush1.bf16.msra.mxu0 %v3963
    %4988 = vmatprep.subr.bf16.mxu0 %v3972
    %4989 = vmatpush1.bf16.msra.mxu0 %v3971
    %4990 = vmatprep.subr.bf16.mxu0 %v3980
    %4991 = vmatpush1.bf16.msra.mxu0 %v3979
    %4992 = vmatprep.mubr.bf16.mxu0 %v902
    %4993 = vmatmul.mubr.bf16.gmra.mrb[0].mxu0 %v901
    %v4994 = vpop.f32.mrb[0].mxu0
    %v4995 = vadd.f32 %v4954, %v4994
    %v4996 = vpop.f32.mrb[0].mxu0
    %v4997 = vadd.f32 %v4956, %v4996
    %v4998 = vpop.f32.mrb[0].mxu0
    %v4999 = vpop.f32.mrb[0].mxu0
    %5000 = vdwg.mxu0
    %5001 = vmatprep.subr.bf16.mxu0 %v3222
    %5002 = vmatpush1.bf16.msra.mxu0 %v3221
    %5003 = vmatprep.subr.bf16.mxu0 %v3230
    %5004 = vmatpush1.bf16.msra.mxu0 %v3229
    %5005 = vmatprep.subr.bf16.mxu0 %v3238
    %5006 = vmatpush1.bf16.msra.mxu0 %v3237
    %5007 = vmatprep.subr.bf16.mxu0 %v3246
    %5008 = vmatpush1.bf16.msra.mxu0 %v3245
    %5009 = vmatprep.subr.bf16.mxu0 %v3254
    %5010 = vmatpush1.bf16.msra.mxu0 %v3253
    %5011 = vmatprep.subr.bf16.mxu0 %v3262
    %5012 = vmatpush1.bf16.msra.mxu0 %v3261
    %5013 = vmatprep.subr.bf16.mxu0 %v3270
    %5014 = vmatpush1.bf16.msra.mxu0 %v3269
    %5015 = vmatprep.subr.bf16.mxu0 %v3278
    %5016 = vmatpush1.bf16.msra.mxu0 %v3277
    %5017 = vmatprep.subr.bf16.mxu0 %v3286
    %5018 = vmatpush1.bf16.msra.mxu0 %v3285
    %5019 = vmatprep.subr.bf16.mxu0 %v3294
    %5020 = vmatpush1.bf16.msra.mxu0 %v3293
    %5021 = vmatprep.subr.bf16.mxu0 %v3302
    %5022 = vmatpush1.bf16.msra.mxu0 %v3301
    %5023 = vmatprep.subr.bf16.mxu0 %v3310
    %5024 = vmatpush1.bf16.msra.mxu0 %v3309
    %5025 = vmatprep.subr.bf16.mxu0 %v3318
    %5026 = vmatpush1.bf16.msra.mxu0 %v3317
    %5027 = vmatprep.subr.bf16.mxu0 %v3326
    %5028 = vmatpush1.bf16.msra.mxu0 %v3325
    %5029 = vmatprep.subr.bf16.mxu0 %v3334
    %5030 = vmatpush1.bf16.msra.mxu0 %v3333
    %5031 = vmatprep.subr.bf16.mxu0 %v3342
    %5032 = vmatpush1.bf16.msra.mxu0 %v3341
    %5033 = vmatprep.mubr.bf16.mxu0 %v892
    %5034 = vmatmul.mubr.bf16.gmra.mrb[0].mxu0 %v891
    %v5035 = vpop.f32.mrb[0].mxu0
    %v5036 = vadd.f32 0.0, %v5035
    %v5037 = vpop.f32.mrb[0].mxu0
    %v5038 = vadd.f32 0.0, %v5037
    %v5039 = vpop.f32.mrb[0].mxu0
    %v5040 = vpop.f32.mrb[0].mxu0
    %5041 = vdwg.mxu0
    %5042 = vmatprep.subr.bf16.mxu0 %v3350
    %5043 = vmatpush1.bf16.msra.mxu0 %v3349
    %5044 = vmatprep.subr.bf16.mxu0 %v3358
    %5045 = vmatpush1.bf16.msra.mxu0 %v3357
    %5046 = vmatprep.subr.bf16.mxu0 %v3366
    %5047 = vmatpush1.bf16.msra.mxu0 %v3365
    %5048 = vmatprep.subr.bf16.mxu0 %v3374
    %5049 = vmatpush1.bf16.msra.mxu0 %v3373
    %5050 = vmatprep.subr.bf16.mxu0 %v3382
    %5051 = vmatpush1.bf16.msra.mxu0 %v3381
    %5052 = vmatprep.subr.bf16.mxu0 %v3390
    %5053 = vmatpush1.bf16.msra.mxu0 %v3389
    %5054 = vmatprep.subr.bf16.mxu0 %v3398
    %5055 = vmatpush1.bf16.msra.mxu0 %v3397
    %5056 = vmatprep.subr.bf16.mxu0 %v3406
    %5057 = vmatpush1.bf16.msra.mxu0 %v3405
    %5058 = vmatprep.subr.bf16.mxu0 %v3414
    %5059 = vmatpush1.bf16.msra.mxu0 %v3413
    %5060 = vmatprep.subr.bf16.mxu0 %v3422
    %5061 = vmatpush1.bf16.msra.mxu0 %v3421
    %5062 = vmatprep.subr.bf16.mxu0 %v3430
    %5063 = vmatpush1.bf16.msra.mxu0 %v3429
    %5064 = vmatprep.subr.bf16.mxu0 %v3438
    %5065 = vmatpush1.bf16.msra.mxu0 %v3437
    %5066 = vmatprep.subr.bf16.mxu0 %v3446
    %5067 = vmatpush1.bf16.msra.mxu0 %v3445
    %5068 = vmatprep.subr.bf16.mxu0 %v3454
    %5069 = vmatpush1.bf16.msra.mxu0 %v3453
    %5070 = vmatprep.subr.bf16.mxu0 %v3462
    %5071 = vmatpush1.bf16.msra.mxu0 %v3461
    %5072 = vmatprep.subr.bf16.mxu0 %v3470
    %5073 = vmatpush1.bf16.msra.mxu0 %v3469
    %5074 = vmatprep.mubr.bf16.mxu0 %v894
    %5075 = vmatmul.mubr.bf16.gmra.mrb[0].mxu0 %v893
    %v5076 = vpop.f32.mrb[0].mxu0
    %v5077 = vadd.f32 %v5036, %v5076
    %v5078 = vpop.f32.mrb[0].mxu0
    %v5079 = vadd.f32 %v5038, %v5078
    %v5080 = vpop.f32.mrb[0].mxu0
    %v5081 = vpop.f32.mrb[0].mxu0
    %5082 = vdwg.mxu0
    %5083 = vmatprep.subr.bf16.mxu0 %v3478
    %5084 = vmatpush1.bf16.msra.mxu0 %v3477
    %5085 = vmatprep.subr.bf16.mxu0 %v3486
    %5086 = vmatpush1.bf16.msra.mxu0 %v3485
    %5087 = vmatprep.subr.bf16.mxu0 %v3494
    %5088 = vmatpush1.bf16.msra.mxu0 %v3493
    %5089 = vmatprep.subr.bf16.mxu0 %v3502
    %5090 = vmatpush1.bf16.msra.mxu0 %v3501
    %5091 = vmatprep.subr.bf16.mxu0 %v3510
    %5092 = vmatpush1.bf16.msra.mxu0 %v3509
    %5093 = vmatprep.subr.bf16.mxu0 %v3518
    %5094 = vmatpush1.bf16.msra.mxu0 %v3517
    %5095 = vmatprep.subr.bf16.mxu0 %v3526
    %5096 = vmatpush1.bf16.msra.mxu0 %v3525
    %5097 = vmatprep.subr.bf16.mxu0 %v3534
    %5098 = vmatpush1.bf16.msra.mxu0 %v3533
    %5099 = vmatprep.subr.bf16.mxu0 %v3542
    %5100 = vmatpush1.bf16.msra.mxu0 %v3541
    %5101 = vmatprep.subr.bf16.mxu0 %v3550
    %5102 = vmatpush1.bf16.msra.mxu0 %v3549
    %5103 = vmatprep.subr.bf16.mxu0 %v3558
    %5104 = vmatpush1.bf16.msra.mxu0 %v3557
    %5105 = vmatprep.subr.bf16.mxu0 %v3566
    %5106 = vmatpush1.bf16.msra.mxu0 %v3565
    %5107 = vmatprep.subr.bf16.mxu0 %v3574
    %5108 = vmatpush1.bf16.msra.mxu0 %v3573
    %5109 = vmatprep.subr.bf16.mxu0 %v3582
    %5110 = vmatpush1.bf16.msra.mxu0 %v3581
    %5111 = vmatprep.subr.bf16.mxu0 %v3590
    %5112 = vmatpush1.bf16.msra.mxu0 %v3589
    %5113 = vmatprep.subr.bf16.mxu0 %v3598
    %5114 = vmatpush1.bf16.msra.mxu0 %v3597
    %5115 = vmatprep.mubr.bf16.mxu0 %v896
    %5116 = vmatmul.mubr.bf16.gmra.mrb[0].mxu0 %v895
    %v5117 = vpop.f32.mrb[0].mxu0
    %v5118 = vadd.f32 %v5077, %v5117
    %v5119 = vpop.f32.mrb[0].mxu0
    %v5120 = vadd.f32 %v5079, %v5119
    %v5121 = vpop.f32.mrb[0].mxu0
    %v5122 = vpop.f32.mrb[0].mxu0
    %5123 = vdwg.mxu0
    %5124 = vmatprep.subr.bf16.mxu0 %v3606
    %5125 = vmatpush1.bf16.msra.mxu0 %v3605
    %5126 = vmatprep.subr.bf16.mxu0 %v3614
    %5127 = vmatpush1.bf16.msra.mxu0 %v3613
    %5128 = vmatprep.subr.bf16.mxu0 %v3622
    %5129 = vmatpush1.bf16.msra.mxu0 %v3621
    %5130 = vmatprep.subr.bf16.mxu0 %v3630
    %5131 = vmatpush1.bf16.msra.mxu0 %v3629
    %5132 = vmatprep.subr.bf16.mxu0 %v3638
    %5133 = vmatpush1.bf16.msra.mxu0 %v3637
    %5134 = vmatprep.subr.bf16.mxu0 %v3646
    %5135 = vmatpush1.bf16.msra.mxu0 %v3645
    %5136 = vmatprep.subr.bf16.mxu0 %v3654
    %5137 = vmatpush1.bf16.msra.mxu0 %v3653
    %5138 = vmatprep.subr.bf16.mxu0 %v3662
    %5139 = vmatpush1.bf16.msra.mxu0 %v3661
    %5140 = vmatprep.subr.bf16.mxu0 %v3670
    %5141 = vmatpush1.bf16.msra.mxu0 %v3669
    %5142 = vmatprep.subr.bf16.mxu0 %v3678
    %5143 = vmatpush1.bf16.msra.mxu0 %v3677
    %5144 = vmatprep.subr.bf16.mxu0 %v3686
    %5145 = vmatpush1.bf16.msra.mxu0 %v3685
    %5146 = vmatprep.subr.bf16.mxu0 %v3694
    %5147 = vmatpush1.bf16.msra.mxu0 %v3693
    %5148 = vmatprep.subr.bf16.mxu0 %v3702
    %5149 = vmatpush1.bf16.msra.mxu0 %v3701
    %5150 = vmatprep.subr.bf16.mxu0 %v3710
    %5151 = vmatpush1.bf16.msra.mxu0 %v3709
    %5152 = vmatprep.subr.bf16.mxu0 %v3718
    %5153 = vmatpush1.bf16.msra.mxu0 %v3717
    %5154 = vmatprep.subr.bf16.mxu0 %v3726
    %5155 = vmatpush1.bf16.msra.mxu0 %v3725
    %5156 = vmatprep.mubr.bf16.mxu0 %v898
    %5157 = vmatmul.mubr.bf16.gmra.mrb[0].mxu0 %v897
    %v5158 = vpop.f32.mrb[0].mxu0
    %v5159 = vadd.f32 %v5118, %v5158
    %v5160 = vpop.f32.mrb[0].mxu0
    %v5161 = vadd.f32 %v5120, %v5160
    %v5162 = vpop.f32.mrb[0].mxu0
    %v5163 = vpop.f32.mrb[0].mxu0
    %5164 = vdwg.mxu0
    %5165 = vmatprep.subr.bf16.mxu0 %v3734
    %5166 = vmatpush1.bf16.msra.mxu0 %v3733
    %5167 = vmatprep.subr.bf16.mxu0 %v3742
    %5168 = vmatpush1.bf16.msra.mxu0 %v3741
    %5169 = vmatprep.subr.bf16.mxu0 %v3750
    %5170 = vmatpush1.bf16.msra.mxu0 %v3749
    %5171 = vmatprep.subr.bf16.mxu0 %v3758
    %5172 = vmatpush1.bf16.msra.mxu0 %v3757
    %5173 = vmatprep.subr.bf16.mxu0 %v3766
    %5174 = vmatpush1.bf16.msra.mxu0 %v3765
    %5175 = vmatprep.subr.bf16.mxu0 %v3774
    %5176 = vmatpush1.bf16.msra.mxu0 %v3773
    %5177 = vmatprep.subr.bf16.mxu0 %v3782
    %5178 = vmatpush1.bf16.msra.mxu0 %v3781
    %5179 = vmatprep.subr.bf16.mxu0 %v3790
    %5180 = vmatpush1.bf16.msra.mxu0 %v3789
    %5181 = vmatprep.subr.bf16.mxu0 %v3798
    %5182 = vmatpush1.bf16.msra.mxu0 %v3797
    %5183 = vmatprep.subr.bf16.mxu0 %v3806
    %5184 = vmatpush1.bf16.msra.mxu0 %v3805
    %5185 = vmatprep.subr.bf16.mxu0 %v3814
    %5186 = vmatpush1.bf16.msra.mxu0 %v3813
    %5187 = vmatprep.subr.bf16.mxu0 %v3822
    %5188 = vmatpush1.bf16.msra.mxu0 %v3821
    %5189 = vmatprep.subr.bf16.mxu0 %v3830
    %5190 = vmatpush1.bf16.msra.mxu0 %v3829
    %5191 = vmatprep.subr.bf16.mxu0 %v3838
    %5192 = vmatpush1.bf16.msra.mxu0 %v3837
    %5193 = vmatprep.subr.bf16.mxu0 %v3846
    %5194 = vmatpush1.bf16.msra.mxu0 %v3845
    %5195 = vmatprep.subr.bf16.mxu0 %v3854
    %5196 = vmatpush1.bf16.msra.mxu0 %v3853
    %5197 = vmatprep.mubr.bf16.mxu0 %v900
    %5198 = vmatmul.mubr.bf16.gmra.mrb[0].mxu0 %v899
    %v5199 = vpop.f32.mrb[0].mxu0
    %v5200 = vadd.f32 %v5159, %v5199
    %v5201 = vpop.f32.mrb[0].mxu0
    %v5202 = vadd.f32 %v5161, %v5201
    %v5203 = vpop.f32.mrb[0].mxu0
    %v5204 = vpop.f32.mrb[0].mxu0
    %5205 = vdwg.mxu0
    %5206 = vmatprep.subr.bf16.mxu0 %v3862
    %5207 = vmatpush1.bf16.msra.mxu0 %v3861
    %5208 = vmatprep.subr.bf16.mxu0 %v3870
    %5209 = vmatpush1.bf16.msra.mxu0 %v3869
    %5210 = vmatprep.subr.bf16.mxu0 %v3878
    %5211 = vmatpush1.bf16.msra.mxu0 %v3877
    %5212 = vmatprep.subr.bf16.mxu0 %v3886
    %5213 = vmatpush1.bf16.msra.mxu0 %v3885
    %5214 = vmatprep.subr.bf16.mxu0 %v3894
    %5215 = vmatpush1.bf16.msra.mxu0 %v3893
    %5216 = vmatprep.subr.bf16.mxu0 %v3902
    %5217 = vmatpush1.bf16.msra.mxu0 %v3901
    %5218 = vmatprep.subr.bf16.mxu0 %v3910
    %5219 = vmatpush1.bf16.msra.mxu0 %v3909
    %5220 = vmatprep.subr.bf16.mxu0 %v3918
    %5221 = vmatpush1.bf16.msra.mxu0 %v3917
    %5222 = vmatprep.subr.bf16.mxu0 %v3926
    %5223 = vmatpush1.bf16.msra.mxu0 %v3925
    %5224 = vmatprep.subr.bf16.mxu0 %v3934
    %5225 = vmatpush1.bf16.msra.mxu0 %v3933
    %5226 = vmatprep.subr.bf16.mxu0 %v3942
    %5227 = vmatpush1.bf16.msra.mxu0 %v3941
    %5228 = vmatprep.subr.bf16.mxu0 %v3950
    %5229 = vmatpush1.bf16.msra.mxu0 %v3949
    %5230 = vmatprep.subr.bf16.mxu0 %v3958
    %5231 = vmatpush1.bf16.msra.mxu0 %v3957
    %5232 = vmatprep.subr.bf16.mxu0 %v3966
    %5233 = vmatpush1.bf16.msra.mxu0 %v3965
    %5234 = vmatprep.subr.bf16.mxu0 %v3974
    %5235 = vmatpush1.bf16.msra.mxu0 %v3973
    %5236 = vmatprep.subr.bf16.mxu0 %v3982
    %5237 = vmatpush1.bf16.msra.mxu0 %v3981
    %5238 = vmatprep.mubr.bf16.mxu0 %v902
    %5239 = vmatmul.mubr.bf16.gmra.mrb[0].mxu0 %v901
    %v5240 = vpop.f32.mrb[0].mxu0
    %v5241 = vadd.f32 %v5200, %v5240
    %v5242 = vpop.f32.mrb[0].mxu0
    %v5243 = vadd.f32 %v5202, %v5242
    %v5244 = vpop.f32.mrb[0].mxu0
    %v5245 = vpop.f32.mrb[0].mxu0
    %5246 = vdwg.mxu0
    %5247 = vmatprep.subr.bf16.mxu0 %v3224
    %5248 = vmatpush1.bf16.msra.mxu0 %v3223
    %5249 = vmatprep.subr.bf16.mxu0 %v3232
    %5250 = vmatpush1.bf16.msra.mxu0 %v3231
    %5251 = vmatprep.subr.bf16.mxu0 %v3240
    %5252 = vmatpush1.bf16.msra.mxu0 %v3239
    %5253 = vmatprep.subr.bf16.mxu0 %v3248
    %5254 = vmatpush1.bf16.msra.mxu0 %v3247
    %5255 = vmatprep.subr.bf16.mxu0 %v3256
    %5256 = vmatpush1.bf16.msra.mxu0 %v3255
    %5257 = vmatprep.subr.bf16.mxu0 %v3264
    %5258 = vmatpush1.bf16.msra.mxu0 %v3263
    %5259 = vmatprep.subr.bf16.mxu0 %v3272
    %5260 = vmatpush1.bf16.msra.mxu0 %v3271
    %5261 = vmatprep.subr.bf16.mxu0 %v3280
    %5262 = vmatpush1.bf16.msra.mxu0 %v3279
    %5263 = vmatprep.subr.bf16.mxu0 %v3288
    %5264 = vmatpush1.bf16.msra.mxu0 %v3287
    %5265 = vmatprep.subr.bf16.mxu0 %v3296
    %5266 = vmatpush1.bf16.msra.mxu0 %v3295
    %5267 = vmatprep.subr.bf16.mxu0 %v3304
    %5268 = vmatpush1.bf16.msra.mxu0 %v3303
    %5269 = vmatprep.subr.bf16.mxu0 %v3312
    %5270 = vmatpush1.bf16.msra.mxu0 %v3311
    %5271 = vmatprep.subr.bf16.mxu0 %v3320
    %5272 = vmatpush1.bf16.msra.mxu0 %v3319
    %5273 = vmatprep.subr.bf16.mxu0 %v3328
    %5274 = vmatpush1.bf16.msra.mxu0 %v3327
    %5275 = vmatprep.subr.bf16.mxu0 %v3336
    %5276 = vmatpush1.bf16.msra.mxu0 %v3335
    %5277 = vmatprep.subr.bf16.mxu0 %v3344
    %5278 = vmatpush1.bf16.msra.mxu0 %v3343
    %5279 = vmatprep.mubr.bf16.mxu0 %v892
    %5280 = vmatmul.mubr.bf16.gmra.mrb[0].mxu0 %v891
    %v5281 = vpop.f32.mrb[0].mxu0
    %v5282 = vadd.f32 0.0, %v5281
    %v5283 = vpop.f32.mrb[0].mxu0
    %v5284 = vadd.f32 0.0, %v5283
    %v5285 = vpop.f32.mrb[0].mxu0
    %v5286 = vpop.f32.mrb[0].mxu0
    %5287 = vdwg.mxu0
    %5288 = vmatprep.subr.bf16.mxu0 %v3352
    %5289 = vmatpush1.bf16.msra.mxu0 %v3351
    %5290 = vmatprep.subr.bf16.mxu0 %v3360
    %5291 = vmatpush1.bf16.msra.mxu0 %v3359
    %5292 = vmatprep.subr.bf16.mxu0 %v3368
    %5293 = vmatpush1.bf16.msra.mxu0 %v3367
    %5294 = vmatprep.subr.bf16.mxu0 %v3376
    %5295 = vmatpush1.bf16.msra.mxu0 %v3375
    %5296 = vmatprep.subr.bf16.mxu0 %v3384
    %5297 = vmatpush1.bf16.msra.mxu0 %v3383
    %5298 = vmatprep.subr.bf16.mxu0 %v3392
    %5299 = vmatpush1.bf16.msra.mxu0 %v3391
    %5300 = vmatprep.subr.bf16.mxu0 %v3400
    %5301 = vmatpush1.bf16.msra.mxu0 %v3399
    %5302 = vmatprep.subr.bf16.mxu0 %v3408
    %5303 = vmatpush1.bf16.msra.mxu0 %v3407
    %5304 = vmatprep.subr.bf16.mxu0 %v3416
    %5305 = vmatpush1.bf16.msra.mxu0 %v3415
    %5306 = vmatprep.subr.bf16.mxu0 %v3424
    %5307 = vmatpush1.bf16.msra.mxu0 %v3423
    %5308 = vmatprep.subr.bf16.mxu0 %v3432
    %5309 = vmatpush1.bf16.msra.mxu0 %v3431
    %5310 = vmatprep.subr.bf16.mxu0 %v3440
    %5311 = vmatpush1.bf16.msra.mxu0 %v3439
    %5312 = vmatprep.subr.bf16.mxu0 %v3448
    %5313 = vmatpush1.bf16.msra.mxu0 %v3447
    %5314 = vmatprep.subr.bf16.mxu0 %v3456
    %5315 = vmatpush1.bf16.msra.mxu0 %v3455
    %5316 = vmatprep.subr.bf16.mxu0 %v3464
    %5317 = vmatpush1.bf16.msra.mxu0 %v3463
    %5318 = vmatprep.subr.bf16.mxu0 %v3472
    %5319 = vmatpush1.bf16.msra.mxu0 %v3471
    %5320 = vmatprep.mubr.bf16.mxu0 %v894
    %5321 = vmatmul.mubr.bf16.gmra.mrb[0].mxu0 %v893
    %v5322 = vpop.f32.mrb[0].mxu0
    %v5323 = vadd.f32 %v5282, %v5322
    %v5324 = vpop.f32.mrb[0].mxu0
    %v5325 = vadd.f32 %v5284, %v5324
    %v5326 = vpop.f32.mrb[0].mxu0
    %v5327 = vpop.f32.mrb[0].mxu0
    %5328 = vdwg.mxu0
    %5329 = vmatprep.subr.bf16.mxu0 %v3480
    %5330 = vmatpush1.bf16.msra.mxu0 %v3479
    %5331 = vmatprep.subr.bf16.mxu0 %v3488
    %5332 = vmatpush1.bf16.msra.mxu0 %v3487
    %5333 = vmatprep.subr.bf16.mxu0 %v3496
    %5334 = vmatpush1.bf16.msra.mxu0 %v3495
    %5335 = vmatprep.subr.bf16.mxu0 %v3504
    %5336 = vmatpush1.bf16.msra.mxu0 %v3503
    %5337 = vmatprep.subr.bf16.mxu0 %v3512
    %5338 = vmatpush1.bf16.msra.mxu0 %v3511
    %5339 = vmatprep.subr.bf16.mxu0 %v3520
    %5340 = vmatpush1.bf16.msra.mxu0 %v3519
    %5341 = vmatprep.subr.bf16.mxu0 %v3528
    %5342 = vmatpush1.bf16.msra.mxu0 %v3527
    %5343 = vmatprep.subr.bf16.mxu0 %v3536
    %5344 = vmatpush1.bf16.msra.mxu0 %v3535
    %5345 = vmatprep.subr.bf16.mxu0 %v3544
    %5346 = vmatpush1.bf16.msra.mxu0 %v3543
    %5347 = vmatprep.subr.bf16.mxu0 %v3552
    %5348 = vmatpush1.bf16.msra.mxu0 %v3551
    %5349 = vmatprep.subr.bf16.mxu0 %v3560
    %5350 = vmatpush1.bf16.msra.mxu0 %v3559
    %5351 = vmatprep.subr.bf16.mxu0 %v3568
    %5352 = vmatpush1.bf16.msra.mxu0 %v3567
    %5353 = vmatprep.subr.bf16.mxu0 %v3576
    %5354 = vmatpush1.bf16.msra.mxu0 %v3575
    %5355 = vmatprep.subr.bf16.mxu0 %v3584
    %5356 = vmatpush1.bf16.msra.mxu0 %v3583
    %5357 = vmatprep.subr.bf16.mxu0 %v3592
    %5358 = vmatpush1.bf16.msra.mxu0 %v3591
    %5359 = vmatprep.subr.bf16.mxu0 %v3600
    %5360 = vmatpush1.bf16.msra.mxu0 %v3599
    %5361 = vmatprep.mubr.bf16.mxu0 %v896
    %5362 = vmatmul.mubr.bf16.gmra.mrb[0].mxu0 %v895
    %v5363 = vpop.f32.mrb[0].mxu0
    %v5364 = vadd.f32 %v5323, %v5363
    %v5365 = vpop.f32.mrb[0].mxu0
    %v5366 = vadd.f32 %v5325, %v5365
    %v5367 = vpop.f32.mrb[0].mxu0
    %v5368 = vpop.f32.mrb[0].mxu0
    %5369 = vdwg.mxu0
    %5370 = vmatprep.subr.bf16.mxu0 %v3608
    %5371 = vmatpush1.bf16.msra.mxu0 %v3607
    %5372 = vmatprep.subr.bf16.mxu0 %v3616
    %5373 = vmatpush1.bf16.msra.mxu0 %v3615
    %5374 = vmatprep.subr.bf16.mxu0 %v3624
    %5375 = vmatpush1.bf16.msra.mxu0 %v3623
    %5376 = vmatprep.subr.bf16.mxu0 %v3632
    %5377 = vmatpush1.bf16.msra.mxu0 %v3631
    %5378 = vmatprep.subr.bf16.mxu0 %v3640
    %5379 = vmatpush1.bf16.msra.mxu0 %v3639
    %5380 = vmatprep.subr.bf16.mxu0 %v3648
    %5381 = vmatpush1.bf16.msra.mxu0 %v3647
    %5382 = vmatprep.subr.bf16.mxu0 %v3656
    %5383 = vmatpush1.bf16.msra.mxu0 %v3655
    %5384 = vmatprep.subr.bf16.mxu0 %v3664
    %5385 = vmatpush1.bf16.msra.mxu0 %v3663
    %5386 = vmatprep.subr.bf16.mxu0 %v3672
    %5387 = vmatpush1.bf16.msra.mxu0 %v3671
    %5388 = vmatprep.subr.bf16.mxu0 %v3680
    %5389 = vmatpush1.bf16.msra.mxu0 %v3679
    %5390 = vmatprep.subr.bf16.mxu0 %v3688
    %5391 = vmatpush1.bf16.msra.mxu0 %v3687
    %5392 = vmatprep.subr.bf16.mxu0 %v3696
    %5393 = vmatpush1.bf16.msra.mxu0 %v3695
    %5394 = vmatprep.subr.bf16.mxu0 %v3704
    %5395 = vmatpush1.bf16.msra.mxu0 %v3703
    %5396 = vmatprep.subr.bf16.mxu0 %v3712
    %5397 = vmatpush1.bf16.msra.mxu0 %v3711
    %5398 = vmatprep.subr.bf16.mxu0 %v3720
    %5399 = vmatpush1.bf16.msra.mxu0 %v3719
    %5400 = vmatprep.subr.bf16.mxu0 %v3728
    %5401 = vmatpush1.bf16.msra.mxu0 %v3727
    %5402 = vmatprep.mubr.bf16.mxu0 %v898
    %5403 = vmatmul.mubr.bf16.gmra.mrb[0].mxu0 %v897
    %v5404 = vpop.f32.mrb[0].mxu0
    %v5405 = vadd.f32 %v5364, %v5404
    %v5406 = vpop.f32.mrb[0].mxu0
    %v5407 = vadd.f32 %v5366, %v5406
    %v5408 = vpop.f32.mrb[0].mxu0
    %v5409 = vpop.f32.mrb[0].mxu0
    %5410 = vdwg.mxu0
    %5411 = vmatprep.subr.bf16.mxu0 %v3736
    %5412 = vmatpush1.bf16.msra.mxu0 %v3735
    %5413 = vmatprep.subr.bf16.mxu0 %v3744
    %5414 = vmatpush1.bf16.msra.mxu0 %v3743
    %5415 = vmatprep.subr.bf16.mxu0 %v3752
    %5416 = vmatpush1.bf16.msra.mxu0 %v3751
    %5417 = vmatprep.subr.bf16.mxu0 %v3760
    %5418 = vmatpush1.bf16.msra.mxu0 %v3759
    %5419 = vmatprep.subr.bf16.mxu0 %v3768
    %5420 = vmatpush1.bf16.msra.mxu0 %v3767
    %5421 = vmatprep.subr.bf16.mxu0 %v3776
    %5422 = vmatpush1.bf16.msra.mxu0 %v3775
    %5423 = vmatprep.subr.bf16.mxu0 %v3784
    %5424 = vmatpush1.bf16.msra.mxu0 %v3783
    %5425 = vmatprep.subr.bf16.mxu0 %v3792
    %5426 = vmatpush1.bf16.msra.mxu0 %v3791
    %5427 = vmatprep.subr.bf16.mxu0 %v3800
    %5428 = vmatpush1.bf16.msra.mxu0 %v3799
    %5429 = vmatprep.subr.bf16.mxu0 %v3808
    %5430 = vmatpush1.bf16.msra.mxu0 %v3807
    %5431 = vmatprep.subr.bf16.mxu0 %v3816
    %5432 = vmatpush1.bf16.msra.mxu0 %v3815
    %5433 = vmatprep.subr.bf16.mxu0 %v3824
    %5434 = vmatpush1.bf16.msra.mxu0 %v3823
    %5435 = vmatprep.subr.bf16.mxu0 %v3832
    %5436 = vmatpush1.bf16.msra.mxu0 %v3831
    %5437 = vmatprep.subr.bf16.mxu0 %v3840
    %5438 = vmatpush1.bf16.msra.mxu0 %v3839
    %5439 = vmatprep.subr.bf16.mxu0 %v3848
    %5440 = vmatpush1.bf16.msra.mxu0 %v3847
    %5441 = vmatprep.subr.bf16.mxu0 %v3856
    %5442 = vmatpush1.bf16.msra.mxu0 %v3855
    %5443 = vmatprep.mubr.bf16.mxu0 %v900
    %5444 = vmatmul.mubr.bf16.gmra.mrb[0].mxu0 %v899
    %v5445 = vpop.f32.mrb[0].mxu0
    %v5446 = vadd.f32 %v5405, %v5445
    %v5447 = vpop.f32.mrb[0].mxu0
    %v5448 = vadd.f32 %v5407, %v5447
    %v5449 = vpop.f32.mrb[0].mxu0
    %v5450 = vpop.f32.mrb[0].mxu0
    %5451 = vdwg.mxu0
    %5452 = vmatprep.subr.bf16.mxu0 %v3864
    %5453 = vmatpush1.bf16.msra.mxu0 %v3863
    %5454 = vmatprep.subr.bf16.mxu0 %v3872
    %5455 = vmatpush1.bf16.msra.mxu0 %v3871
    %5456 = vmatprep.subr.bf16.mxu0 %v3880
    %5457 = vmatpush1.bf16.msra.mxu0 %v3879
    %5458 = vmatprep.subr.bf16.mxu0 %v3888
    %5459 = vmatpush1.bf16.msra.mxu0 %v3887
    %5460 = vmatprep.subr.bf16.mxu0 %v3896
    %5461 = vmatpush1.bf16.msra.mxu0 %v3895
    %5462 = vmatprep.subr.bf16.mxu0 %v3904
    %5463 = vmatpush1.bf16.msra.mxu0 %v3903
    %5464 = vmatprep.subr.bf16.mxu0 %v3912
    %5465 = vmatpush1.bf16.msra.mxu0 %v3911
    %5466 = vmatprep.subr.bf16.mxu0 %v3920
    %5467 = vmatpush1.bf16.msra.mxu0 %v3919
    %5468 = vmatprep.subr.bf16.mxu0 %v3928
    %5469 = vmatpush1.bf16.msra.mxu0 %v3927
    %5470 = vmatprep.subr.bf16.mxu0 %v3936
    %5471 = vmatpush1.bf16.msra.mxu0 %v3935
    %5472 = vmatprep.subr.bf16.mxu0 %v3944
    %5473 = vmatpush1.bf16.msra.mxu0 %v3943
    %5474 = vmatprep.subr.bf16.mxu0 %v3952
    %5475 = vmatpush1.bf16.msra.mxu0 %v3951
    %5476 = vmatprep.subr.bf16.mxu0 %v3960
    %5477 = vmatpush1.bf16.msra.mxu0 %v3959
    %5478 = vmatprep.subr.bf16.mxu0 %v3968
    %5479 = vmatpush1.bf16.msra.mxu0 %v3967
    %5480 = vmatprep.subr.bf16.mxu0 %v3976
    %5481 = vmatpush1.bf16.msra.mxu0 %v3975
    %5482 = vmatprep.subr.bf16.mxu0 %v3984
    %5483 = vmatpush1.bf16.msra.mxu0 %v3983
    %5484 = vmatprep.mubr.bf16.mxu0 %v902
    %5485 = vmatmul.mubr.bf16.gmra.mrb[0].mxu0 %v901
    %v5486 = vpop.f32.mrb[0].mxu0
    %v5487 = vadd.f32 %v5446, %v5486
    %v5488 = vpop.f32.mrb[0].mxu0
    %v5489 = vadd.f32 %v5448, %v5488
    %v5490 = vpop.f32.mrb[0].mxu0
    %v5491 = vpop.f32.mrb[0].mxu0
    %5492 = vdwg.mxu0
    %5493 = vmatprep.subr.bf16.mxu0 %v3226
    %5494 = vmatpush1.bf16.msra.mxu0 %v3225
    %5495 = vmatprep.subr.bf16.mxu0 %v3234
    %5496 = vmatpush1.bf16.msra.mxu0 %v3233
    %5497 = vmatprep.subr.bf16.mxu0 %v3242
    %5498 = vmatpush1.bf16.msra.mxu0 %v3241
    %5499 = vmatprep.subr.bf16.mxu0 %v3250
    %5500 = vmatpush1.bf16.msra.mxu0 %v3249
    %5501 = vmatprep.subr.bf16.mxu0 %v3258
    %5502 = vmatpush1.bf16.msra.mxu0 %v3257
    %5503 = vmatprep.subr.bf16.mxu0 %v3266
    %5504 = vmatpush1.bf16.msra.mxu0 %v3265
    %5505 = vmatprep.subr.bf16.mxu0 %v3274
    %5506 = vmatpush1.bf16.msra.mxu0 %v3273
    %5507 = vmatprep.subr.bf16.mxu0 %v3282
    %5508 = vmatpush1.bf16.msra.mxu0 %v3281
    %5509 = vmatprep.subr.bf16.mxu0 %v3290
    %5510 = vmatpush1.bf16.msra.mxu0 %v3289
    %5511 = vmatprep.subr.bf16.mxu0 %v3298
    %5512 = vmatpush1.bf16.msra.mxu0 %v3297
    %5513 = vmatprep.subr.bf16.mxu0 %v3306
    %5514 = vmatpush1.bf16.msra.mxu0 %v3305
    %5515 = vmatprep.subr.bf16.mxu0 %v3314
    %5516 = vmatpush1.bf16.msra.mxu0 %v3313
    %5517 = vmatprep.subr.bf16.mxu0 %v3322
    %5518 = vmatpush1.bf16.msra.mxu0 %v3321
    %5519 = vmatprep.subr.bf16.mxu0 %v3330
    %5520 = vmatpush1.bf16.msra.mxu0 %v3329
    %5521 = vmatprep.subr.bf16.mxu0 %v3338
    %5522 = vmatpush1.bf16.msra.mxu0 %v3337
    %5523 = vmatprep.subr.bf16.mxu0 %v3346
    %5524 = vmatpush1.bf16.msra.mxu0 %v3345
    %5525 = vmatprep.mubr.bf16.mxu0 %v892
    %5526 = vmatmul.mubr.bf16.gmra.mrb[0].mxu0 %v891
    %v5527 = vpop.f32.mrb[0].mxu0
    %v5528 = vadd.f32 0.0, %v5527
    %v5529 = vpop.f32.mrb[0].mxu0
    %v5530 = vadd.f32 0.0, %v5529
    %v5531 = vpop.f32.mrb[0].mxu0
    %v5532 = vpop.f32.mrb[0].mxu0
    %5533 = vdwg.mxu0
    %5534 = vmatprep.subr.bf16.mxu0 %v3354
    %5535 = vmatpush1.bf16.msra.mxu0 %v3353
    %5536 = vmatprep.subr.bf16.mxu0 %v3362
    %5537 = vmatpush1.bf16.msra.mxu0 %v3361
    %5538 = vmatprep.subr.bf16.mxu0 %v3370
    %5539 = vmatpush1.bf16.msra.mxu0 %v3369
    %5540 = vmatprep.subr.bf16.mxu0 %v3378
    %5541 = vmatpush1.bf16.msra.mxu0 %v3377
    %5542 = vmatprep.subr.bf16.mxu0 %v3386
    %5543 = vmatpush1.bf16.msra.mxu0 %v3385
    %5544 = vmatprep.subr.bf16.mxu0 %v3394
    %5545 = vmatpush1.bf16.msra.mxu0 %v3393
    %5546 = vmatprep.subr.bf16.mxu0 %v3402
    %5547 = vmatpush1.bf16.msra.mxu0 %v3401
    %5548 = vmatprep.subr.bf16.mxu0 %v3410
    %5549 = vmatpush1.bf16.msra.mxu0 %v3409
    %5550 = vmatprep.subr.bf16.mxu0 %v3418
    %5551 = vmatpush1.bf16.msra.mxu0 %v3417
    %5552 = vmatprep.subr.bf16.mxu0 %v3426
    %5553 = vmatpush1.bf16.msra.mxu0 %v3425
    %5554 = vmatprep.subr.bf16.mxu0 %v3434
    %5555 = vmatpush1.bf16.msra.mxu0 %v3433
    %5556 = vmatprep.subr.bf16.mxu0 %v3442
    %5557 = vmatpush1.bf16.msra.mxu0 %v3441
    %5558 = vmatprep.subr.bf16.mxu0 %v3450
    %5559 = vmatpush1.bf16.msra.mxu0 %v3449
    %5560 = vmatprep.subr.bf16.mxu0 %v3458
    %5561 = vmatpush1.bf16.msra.mxu0 %v3457
    %5562 = vmatprep.subr.bf16.mxu0 %v3466
    %5563 = vmatpush1.bf16.msra.mxu0 %v3465
    %5564 = vmatprep.subr.bf16.mxu0 %v3474
    %5565 = vmatpush1.bf16.msra.mxu0 %v3473
    %5566 = vmatprep.mubr.bf16.mxu0 %v894
    %5567 = vmatmul.mubr.bf16.gmra.mrb[0].mxu0 %v893
    %v5568 = vpop.f32.mrb[0].mxu0
    %v5569 = vadd.f32 %v5528, %v5568
    %v5570 = vpop.f32.mrb[0].mxu0
    %v5571 = vadd.f32 %v5530, %v5570
    %v5572 = vpop.f32.mrb[0].mxu0
    %v5573 = vpop.f32.mrb[0].mxu0
    %5574 = vdwg.mxu0
    %5575 = vmatprep.subr.bf16.mxu0 %v3482
    %5576 = vmatpush1.bf16.msra.mxu0 %v3481
    %5577 = vmatprep.subr.bf16.mxu0 %v3490
    %5578 = vmatpush1.bf16.msra.mxu0 %v3489
    %5579 = vmatprep.subr.bf16.mxu0 %v3498
    %5580 = vmatpush1.bf16.msra.mxu0 %v3497
    %5581 = vmatprep.subr.bf16.mxu0 %v3506
    %5582 = vmatpush1.bf16.msra.mxu0 %v3505
    %5583 = vmatprep.subr.bf16.mxu0 %v3514
    %5584 = vmatpush1.bf16.msra.mxu0 %v3513
    %5585 = vmatprep.subr.bf16.mxu0 %v3522
    %5586 = vmatpush1.bf16.msra.mxu0 %v3521
    %5587 = vmatprep.subr.bf16.mxu0 %v3530
    %5588 = vmatpush1.bf16.msra.mxu0 %v3529
    %5589 = vmatprep.subr.bf16.mxu0 %v3538
    %5590 = vmatpush1.bf16.msra.mxu0 %v3537
    %5591 = vmatprep.subr.bf16.mxu0 %v3546
    %5592 = vmatpush1.bf16.msra.mxu0 %v3545
    %5593 = vmatprep.subr.bf16.mxu0 %v3554
    %5594 = vmatpush1.bf16.msra.mxu0 %v3553
    %5595 = vmatprep.subr.bf16.mxu0 %v3562
    %5596 = vmatpush1.bf16.msra.mxu0 %v3561
    %5597 = vmatprep.subr.bf16.mxu0 %v3570
    %5598 = vmatpush1.bf16.msra.mxu0 %v3569
    %5599 = vmatprep.subr.bf16.mxu0 %v3578
    %5600 = vmatpush1.bf16.msra.mxu0 %v3577
    %5601 = vmatprep.subr.bf16.mxu0 %v3586
    %5602 = vmatpush1.bf16.msra.mxu0 %v3585
    %5603 = vmatprep.subr.bf16.mxu0 %v3594
    %5604 = vmatpush1.bf16.msra.mxu0 %v3593
    %5605 = vmatprep.subr.bf16.mxu0 %v3602
    %5606 = vmatpush1.bf16.msra.mxu0 %v3601
    %5607 = vmatprep.mubr.bf16.mxu0 %v896
    %5608 = vmatmul.mubr.bf16.gmra.mrb[0].mxu0 %v895
    %v5609 = vpop.f32.mrb[0].mxu0
    %v5610 = vadd.f32 %v5569, %v5609
    %v5611 = vpop.f32.mrb[0].mxu0
    %v5612 = vadd.f32 %v5571, %v5611
    %v5613 = vpop.f32.mrb[0].mxu0
    %v5614 = vpop.f32.mrb[0].mxu0
    %5615 = vdwg.mxu0
    %5616 = vmatprep.subr.bf16.mxu0 %v3610
    %5617 = vmatpush1.bf16.msra.mxu0 %v3609
    %5618 = vmatprep.subr.bf16.mxu0 %v3618
    %5619 = vmatpush1.bf16.msra.mxu0 %v3617
    %5620 = vmatprep.subr.bf16.mxu0 %v3626
    %5621 = vmatpush1.bf16.msra.mxu0 %v3625
    %5622 = vmatprep.subr.bf16.mxu0 %v3634
    %5623 = vmatpush1.bf16.msra.mxu0 %v3633
    %5624 = vmatprep.subr.bf16.mxu0 %v3642
    %5625 = vmatpush1.bf16.msra.mxu0 %v3641
    %5626 = vmatprep.subr.bf16.mxu0 %v3650
    %5627 = vmatpush1.bf16.msra.mxu0 %v3649
    %5628 = vmatprep.subr.bf16.mxu0 %v3658
    %5629 = vmatpush1.bf16.msra.mxu0 %v3657
    %5630 = vmatprep.subr.bf16.mxu0 %v3666
    %5631 = vmatpush1.bf16.msra.mxu0 %v3665
    %5632 = vmatprep.subr.bf16.mxu0 %v3674
    %5633 = vmatpush1.bf16.msra.mxu0 %v3673
    %5634 = vmatprep.subr.bf16.mxu0 %v3682
    %5635 = vmatpush1.bf16.msra.mxu0 %v3681
    %5636 = vmatprep.subr.bf16.mxu0 %v3690
    %5637 = vmatpush1.bf16.msra.mxu0 %v3689
    %5638 = vmatprep.subr.bf16.mxu0 %v3698
    %5639 = vmatpush1.bf16.msra.mxu0 %v3697
    %5640 = vmatprep.subr.bf16.mxu0 %v3706
    %5641 = vmatpush1.bf16.msra.mxu0 %v3705
    %5642 = vmatprep.subr.bf16.mxu0 %v3714
    %5643 = vmatpush1.bf16.msra.mxu0 %v3713
    %5644 = vmatprep.subr.bf16.mxu0 %v3722
    %5645 = vmatpush1.bf16.msra.mxu0 %v3721
    %5646 = vmatprep.subr.bf16.mxu0 %v3730
    %5647 = vmatpush1.bf16.msra.mxu0 %v3729
    %5648 = vmatprep.mubr.bf16.mxu0 %v898
    %5649 = vmatmul.mubr.bf16.gmra.mrb[0].mxu0 %v897
    %v5650 = vpop.f32.mrb[0].mxu0
    %v5651 = vadd.f32 %v5610, %v5650
    %v5652 = vpop.f32.mrb[0].mxu0
    %v5653 = vadd.f32 %v5612, %v5652
    %v5654 = vpop.f32.mrb[0].mxu0
    %v5655 = vpop.f32.mrb[0].mxu0
    %5656 = vdwg.mxu0
    %5657 = vmatprep.subr.bf16.mxu0 %v3738
    %5658 = vmatpush1.bf16.msra.mxu0 %v3737
    %5659 = vmatprep.subr.bf16.mxu0 %v3746
    %5660 = vmatpush1.bf16.msra.mxu0 %v3745
    %5661 = vmatprep.subr.bf16.mxu0 %v3754
    %5662 = vmatpush1.bf16.msra.mxu0 %v3753
    %5663 = vmatprep.subr.bf16.mxu0 %v3762
    %5664 = vmatpush1.bf16.msra.mxu0 %v3761
    %5665 = vmatprep.subr.bf16.mxu0 %v3770
    %5666 = vmatpush1.bf16.msra.mxu0 %v3769
    %5667 = vmatprep.subr.bf16.mxu0 %v3778
    %5668 = vmatpush1.bf16.msra.mxu0 %v3777
    %5669 = vmatprep.subr.bf16.mxu0 %v3786
    %5670 = vmatpush1.bf16.msra.mxu0 %v3785
    %5671 = vmatprep.subr.bf16.mxu0 %v3794
    %5672 = vmatpush1.bf16.msra.mxu0 %v3793
    %5673 = vmatprep.subr.bf16.mxu0 %v3802
    %5674 = vmatpush1.bf16.msra.mxu0 %v3801
    %5675 = vmatprep.subr.bf16.mxu0 %v3810
    %5676 = vmatpush1.bf16.msra.mxu0 %v3809
    %5677 = vmatprep.subr.bf16.mxu0 %v3818
    %5678 = vmatpush1.bf16.msra.mxu0 %v3817
    %5679 = vmatprep.subr.bf16.mxu0 %v3826
    %5680 = vmatpush1.bf16.msra.mxu0 %v3825
    %5681 = vmatprep.subr.bf16.mxu0 %v3834
    %5682 = vmatpush1.bf16.msra.mxu0 %v3833
    %5683 = vmatprep.subr.bf16.mxu0 %v3842
    %5684 = vmatpush1.bf16.msra.mxu0 %v3841
    %5685 = vmatprep.subr.bf16.mxu0 %v3850
    %5686 = vmatpush1.bf16.msra.mxu0 %v3849
    %5687 = vmatprep.subr.bf16.mxu0 %v3858
    %5688 = vmatpush1.bf16.msra.mxu0 %v3857
    %5689 = vmatprep.mubr.bf16.mxu0 %v900
    %5690 = vmatmul.mubr.bf16.gmra.mrb[0].mxu0 %v899
    %v5691 = vpop.f32.mrb[0].mxu0
    %v5692 = vadd.f32 %v5651, %v5691
    %v5693 = vpop.f32.mrb[0].mxu0
    %v5694 = vadd.f32 %v5653, %v5693
    %v5695 = vpop.f32.mrb[0].mxu0
    %v5696 = vpop.f32.mrb[0].mxu0
    %5697 = vdwg.mxu0
    %5698 = vmatprep.subr.bf16.mxu0 %v3866
    %5699 = vmatpush1.bf16.msra.mxu0 %v3865
    %5700 = vmatprep.subr.bf16.mxu0 %v3874
    %5701 = vmatpush1.bf16.msra.mxu0 %v3873
    %5702 = vmatprep.subr.bf16.mxu0 %v3882
    %5703 = vmatpush1.bf16.msra.mxu0 %v3881
    %5704 = vmatprep.subr.bf16.mxu0 %v3890
    %5705 = vmatpush1.bf16.msra.mxu0 %v3889
    %5706 = vmatprep.subr.bf16.mxu0 %v3898
    %5707 = vmatpush1.bf16.msra.mxu0 %v3897
    %5708 = vmatprep.subr.bf16.mxu0 %v3906
    %5709 = vmatpush1.bf16.msra.mxu0 %v3905
    %5710 = vmatprep.subr.bf16.mxu0 %v3914
    %5711 = vmatpush1.bf16.msra.mxu0 %v3913
    %5712 = vmatprep.subr.bf16.mxu0 %v3922
    %5713 = vmatpush1.bf16.msra.mxu0 %v3921
    %5714 = vmatprep.subr.bf16.mxu0 %v3930
    %5715 = vmatpush1.bf16.msra.mxu0 %v3929
    %5716 = vmatprep.subr.bf16.mxu0 %v3938
    %5717 = vmatpush1.bf16.msra.mxu0 %v3937
    %5718 = vmatprep.subr.bf16.mxu0 %v3946
    %5719 = vmatpush1.bf16.msra.mxu0 %v3945
    %5720 = vmatprep.subr.bf16.mxu0 %v3954
    %5721 = vmatpush1.bf16.msra.mxu0 %v3953
    %5722 = vmatprep.subr.bf16.mxu0 %v3962
    %5723 = vmatpush1.bf16.msra.mxu0 %v3961
    %5724 = vmatprep.subr.bf16.mxu0 %v3970
    %5725 = vmatpush1.bf16.msra.mxu0 %v3969
    %5726 = vmatprep.subr.bf16.mxu0 %v3978
    %5727 = vmatpush1.bf16.msra.mxu0 %v3977
    %5728 = vmatprep.subr.bf16.mxu0 %v3986
    %5729 = vmatpush1.bf16.msra.mxu0 %v3985
    %5730 = vmatprep.mubr.bf16.mxu0 %v902
    %5731 = vmatmul.mubr.bf16.gmra.mrb[0].mxu0 %v901
    %v5732 = vpop.f32.mrb[0].mxu0
    %v5733 = vadd.f32 %v5692, %v5732
    %v5734 = vpop.f32.mrb[0].mxu0
    %v5735 = vadd.f32 %v5694, %v5734
    %v5736 = vpop.f32.mrb[0].mxu0
    %v5737 = vpop.f32.mrb[0].mxu0
    %5738 = vdwg.mxu0
    %v5739 = vld [vmem:[#allocation7] sm:$0xff]
    %v5741 = vlaneseq
    %v5742 = vshrl.u32 %v5741, 7
    %v5743 = vsub.s32 0, %v5742
    %v5744 = vrot.slane %v5739, %v5743
    %v5745 = vlaneseq
    %v5746 = vshrl.u32 %v5745, 7
    %v5747 = vsub.s32 1, %v5746
    %v5748 = vrot.slane %v5739, %v5747
    %v5749 = vlaneseq
    %v5750 = vshrl.u32 %v5749, 7
    %v5751 = vsub.s32 2, %v5750
    %v5752 = vrot.slane %v5739, %v5751
    %v5753 = vlaneseq
    %v5754 = vshrl.u32 %v5753, 7
    %v5755 = vsub.s32 3, %v5754
    %v5756 = vrot.slane %v5739, %v5755
    %v5757 = vlaneseq
    %v5758 = vshrl.u32 %v5757, 7
    %v5759 = vsub.s32 4, %v5758
    %v5760 = vrot.slane %v5739, %v5759
    %v5761 = vlaneseq
    %v5762 = vshrl.u32 %v5761, 7
    %v5763 = vsub.s32 5, %v5762
    %v5764 = vrot.slane %v5739, %v5763
    %v5765 = vlaneseq
    %v5766 = vshrl.u32 %v5765, 7
    %v5767 = vsub.s32 6, %v5766
    %v5768 = vrot.slane %v5739, %v5767
    %v5769 = vlaneseq
    %v5770 = vshrl.u32 %v5769, 7
    %v5771 = vsub.s32 7, %v5770
    %v5772 = vrot.slane %v5739, %v5771
    %v5781 = vmul.f32 %v4995, %v5744
    %v5782 = vmul.f32 %v4997, %v5748
    %v5783 = vmul.f32 %v5241, %v5752
    %v5784 = vmul.f32 %v5243, %v5756
    %v5785 = vmul.f32 %v5487, %v5760
    %v5786 = vmul.f32 %v5489, %v5764
    %v5787 = vmul.f32 %v5733, %v5768
    %v5788 = vmul.f32 %v5735, %v5772
    %v5789 = vld [vmem:[#allocation8] sm:$0xff]
    %v5791 = vlaneseq
    %v5792 = vshrl.u32 %v5791, 7
    %v5793 = vsub.s32 0, %v5792
    %v5794 = vrot.slane %v5789, %v5793
    %v5795 = vlaneseq
    %v5796 = vshrl.u32 %v5795, 7
    %v5797 = vsub.s32 1, %v5796
    %v5798 = vrot.slane %v5789, %v5797
    %v5799 = vlaneseq
    %v5800 = vshrl.u32 %v5799, 7
    %v5801 = vsub.s32 2, %v5800
    %v5802 = vrot.slane %v5789, %v5801
    %v5803 = vlaneseq
    %v5804 = vshrl.u32 %v5803, 7
    %v5805 = vsub.s32 3, %v5804
    %v5806 = vrot.slane %v5789, %v5805
    %v5807 = vlaneseq
    %v5808 = vshrl.u32 %v5807, 7
    %v5809 = vsub.s32 4, %v5808
    %v5810 = vrot.slane %v5789, %v5809
    %v5811 = vlaneseq
    %v5812 = vshrl.u32 %v5811, 7
    %v5813 = vsub.s32 5, %v5812
    %v5814 = vrot.slane %v5789, %v5813
    %v5815 = vlaneseq
    %v5816 = vshrl.u32 %v5815, 7
    %v5817 = vsub.s32 6, %v5816
    %v5818 = vrot.slane %v5789, %v5817
    %v5819 = vlaneseq
    %v5820 = vshrl.u32 %v5819, 7
    %v5821 = vsub.s32 7, %v5820
    %v5822 = vrot.slane %v5789, %v5821
    %v5831 = vadd.f32 %v5781, %v5794
    %v5832 = vadd.f32 %v5782, %v5798
    %v5833 = vadd.f32 %v5783, %v5802
    %v5834 = vadd.f32 %v5784, %v5806
    %v5835 = vadd.f32 %v5785, %v5810
    %v5836 = vadd.f32 %v5786, %v5814
    %v5837 = vadd.f32 %v5787, %v5818
    %v5838 = vadd.f32 %v5788, %v5822
    %v5839 = vmax.f32 %v5831, 0.0
    %v5840 = vmax.f32 %v5832, 0.0
    %v5841 = vmax.f32 %v5833, 0.0
    %v5842 = vmax.f32 %v5834, 0.0
    %v5843 = vmax.f32 %v5835, 0.0
    %v5844 = vmax.f32 %v5836, 0.0
    %v5845 = vmax.f32 %v5837, 0.0
    %v5846 = vmax.f32 %v5838, 0.0
    %v5847 = vpack.c.bf16 %v5839, %v5839
    %v5848 = vpack.c.bf16 %v5840, %v5840
    %v5849 = vpack.c.bf16 %v5841, %v5841
    %v5850 = vpack.c.bf16 %v5842, %v5842
    %v5851 = vpack.c.bf16 %v5843, %v5843
    %v5852 = vpack.c.bf16 %v5844, %v5844
    %v5853 = vpack.c.bf16 %v5845, %v5845
    %v5854 = vpack.c.bf16 %v5846, %v5846
    %v5855 = vld [vmem:[#allocation10] sm:$0xf]
    %v5856 = vld [vmem:[#allocation10 + $0x4] sm:$0xf]
    %v5857 = vld [vmem:[#allocation10 + $0x8] sm:$0xf]
    %v5858 = vld [vmem:[#allocation10 + $0xc] sm:$0xf]
    %v5859 = vld [vmem:[#allocation10 + $0x10] sm:$0xf]
    %v5860 = vld [vmem:[#allocation10 + $0x14] sm:$0xf]
    %v5861 = vld [vmem:[#allocation10 + $0x18] sm:$0xf]
    %v5862 = vld [vmem:[#allocation10 + $0x1c] sm:$0xf]
    %v5863 = vld [vmem:[#allocation10 + $0x20] sm:$0xf]
    %v5864 = vld [vmem:[#allocation10 + $0x24] sm:$0xf]
    %v5865 = vld [vmem:[#allocation10 + $0x28] sm:$0xf]
    %v5866 = vld [vmem:[#allocation10 + $0x2c] sm:$0xf]
    %v5867 = vld [vmem:[#allocation10 + $0x30] sm:$0xf]
    %v5868 = vld [vmem:[#allocation10 + $0x34] sm:$0xf]
    %v5869 = vld [vmem:[#allocation10 + $0x38] sm:$0xf]
    %v5870 = vld [vmem:[#allocation10 + $0x3c] sm:$0xf]
    %v5871 = vld [vmem:[#allocation10 + $0x40] sm:$0xf]
    %v5872 = vld [vmem:[#allocation10 + $0x44] sm:$0xf]
    %v5873 = vld [vmem:[#allocation10 + $0x48] sm:$0xf]
    %v5874 = vld [vmem:[#allocation10 + $0x4c] sm:$0xf]
    %v5875 = vld [vmem:[#allocation10 + $0x50] sm:$0xf]
    %v5876 = vld [vmem:[#allocation10 + $0x54] sm:$0xf]
    %v5877 = vld [vmem:[#allocation10 + $0x58] sm:$0xf]
    %v5878 = vld [vmem:[#allocation10 + $0x5c] sm:$0xf]
    %v5879 = vld [vmem:[#allocation10 + $0x60] sm:$0xf]
    %v5880 = vld [vmem:[#allocation10 + $0x64] sm:$0xf]
    %v5881 = vld [vmem:[#allocation10 + $0x68] sm:$0xf]
    %v5882 = vld [vmem:[#allocation10 + $0x6c] sm:$0xf]
    %v5883 = vld [vmem:[#allocation10 + $0x70] sm:$0xf]
    %v5884 = vld [vmem:[#allocation10 + $0x74] sm:$0xf]
    %v5885 = vld [vmem:[#allocation10 + $0x78] sm:$0xf]
    %v5886 = vld [vmem:[#allocation10 + $0x7c] sm:$0xf]
    %v5887 = vld [vmem:[#allocation10 + $0x80] sm:$0xf]
    %v5888 = vld [vmem:[#allocation10 + $0x84] sm:$0xf]
    %v5889 = vld [vmem:[#allocation10 + $0x88] sm:$0xf]
    %v5890 = vld [vmem:[#allocation10 + $0x8c] sm:$0xf]
    %v5891 = vld [vmem:[#allocation10 + $0x90] sm:$0xf]
    %v5892 = vld [vmem:[#allocation10 + $0x94] sm:$0xf]
    %v5893 = vld [vmem:[#allocation10 + $0x98] sm:$0xf]
    %v5894 = vld [vmem:[#allocation10 + $0x9c] sm:$0xf]
    %v5895 = vld [vmem:[#allocation10 + $0xa0] sm:$0xf]
    %v5896 = vld [vmem:[#allocation10 + $0xa4] sm:$0xf]
    %v5897 = vld [vmem:[#allocation10 + $0xa8] sm:$0xf]
    %v5898 = vld [vmem:[#allocation10 + $0xac] sm:$0xf]
    %v5899 = vld [vmem:[#allocation10 + $0xb0] sm:$0xf]
    %v5900 = vld [vmem:[#allocation10 + $0xb4] sm:$0xf]
    %v5901 = vld [vmem:[#allocation10 + $0xb8] sm:$0xf]
    %v5902 = vld [vmem:[#allocation10 + $0xbc] sm:$0xf]
    %v5903 = vld [vmem:[#allocation10 + $0xc0] sm:$0xf]
    %v5904 = vld [vmem:[#allocation10 + $0xc4] sm:$0xf]
    %v5905 = vld [vmem:[#allocation10 + $0xc8] sm:$0xf]
    %v5906 = vld [vmem:[#allocation10 + $0xcc] sm:$0xf]
    %v5907 = vld [vmem:[#allocation10 + $0xd0] sm:$0xf]
    %v5908 = vld [vmem:[#allocation10 + $0xd4] sm:$0xf]
    %v5909 = vld [vmem:[#allocation10 + $0xd8] sm:$0xf]
    %v5910 = vld [vmem:[#allocation10 + $0xdc] sm:$0xf]
    %v5911 = vld [vmem:[#allocation10 + $0xe0] sm:$0xf]
    %v5912 = vld [vmem:[#allocation10 + $0xe4] sm:$0xf]
    %v5913 = vld [vmem:[#allocation10 + $0xe8] sm:$0xf]
    %v5914 = vld [vmem:[#allocation10 + $0xec] sm:$0xf]
    %v5915 = vld [vmem:[#allocation10 + $0xf0] sm:$0xf]
    %v5916 = vld [vmem:[#allocation10 + $0xf4] sm:$0xf]
    %v5917 = vld [vmem:[#allocation10 + $0xf8] sm:$0xf]
    %v5918 = vld [vmem:[#allocation10 + $0xfc] sm:$0xf]
    %v5919 = vld [vmem:[#allocation10 + $0x100] sm:$0xf]
    %v5920 = vld [vmem:[#allocation10 + $0x104] sm:$0xf]
    %v5921 = vld [vmem:[#allocation10 + $0x108] sm:$0xf]
    %v5922 = vld [vmem:[#allocation10 + $0x10c] sm:$0xf]
    %v5923 = vld [vmem:[#allocation10 + $0x110] sm:$0xf]
    %v5924 = vld [vmem:[#allocation10 + $0x114] sm:$0xf]
    %v5925 = vld [vmem:[#allocation10 + $0x118] sm:$0xf]
    %v5926 = vld [vmem:[#allocation10 + $0x11c] sm:$0xf]
    %v5927 = vld [vmem:[#allocation10 + $0x120] sm:$0xf]
    %v5928 = vld [vmem:[#allocation10 + $0x124] sm:$0xf]
    %v5929 = vld [vmem:[#allocation10 + $0x128] sm:$0xf]
    %v5930 = vld [vmem:[#allocation10 + $0x12c] sm:$0xf]
    %v5931 = vld [vmem:[#allocation10 + $0x130] sm:$0xf]
    %v5932 = vld [vmem:[#allocation10 + $0x134] sm:$0xf]
    %v5933 = vld [vmem:[#allocation10 + $0x138] sm:$0xf]
    %v5934 = vld [vmem:[#allocation10 + $0x13c] sm:$0xf]
    %v5935 = vld [vmem:[#allocation10 + $0x140] sm:$0xf]
    %v5936 = vld [vmem:[#allocation10 + $0x144] sm:$0xf]
    %v5937 = vld [vmem:[#allocation10 + $0x148] sm:$0xf]
    %v5938 = vld [vmem:[#allocation10 + $0x14c] sm:$0xf]
    %v5939 = vld [vmem:[#allocation10 + $0x150] sm:$0xf]
    %v5940 = vld [vmem:[#allocation10 + $0x154] sm:$0xf]
    %v5941 = vld [vmem:[#allocation10 + $0x158] sm:$0xf]
    %v5942 = vld [vmem:[#allocation10 + $0x15c] sm:$0xf]
    %v5943 = vld [vmem:[#allocation10 + $0x160] sm:$0xf]
    %v5944 = vld [vmem:[#allocation10 + $0x164] sm:$0xf]
    %v5945 = vld [vmem:[#allocation10 + $0x168] sm:$0xf]
    %v5946 = vld [vmem:[#allocation10 + $0x16c] sm:$0xf]
    %v5947 = vld [vmem:[#allocation10 + $0x170] sm:$0xf]
    %v5948 = vld [vmem:[#allocation10 + $0x174] sm:$0xf]
    %v5949 = vld [vmem:[#allocation10 + $0x178] sm:$0xf]
    %v5950 = vld [vmem:[#allocation10 + $0x17c] sm:$0xf]
    %v5951 = vld [vmem:[#allocation10 + $0x180] sm:$0xf]
    %v5952 = vld [vmem:[#allocation10 + $0x184] sm:$0xf]
    %v5953 = vld [vmem:[#allocation10 + $0x188] sm:$0xf]
    %v5954 = vld [vmem:[#allocation10 + $0x18c] sm:$0xf]
    %v5955 = vld [vmem:[#allocation10 + $0x190] sm:$0xf]
    %v5956 = vld [vmem:[#allocation10 + $0x194] sm:$0xf]
    %v5957 = vld [vmem:[#allocation10 + $0x198] sm:$0xf]
    %v5958 = vld [vmem:[#allocation10 + $0x19c] sm:$0xf]
    %v5959 = vld [vmem:[#allocation10 + $0x1a0] sm:$0xf]
    %v5960 = vld [vmem:[#allocation10 + $0x1a4] sm:$0xf]
    %v5961 = vld [vmem:[#allocation10 + $0x1a8] sm:$0xf]
    %v5962 = vld [vmem:[#allocation10 + $0x1ac] sm:$0xf]
    %v5963 = vld [vmem:[#allocation10 + $0x1b0] sm:$0xf]
    %v5964 = vld [vmem:[#allocation10 + $0x1b4] sm:$0xf]
    %v5965 = vld [vmem:[#allocation10 + $0x1b8] sm:$0xf]
    %v5966 = vld [vmem:[#allocation10 + $0x1bc] sm:$0xf]
    %v5967 = vld [vmem:[#allocation10 + $0x1c0] sm:$0xf]
    %v5968 = vld [vmem:[#allocation10 + $0x1c4] sm:$0xf]
    %v5969 = vld [vmem:[#allocation10 + $0x1c8] sm:$0xf]
    %v5970 = vld [vmem:[#allocation10 + $0x1cc] sm:$0xf]
    %v5971 = vld [vmem:[#allocation10 + $0x1d0] sm:$0xf]
    %v5972 = vld [vmem:[#allocation10 + $0x1d4] sm:$0xf]
    %v5973 = vld [vmem:[#allocation10 + $0x1d8] sm:$0xf]
    %v5974 = vld [vmem:[#allocation10 + $0x1dc] sm:$0xf]
    %v5975 = vld [vmem:[#allocation10 + $0x1e0] sm:$0xf]
    %v5976 = vld [vmem:[#allocation10 + $0x1e4] sm:$0xf]
    %v5977 = vld [vmem:[#allocation10 + $0x1e8] sm:$0xf]
    %v5978 = vld [vmem:[#allocation10 + $0x1ec] sm:$0xf]
    %v5979 = vld [vmem:[#allocation10 + $0x1f0] sm:$0xf]
    %v5980 = vld [vmem:[#allocation10 + $0x1f4] sm:$0xf]
    %v5981 = vld [vmem:[#allocation10 + $0x1f8] sm:$0xf]
    %v5982 = vld [vmem:[#allocation10 + $0x1fc] sm:$0xf]
    %v5983 = vld [vmem:[#allocation11] sm:$0x1]
    %v5985 = vlaneseq
    %v5986 = vshrl.u32 %v5985, 7
    %v5987 = vsub.s32 0, %v5986
    %v5988 = vrot.slane %v5983, %v5987
    %v6118 = vunpack.c.l.b16 %v5855
    %v6119 = vunpack.c.l.b16 %v5856
    %v6120 = vunpack.c.l.b16 %v5857
    %v6121 = vunpack.c.l.b16 %v5858
    %v6122 = vunpack.c.l.b16 %v5859
    %v6123 = vunpack.c.l.b16 %v5860
    %v6124 = vunpack.c.l.b16 %v5861
    %v6125 = vunpack.c.l.b16 %v5862
    %v6126 = vunpack.c.l.b16 %v5863
    %v6127 = vunpack.c.l.b16 %v5864
    %v6128 = vunpack.c.l.b16 %v5865
    %v6129 = vunpack.c.l.b16 %v5866
    %v6130 = vunpack.c.l.b16 %v5867
    %v6131 = vunpack.c.l.b16 %v5868
    %v6132 = vunpack.c.l.b16 %v5869
    %v6133 = vunpack.c.l.b16 %v5870
    %v6134 = vunpack.c.l.b16 %v5871
    %v6135 = vunpack.c.l.b16 %v5872
    %v6136 = vunpack.c.l.b16 %v5873
    %v6137 = vunpack.c.l.b16 %v5874
    %v6138 = vunpack.c.l.b16 %v5875
    %v6139 = vunpack.c.l.b16 %v5876
    %v6140 = vunpack.c.l.b16 %v5877
    %v6141 = vunpack.c.l.b16 %v5878
    %v6142 = vunpack.c.l.b16 %v5879
    %v6143 = vunpack.c.l.b16 %v5880
    %v6144 = vunpack.c.l.b16 %v5881
    %v6145 = vunpack.c.l.b16 %v5882
    %v6146 = vunpack.c.l.b16 %v5883
    %v6147 = vunpack.c.l.b16 %v5884
    %v6148 = vunpack.c.l.b16 %v5885
    %v6149 = vunpack.c.l.b16 %v5886
    %v6150 = vunpack.c.l.b16 %v5887
    %v6151 = vunpack.c.l.b16 %v5888
    %v6152 = vunpack.c.l.b16 %v5889
    %v6153 = vunpack.c.l.b16 %v5890
    %v6154 = vunpack.c.l.b16 %v5891
    %v6155 = vunpack.c.l.b16 %v5892
    %v6156 = vunpack.c.l.b16 %v5893
    %v6157 = vunpack.c.l.b16 %v5894
    %v6158 = vunpack.c.l.b16 %v5895
    %v6159 = vunpack.c.l.b16 %v5896
    %v6160 = vunpack.c.l.b16 %v5897
    %v6161 = vunpack.c.l.b16 %v5898
    %v6162 = vunpack.c.l.b16 %v5899
    %v6163 = vunpack.c.l.b16 %v5900
    %v6164 = vunpack.c.l.b16 %v5901
    %v6165 = vunpack.c.l.b16 %v5902
    %v6166 = vunpack.c.l.b16 %v5903
    %v6167 = vunpack.c.l.b16 %v5904
    %v6168 = vunpack.c.l.b16 %v5905
    %v6169 = vunpack.c.l.b16 %v5906
    %v6170 = vunpack.c.l.b16 %v5907
    %v6171 = vunpack.c.l.b16 %v5908
    %v6172 = vunpack.c.l.b16 %v5909
    %v6173 = vunpack.c.l.b16 %v5910
    %v6174 = vunpack.c.l.b16 %v5911
    %v6175 = vunpack.c.l.b16 %v5912
    %v6176 = vunpack.c.l.b16 %v5913
    %v6177 = vunpack.c.l.b16 %v5914
    %v6178 = vunpack.c.l.b16 %v5915
    %v6179 = vunpack.c.l.b16 %v5916
    %v6180 = vunpack.c.l.b16 %v5917
    %v6181 = vunpack.c.l.b16 %v5918
    %v6182 = vunpack.c.l.b16 %v5919
    %v6183 = vunpack.c.l.b16 %v5920
    %v6184 = vunpack.c.l.b16 %v5921
    %v6185 = vunpack.c.l.b16 %v5922
    %v6186 = vunpack.c.l.b16 %v5923
    %v6187 = vunpack.c.l.b16 %v5924
    %v6188 = vunpack.c.l.b16 %v5925
    %v6189 = vunpack.c.l.b16 %v5926
    %v6190 = vunpack.c.l.b16 %v5927
    %v6191 = vunpack.c.l.b16 %v5928
    %v6192 = vunpack.c.l.b16 %v5929
    %v6193 = vunpack.c.l.b16 %v5930
    %v6194 = vunpack.c.l.b16 %v5931
    %v6195 = vunpack.c.l.b16 %v5932
    %v6196 = vunpack.c.l.b16 %v5933
    %v6197 = vunpack.c.l.b16 %v5934
    %v6198 = vunpack.c.l.b16 %v5935
    %v6199 = vunpack.c.l.b16 %v5936
    %v6200 = vunpack.c.l.b16 %v5937
    %v6201 = vunpack.c.l.b16 %v5938
    %v6202 = vunpack.c.l.b16 %v5939
    %v6203 = vunpack.c.l.b16 %v5940
    %v6204 = vunpack.c.l.b16 %v5941
    %v6205 = vunpack.c.l.b16 %v5942
    %v6206 = vunpack.c.l.b16 %v5943
    %v6207 = vunpack.c.l.b16 %v5944
    %v6208 = vunpack.c.l.b16 %v5945
    %v6209 = vunpack.c.l.b16 %v5946
    %v6210 = vunpack.c.l.b16 %v5947
    %v6211 = vunpack.c.l.b16 %v5948
    %v6212 = vunpack.c.l.b16 %v5949
    %v6213 = vunpack.c.l.b16 %v5950
    %v6214 = vunpack.c.l.b16 %v5951
    %v6215 = vunpack.c.l.b16 %v5952
    %v6216 = vunpack.c.l.b16 %v5953
    %v6217 = vunpack.c.l.b16 %v5954
    %v6218 = vunpack.c.l.b16 %v5955
    %v6219 = vunpack.c.l.b16 %v5956
    %v6220 = vunpack.c.l.b16 %v5957
    %v6221 = vunpack.c.l.b16 %v5958
    %v6222 = vunpack.c.l.b16 %v5959
    %v6223 = vunpack.c.l.b16 %v5960
    %v6224 = vunpack.c.l.b16 %v5961
    %v6225 = vunpack.c.l.b16 %v5962
    %v6226 = vunpack.c.l.b16 %v5963
    %v6227 = vunpack.c.l.b16 %v5964
    %v6228 = vunpack.c.l.b16 %v5965
    %v6229 = vunpack.c.l.b16 %v5966
    %v6230 = vunpack.c.l.b16 %v5967
    %v6231 = vunpack.c.l.b16 %v5968
    %v6232 = vunpack.c.l.b16 %v5969
    %v6233 = vunpack.c.l.b16 %v5970
    %v6234 = vunpack.c.l.b16 %v5971
    %v6235 = vunpack.c.l.b16 %v5972
    %v6236 = vunpack.c.l.b16 %v5973
    %v6237 = vunpack.c.l.b16 %v5974
    %v6238 = vunpack.c.l.b16 %v5975
    %v6239 = vunpack.c.l.b16 %v5976
    %v6240 = vunpack.c.l.b16 %v5977
    %v6241 = vunpack.c.l.b16 %v5978
    %v6242 = vunpack.c.l.b16 %v5979
    %v6243 = vunpack.c.l.b16 %v5980
    %v6244 = vunpack.c.l.b16 %v5981
    %v6245 = vunpack.c.l.b16 %v5982
    %v6246 = vpack.c.b16 %v6119, %v6118
    %v6247 = vpack.c.b16 %v6121, %v6120
    %v6248 = vpack.c.b16 %v6123, %v6122
    %v6249 = vpack.c.b16 %v6125, %v6124
    %v6250 = vpack.c.b16 %v6127, %v6126
    %v6251 = vpack.c.b16 %v6129, %v6128
    %v6252 = vpack.c.b16 %v6131, %v6130
    %v6253 = vpack.c.b16 %v6133, %v6132
    %v6254 = vpack.c.b16 %v6135, %v6134
    %v6255 = vpack.c.b16 %v6137, %v6136
    %v6256 = vpack.c.b16 %v6139, %v6138
    %v6257 = vpack.c.b16 %v6141, %v6140
    %v6258 = vpack.c.b16 %v6143, %v6142
    %v6259 = vpack.c.b16 %v6145, %v6144
    %v6260 = vpack.c.b16 %v6147, %v6146
    %v6261 = vpack.c.b16 %v6149, %v6148
    %v6262 = vpack.c.b16 %v6151, %v6150
    %v6263 = vpack.c.b16 %v6153, %v6152
    %v6264 = vpack.c.b16 %v6155, %v6154
    %v6265 = vpack.c.b16 %v6157, %v6156
    %v6266 = vpack.c.b16 %v6159, %v6158
    %v6267 = vpack.c.b16 %v6161, %v6160
    %v6268 = vpack.c.b16 %v6163, %v6162
    %v6269 = vpack.c.b16 %v6165, %v6164
    %v6270 = vpack.c.b16 %v6167, %v6166
    %v6271 = vpack.c.b16 %v6169, %v6168
    %v6272 = vpack.c.b16 %v6171, %v6170
    %v6273 = vpack.c.b16 %v6173, %v6172
    %v6274 = vpack.c.b16 %v6175, %v6174
    %v6275 = vpack.c.b16 %v6177, %v6176
    %v6276 = vpack.c.b16 %v6179, %v6178
    %v6277 = vpack.c.b16 %v6181, %v6180
    %v6278 = vpack.c.b16 %v6183, %v6182
    %v6279 = vpack.c.b16 %v6185, %v6184
    %v6280 = vpack.c.b16 %v6187, %v6186
    %v6281 = vpack.c.b16 %v6189, %v6188
    %v6282 = vpack.c.b16 %v6191, %v6190
    %v6283 = vpack.c.b16 %v6193, %v6192
    %v6284 = vpack.c.b16 %v6195, %v6194
    %v6285 = vpack.c.b16 %v6197, %v6196
    %v6286 = vpack.c.b16 %v6199, %v6198
    %v6287 = vpack.c.b16 %v6201, %v6200
    %v6288 = vpack.c.b16 %v6203, %v6202
    %v6289 = vpack.c.b16 %v6205, %v6204
    %v6290 = vpack.c.b16 %v6207, %v6206
    %v6291 = vpack.c.b16 %v6209, %v6208
    %v6292 = vpack.c.b16 %v6211, %v6210
    %v6293 = vpack.c.b16 %v6213, %v6212
    %v6294 = vpack.c.b16 %v6215, %v6214
    %v6295 = vpack.c.b16 %v6217, %v6216
    %v6296 = vpack.c.b16 %v6219, %v6218
    %v6297 = vpack.c.b16 %v6221, %v6220
    %v6298 = vpack.c.b16 %v6223, %v6222
    %v6299 = vpack.c.b16 %v6225, %v6224
    %v6300 = vpack.c.b16 %v6227, %v6226
    %v6301 = vpack.c.b16 %v6229, %v6228
    %v6302 = vpack.c.b16 %v6231, %v6230
    %v6303 = vpack.c.b16 %v6233, %v6232
    %v6304 = vpack.c.b16 %v6235, %v6234
    %v6305 = vpack.c.b16 %v6237, %v6236
    %v6306 = vpack.c.b16 %v6239, %v6238
    %v6307 = vpack.c.b16 %v6241, %v6240
    %v6308 = vpack.c.b16 %v6243, %v6242
    %v6309 = vpack.c.b16 %v6245, %v6244
    %6374 = vmatprep.subr.bf16.mxu0 0
    %6375 = vmatpush1.bf16.msra.mxu0 %v6246
    %6376 = vmatprep.subr.bf16.mxu0 0
    %6377 = vmatpush1.bf16.msra.mxu0 %v6247
    %6378 = vmatprep.subr.bf16.mxu0 0
    %6379 = vmatpush1.bf16.msra.mxu0 %v6248
    %6380 = vmatprep.subr.bf16.mxu0 0
    %6381 = vmatpush1.bf16.msra.mxu0 %v6249
    %6382 = vmatprep.subr.bf16.mxu0 0
    %6383 = vmatpush1.bf16.msra.mxu0 %v6250
    %6384 = vmatprep.subr.bf16.mxu0 0
    %6385 = vmatpush1.bf16.msra.mxu0 %v6251
    %6386 = vmatprep.subr.bf16.mxu0 0
    %6387 = vmatpush1.bf16.msra.mxu0 %v6252
    %6388 = vmatprep.subr.bf16.mxu0 0
    %6389 = vmatpush1.bf16.msra.mxu0 %v6253
    %6390 = vmatprep.subr.bf16.mxu0 0
    %6391 = vmatpush1.bf16.msra.mxu0 %v6254
    %6392 = vmatprep.subr.bf16.mxu0 0
    %6393 = vmatpush1.bf16.msra.mxu0 %v6255
    %6394 = vmatprep.subr.bf16.mxu0 0
    %6395 = vmatpush1.bf16.msra.mxu0 %v6256
    %6396 = vmatprep.subr.bf16.mxu0 0
    %6397 = vmatpush1.bf16.msra.mxu0 %v6257
    %6398 = vmatprep.subr.bf16.mxu0 0
    %6399 = vmatpush1.bf16.msra.mxu0 %v6258
    %6400 = vmatprep.subr.bf16.mxu0 0
    %6401 = vmatpush1.bf16.msra.mxu0 %v6259
    %6402 = vmatprep.subr.bf16.mxu0 0
    %6403 = vmatpush1.bf16.msra.mxu0 %v6260
    %6404 = vmatprep.subr.bf16.mxu0 0
    %6405 = vmatpush1.bf16.msra.mxu0 %v6261
    %6406 = vmatprep.mubr.bf16.mxu0 %v5848
    %6407 = vmatmul.mubr.bf16.gmra.mrb[0].mxu0 %v5847
    %v6408 = vpop.f32.mrb[0].mxu0
    %v6409 = vadd.f32 %v5988, %v6408
    %v6410 = vpop.f32.mrb[0].mxu0
    %v6411 = vpop.f32.mrb[0].mxu0
    %v6412 = vpop.f32.mrb[0].mxu0
    %6413 = vdwg.mxu0
    %6414 = vmatprep.subr.bf16.mxu0 0
    %6415 = vmatpush1.bf16.msra.mxu0 %v6262
    %6416 = vmatprep.subr.bf16.mxu0 0
    %6417 = vmatpush1.bf16.msra.mxu0 %v6263
    %6418 = vmatprep.subr.bf16.mxu0 0
    %6419 = vmatpush1.bf16.msra.mxu0 %v6264
    %6420 = vmatprep.subr.bf16.mxu0 0
    %6421 = vmatpush1.bf16.msra.mxu0 %v6265
    %6422 = vmatprep.subr.bf16.mxu0 0
    %6423 = vmatpush1.bf16.msra.mxu0 %v6266
    %6424 = vmatprep.subr.bf16.mxu0 0
    %6425 = vmatpush1.bf16.msra.mxu0 %v6267
    %6426 = vmatprep.subr.bf16.mxu0 0
    %6427 = vmatpush1.bf16.msra.mxu0 %v6268
    %6428 = vmatprep.subr.bf16.mxu0 0
    %6429 = vmatpush1.bf16.msra.mxu0 %v6269
    %6430 = vmatprep.subr.bf16.mxu0 0
    %6431 = vmatpush1.bf16.msra.mxu0 %v6270
    %6432 = vmatprep.subr.bf16.mxu0 0
    %6433 = vmatpush1.bf16.msra.mxu0 %v6271
    %6434 = vmatprep.subr.bf16.mxu0 0
    %6435 = vmatpush1.bf16.msra.mxu0 %v6272
    %6436 = vmatprep.subr.bf16.mxu0 0
    %6437 = vmatpush1.bf16.msra.mxu0 %v6273
    %6438 = vmatprep.subr.bf16.mxu0 0
    %6439 = vmatpush1.bf16.msra.mxu0 %v6274
    %6440 = vmatprep.subr.bf16.mxu0 0
    %6441 = vmatpush1.bf16.msra.mxu0 %v6275
    %6442 = vmatprep.subr.bf16.mxu0 0
    %6443 = vmatpush1.bf16.msra.mxu0 %v6276
    %6444 = vmatprep.subr.bf16.mxu0 0
    %6445 = vmatpush1.bf16.msra.mxu0 %v6277
    %6446 = vmatprep.mubr.bf16.mxu0 %v5850
    %6447 = vmatmul.mubr.bf16.gmra.mrb[0].mxu0 %v5849
    %v6448 = vpop.f32.mrb[0].mxu0
    %v6449 = vadd.f32 %v6409, %v6448
    %v6450 = vpop.f32.mrb[0].mxu0
    %v6451 = vpop.f32.mrb[0].mxu0
    %v6452 = vpop.f32.mrb[0].mxu0
    %6453 = vdwg.mxu0
    %6454 = vmatprep.subr.bf16.mxu0 0
    %6455 = vmatpush1.bf16.msra.mxu0 %v6278
    %6456 = vmatprep.subr.bf16.mxu0 0
    %6457 = vmatpush1.bf16.msra.mxu0 %v6279
    %6458 = vmatprep.subr.bf16.mxu0 0
    %6459 = vmatpush1.bf16.msra.mxu0 %v6280
    %6460 = vmatprep.subr.bf16.mxu0 0
    %6461 = vmatpush1.bf16.msra.mxu0 %v6281
    %6462 = vmatprep.subr.bf16.mxu0 0
    %6463 = vmatpush1.bf16.msra.mxu0 %v6282
    %6464 = vmatprep.subr.bf16.mxu0 0
    %6465 = vmatpush1.bf16.msra.mxu0 %v6283
    %6466 = vmatprep.subr.bf16.mxu0 0
    %6467 = vmatpush1.bf16.msra.mxu0 %v6284
    %6468 = vmatprep.subr.bf16.mxu0 0
    %6469 = vmatpush1.bf16.msra.mxu0 %v6285
    %6470 = vmatprep.subr.bf16.mxu0 0
    %6471 = vmatpush1.bf16.msra.mxu0 %v6286
    %6472 = vmatprep.subr.bf16.mxu0 0
    %6473 = vmatpush1.bf16.msra.mxu0 %v6287
    %6474 = vmatprep.subr.bf16.mxu0 0
    %6475 = vmatpush1.bf16.msra.mxu0 %v6288
    %6476 = vmatprep.subr.bf16.mxu0 0
    %6477 = vmatpush1.bf16.msra.mxu0 %v6289
    %6478 = vmatprep.subr.bf16.mxu0 0
    %6479 = vmatpush1.bf16.msra.mxu0 %v6290
    %6480 = vmatprep.subr.bf16.mxu0 0
    %6481 = vmatpush1.bf16.msra.mxu0 %v6291
    %6482 = vmatprep.subr.bf16.mxu0 0
    %6483 = vmatpush1.bf16.msra.mxu0 %v6292
    %6484 = vmatprep.subr.bf16.mxu0 0
    %6485 = vmatpush1.bf16.msra.mxu0 %v6293
    %6486 = vmatprep.mubr.bf16.mxu0 %v5852
    %6487 = vmatmul.mubr.bf16.gmra.mrb[0].mxu0 %v5851
    %v6488 = vpop.f32.mrb[0].mxu0
    %v6489 = vadd.f32 %v6449, %v6488
    %v6490 = vpop.f32.mrb[0].mxu0
    %v6491 = vpop.f32.mrb[0].mxu0
    %v6492 = vpop.f32.mrb[0].mxu0
    %6493 = vdwg.mxu0
    %6494 = vmatprep.subr.bf16.mxu0 0
    %6495 = vmatpush1.bf16.msra.mxu0 %v6294
    %6496 = vmatprep.subr.bf16.mxu0 0
    %6497 = vmatpush1.bf16.msra.mxu0 %v6295
    %6498 = vmatprep.subr.bf16.mxu0 0
    %6499 = vmatpush1.bf16.msra.mxu0 %v6296
    %6500 = vmatprep.subr.bf16.mxu0 0
    %6501 = vmatpush1.bf16.msra.mxu0 %v6297
    %6502 = vmatprep.subr.bf16.mxu0 0
    %6503 = vmatpush1.bf16.msra.mxu0 %v6298
    %6504 = vmatprep.subr.bf16.mxu0 0
    %6505 = vmatpush1.bf16.msra.mxu0 %v6299
    %6506 = vmatprep.subr.bf16.mxu0 0
    %6507 = vmatpush1.bf16.msra.mxu0 %v6300
    %6508 = vmatprep.subr.bf16.mxu0 0
    %6509 = vmatpush1.bf16.msra.mxu0 %v6301
    %6510 = vmatprep.subr.bf16.mxu0 0
    %6511 = vmatpush1.bf16.msra.mxu0 %v6302
    %6512 = vmatprep.subr.bf16.mxu0 0
    %6513 = vmatpush1.bf16.msra.mxu0 %v6303
    %6514 = vmatprep.subr.bf16.mxu0 0
    %6515 = vmatpush1.bf16.msra.mxu0 %v6304
    %6516 = vmatprep.subr.bf16.mxu0 0
    %6517 = vmatpush1.bf16.msra.mxu0 %v6305
    %6518 = vmatprep.subr.bf16.mxu0 0
    %6519 = vmatpush1.bf16.msra.mxu0 %v6306
    %6520 = vmatprep.subr.bf16.mxu0 0
    %6521 = vmatpush1.bf16.msra.mxu0 %v6307
    %6522 = vmatprep.subr.bf16.mxu0 0
    %6523 = vmatpush1.bf16.msra.mxu0 %v6308
    %6524 = vmatprep.subr.bf16.mxu0 0
    %6525 = vmatpush1.bf16.msra.mxu0 %v6309
    %6526 = vmatprep.mubr.bf16.mxu0 %v5854
    %6527 = vmatmul.mubr.bf16.gmra.mrb[0].mxu0 %v5853
    %v6528 = vpop.f32.mrb[0].mxu0
    %v6529 = vadd.f32 %v6489, %v6528
    %v6530 = vpop.f32.mrb[0].mxu0
    %v6531 = vpop.f32.mrb[0].mxu0
    %v6532 = vpop.f32.mrb[0].mxu0
    %6533 = vdwg.mxu0
    %6534 = vst [vmem:[#allocation13] sm:$0xff] %v6529
    // Predicated region
    $region50: #{tpu_custom_call.1} parent=1 // pred_check
      _
    $region51: #{tpu_custom_call.1} parent=1 // pred_check_branch
      %6536 = sbr.rel (0) target = $region53
    $region52: #{tpu_custom_call.1} parent=1 // pred_region
      %s6538 = ssub.s32 128, 128
      %6539 = vsyncadd [#allocation4], %s6538
      %s6541 = sshll.u32 [#allocation13], 4
      %s6542 = int_to_ptr.vmem [resolvable:$true] %s6541
      %6544 = dma.vmem_to_hbm [thread:$0]  %s6542, 128, %s6, [#allocation4]
    $region53: #{tpu_custom_call.1} parent=1 // pred_fallthru
      _
    // Predicated region
    $region54: #{tpu_custom_call.1} parent=1 // pred_check
      _
    $region55: #{tpu_custom_call.1} parent=1 // pred_check_branch
      %6546 = sbr.rel (0) target = $region57
    $region56: #{tpu_custom_call.1} parent=1 // pred_region
      %6547 = dma.done [#allocation4], 128
    $region57: #{tpu_custom_call.1} parent=1 // pred_fallthru
      _
    %6548 = vsyncpa [#allocation3], 1
    %6549 = vsyncpa [#allocation6], 1
    %6550 = vsyncpa [#allocation9], 1
    %6551 = vsyncpa [#allocation12], 1
    %6552 = vsyncpa [#allocation4], 1

</llo_original>
